<compile_context>
chip_gen: v7x
topology: tpu7x:2x2x1
jax: 0.10.0
libtpu: 0.0.40
codegen_flags: <defaults>
</compile_context>

<pallas_src>
import jax
import jax.numpy as jnp
import numpy as np
from jax.experimental import pallas as pl
from jax.experimental.pallas import tpu as pltpu

LANES = 128


def _round_up(x, m):
    return -(-x // m) * m


# ----------------------------- Pallas kernel -------------------------------

def _cnn_kernel(x_ref, a_ref, b1_ref, bm_ref, b2_ref, wf_ref, bf_ref, o_ref):
    """Fused SimpleCNN forward for one batch tile.

    x_ref : (28, TB, 28)      f32   input images, layout (H, batch, W)
    a_ref : (2, 5, 28, 192)   bf16  conv1 banded weights [parity, dy, W_in, 12*16]
    b1_ref: (1, 192)          f32   conv1 bias tiled over the 12 pooled columns
    bm_ref: (2, 5, 192, 128)  bf16  conv2 banded weights [parity, dy, 12*16, 4*32]
    b2_ref: (1, 128)          f32   conv2 bias tiled over the 4 pooled columns
    wf_ref: (4, 128, 128)     bf16  fc weights, rows permuted to (j, c) order
    bf_ref: (1, 128)          f32   fc bias (10 real lanes, zero padded)
    o_ref : (TB, 128)         f32   logits (10 real lanes, zero padded)
    """
    tb = x_ref.shape[1]
    f32 = jnp.float32
    bf16 = jnp.bfloat16

    x = x_ref[...]                                               # (28, tb, 28)

    # ---- layer 1: conv(1->16,k5) -> 2x2 maxpool -> +bias -> relu ----------
    acc_e = jnp.zeros((24 * tb, 192), f32)
    acc_o = jnp.zeros((24 * tb, 192), f32)
    for dy in range(5):
        rows = x[dy:dy + 24].reshape(24 * tb, 28).astype(bf16)   # (h_out*b, w_in)
        acc_e += jnp.dot(rows, a_ref[0, dy], preferred_element_type=f32)
        acc_o += jnp.dot(rows, a_ref[1, dy], preferred_element_type=f32)
    a1 = jnp.maximum(acc_e, acc_o)                   # pool over width (parity)
    a1 = a1.reshape(12, 2, tb, 192)
    a1 = jnp.maximum(a1[:, 0], a1[:, 1])             # pool over height
    h1 = jnp.maximum(a1 + b1_ref[...], 0.0)          # (12, tb, 192) f32

    # ---- layer 2: conv(16->32,k5) -> 2x2 maxpool -> +bias -> relu ---------
    acc_e = jnp.zeros((8 * tb, 128), f32)
    acc_o = jnp.zeros((8 * tb, 128), f32)
    for dy in range(5):
        rows = h1[dy:dy + 8].reshape(8 * tb, 192).astype(bf16)
        acc_e += jnp.dot(rows, bm_ref[0, dy], preferred_element_type=f32)
        acc_o += jnp.dot(rows, bm_ref[1, dy], preferred_element_type=f32)
    a2 = jnp.maximum(acc_e, acc_o)
    a2 = a2.reshape(4, 2, tb, 128)
    a2 = jnp.maximum(a2[:, 0], a2[:, 1])
    h2 = jnp.maximum(a2 + b2_ref[...], 0.0)          # (4, tb, 128) f32

    # ---- fc 512 -> 10 (output lanes zero-padded to 128) -------------------
    acc = jnp.zeros((tb, LANES), f32)
    for i in range(4):
        acc += jnp.dot(h2[i].astype(bf16), wf_ref[i], preferred_element_type=f32)
    o_ref[...] = acc + bf_ref[...]


# ------------------------------ wrappers ------------------------------------

def _choose_batch_tile(n):
    """Batch tile (multiple of 8) dividing the 8-rounded batch; prefer >=2
    grid steps (feeds both v7x TensorCores) while keeping pad waste <= 7."""
    n8 = _round_up(max(n, 1), 8)
    tb = 8
    for cand in (32, 16):
        if n8 % cand == 0 and n8 // cand >= 2:
            tb = cand
            break
    return tb, n8


def _cnn_call(xt, prep, tb, n_pad):
    weight_bytes = 2 * (prep["A"].size + prep["B"].size + prep["Wf"].size) + 1792
    cost = pl.CostEstimate(
        flops=6_643_712 * n_pad,
        transcendentals=0,
        bytes_accessed=n_pad * (28 * 28 * 4 + LANES * 4) + weight_bytes)
    return pl.pallas_call(
        _cnn_kernel,
        out_shape=jax.ShapeDtypeStruct((n_pad, LANES), jnp.float32),
        grid=(n_pad // tb,),
        in_specs=[
            pl.BlockSpec((28, tb, 28), lambda i: (0, i, 0)),
            pl.BlockSpec((2, 5, 28, 192), lambda i: (0, 0, 0, 0)),
            pl.BlockSpec((1, 192), lambda i: (0, 0)),
            pl.BlockSpec((2, 5, 192, 128), lambda i: (0, 0, 0, 0)),
            pl.BlockSpec((1, 128), lambda i: (0, 0)),
            pl.BlockSpec((4, 128, 128), lambda i: (0, 0, 0)),
            pl.BlockSpec((1, 128), lambda i: (0, 0)),
        ],
        out_specs=pl.BlockSpec((tb, LANES), lambda i: (i, 0)),
        compiler_params=pltpu.CompilerParams(
            dimension_semantics=("parallel",)),
        cost_estimate=cost,
    )(xt, prep["A"], prep["b1"], prep["B"], prep["b2"], prep["Wf"], prep["bf"])


def simple_cnn_forward(x_nchw, prep):
    # x_nchw: (N, 1, 28, 28) float32
    n = x_nchw.shape[0]
    tb, n_pad = _choose_batch_tile(n)
    xt = jnp.transpose(x_nchw[:, 0, :, :], (1, 0, 2))      # (H=28, N, W=28)
    if n_pad != n:
        xt = jnp.pad(xt, ((0, 0), (0, n_pad - n), (0, 0)))
    out = _cnn_call(xt.astype(jnp.float32), prep, tb, n_pad)   # (n_pad, 128)
    return out[:n, :10]


# ------------------- one-time weight preprocessing (no jit) -----------------

def prepare_params(params):
    """Build banded conv matrices, permuted fc weights and tiled biases once.

      A[p, dy, w_in, wp*16 + co]    = conv2_w[co, 0, dy, w_in - 2*wp - p]
      B[p, dy, w*16 + ci, jp*32+co] = conv3_w[co, ci, dy, w   - 2*jp - p]
      Wf[i, j*32 + c, o]            = fc1_w[o, c*16 + i*4 + j]
    (entries outside the 0..4 kernel support are zero; p = pool parity.)
    """
    w1 = np.asarray(params["conv2_w"], np.float32)   # (16, 1, 5, 5)
    b1 = np.asarray(params["conv2_b"], np.float32)
    w2 = np.asarray(params["conv3_w"], np.float32)   # (32, 16, 5, 5)
    b2 = np.asarray(params["conv3_b"], np.float32)
    wf = np.asarray(params["fc1_w"], np.float32)     # (10, 512)
    bf = np.asarray(params["fc1_b"], np.float32)

    A = np.zeros((2, 5, 28, 12 * 16), np.float32)
    for p in range(2):
        for dy in range(5):
            for wp in range(12):
                for dx in range(5):
                    A[p, dy, 2 * wp + p + dx, wp * 16:(wp + 1) * 16] = w1[:, 0, dy, dx]

    B = np.zeros((2, 5, 12 * 16, 4 * 32), np.float32)
    for p in range(2):
        for dy in range(5):
            for jp in range(4):
                for dx in range(5):
                    w = 2 * jp + p + dx
                    for ci in range(16):
                        B[p, dy, w * 16 + ci, jp * 32:(jp + 1) * 32] = w2[:, ci, dy, dx]

    Wf = np.zeros((4, 128, LANES), np.float32)
    for i in range(4):
        for j in range(4):
            for c in range(32):
                Wf[i, j * 32 + c, :10] = wf[:, c * 16 + i * 4 + j]

    bf_p = np.zeros((1, LANES), np.float32)
    bf_p[0, :10] = bf

    return {
        "A": jnp.asarray(A, jnp.bfloat16),
        "b1": jnp.asarray(np.tile(b1, 12).reshape(1, 192), jnp.float32),
        "B": jnp.asarray(B, jnp.bfloat16),
        "b2": jnp.asarray(np.tile(b2, 4).reshape(1, 128), jnp.float32),
        "Wf": jnp.asarray(Wf, jnp.bfloat16),
        "bf": jnp.asarray(bf_p, jnp.float32),
    }


# --------------------------- params / reference -----------------------------

def init_params(key):
    ks = jax.random.split(key, 6)

    def u(k, shape, fan_in):
        bound = 1.0 / np.sqrt(fan_in)
        return jax.random.uniform(k, shape, jnp.float32, -bound, bound)

    return {
        "conv2_w": u(ks[0], (16, 1, 5, 5), 1 * 5 * 5),
        "conv2_b": u(ks[1], (16,), 1 * 5 * 5),
        "conv3_w": u(ks[2], (32, 16, 5, 5), 16 * 5 * 5),
        "conv3_b": u(ks[3], (32,), 16 * 5 * 5),
        "fc1_w": u(ks[4], (10, 512), 512),
        "fc1_b": u(ks[5], (10,), 512),
    }


def reference_forward(x_nchw, params):
    hi = jax.lax.Precision.HIGHEST

    def conv(x, w, b):
        y = jax.lax.conv_general_dilated(
            x, w, (1, 1), "VALID",
            dimension_numbers=("NCHW", "OIHW", "NCHW"), precision=hi)
        return y + b[None, :, None, None]

    def pool(x):
        n, c, h, w = x.shape
        return jnp.max(x.reshape(n, c, h // 2, 2, w // 2, 2), axis=(3, 5))

    x = jax.nn.relu(pool(conv(x_nchw, params["conv2_w"], params["conv2_b"])))
    x = jax.nn.relu(pool(conv(x, params["conv3_w"], params["conv3_b"])))
    x = x.reshape(x.shape[0], -1)
    return jnp.dot(x, params["fc1_w"].T, precision=hi) + params["fc1_b"]


if __name__ == "__main__":
    key = jax.random.PRNGKey(0)
    pkey, xkey = jax.random.split(key)
    params = init_params(pkey)
    prep = prepare_params(params)          # one-time weight preprocessing
    x = jax.random.normal(xkey, (2, 1, 28, 28), jnp.float32)  # MNIST-like, batch=2

    fwd = jax.jit(simple_cnn_forward)
    out = jax.block_until_ready(fwd(x, prep))
    ref = jax.block_until_ready(reference_forward(x, params))

    assert out.shape == (2, 10), out.shape
    if not np.allclose(np.asarray(out), np.asarray(ref), rtol=2e-2, atol=2e-2):
        raise AssertionError(
            f"mismatch: max abs diff "
            f"{float(np.max(np.abs(np.asarray(out) - np.asarray(ref))))}")
    print("KERNEL_OK")
</pallas_src>

<mosaic_0001>
module attributes {stable_mosaic.version = 11 : i64} {
  func.func @_cnn_kernel(%arg0: i32, %arg1: memref<28x8x28xf32, #tpu.memory_space<vmem>>, %arg2: memref<2x5x28x192xbf16, #tpu.memory_space<vmem>>, %arg3: memref<1x192xf32, #tpu.memory_space<vmem>>, %arg4: memref<2x5x192x128xbf16, #tpu.memory_space<vmem>>, %arg5: memref<1x128xf32, #tpu.memory_space<vmem>>, %arg6: memref<4x128x128xbf16, #tpu.memory_space<vmem>>, %arg7: memref<1x128xf32, #tpu.memory_space<vmem>>, %arg8: memref<8x128xf32, #tpu.memory_space<vmem>>) attributes {dimension_semantics = [#tpu.dimension_semantics<parallel>], iteration_bounds = array<i64: 1>, scalar_prefetch = 0 : i64, scratch_operands = 0 : i64, tpu.core_type = #tpu.core_type<tc>, window_params = [{transform_indices = @transform_0, window_bounds = array<i64: 28, 8, 28>}, {pipeline_mode = #tpu.pipeline_mode<synchronous>, transform_indices = @transform_1, window_bounds = array<i64: 2, 5, 28, 192>}, {pipeline_mode = #tpu.pipeline_mode<synchronous>, transform_indices = @transform_2, window_bounds = array<i64: 1, 192>}, {pipeline_mode = #tpu.pipeline_mode<synchronous>, transform_indices = @transform_3, window_bounds = array<i64: 2, 5, 192, 128>}, {pipeline_mode = #tpu.pipeline_mode<synchronous>, transform_indices = @transform_4, window_bounds = array<i64: 1, 128>}, {pipeline_mode = #tpu.pipeline_mode<synchronous>, transform_indices = @transform_5, window_bounds = array<i64: 4, 128, 128>}, {pipeline_mode = #tpu.pipeline_mode<synchronous>, transform_indices = @transform_6, window_bounds = array<i64: 1, 128>}, {transform_indices = @transform_7, window_bounds = array<i64: 8, 128>}]} {
    %c0 = arith.constant 0 : index
    %c0_0 = arith.constant 0 : index
    %c0_1 = arith.constant 0 : index
    %0 = vector.load %arg1[%c0, %c0_0, %c0_1] : memref<28x8x28xf32, #tpu.memory_space<vmem>>, vector<28x8x28xf32>
    %cst = arith.constant 0.000000e+00 : f32
    %1 = vector.broadcast %cst : f32 to vector<192x192xf32>
    %cst_2 = arith.constant 0.000000e+00 : f32
    %2 = vector.broadcast %cst_2 : f32 to vector<192x192xf32>
    %3 = vector.extract_strided_slice %0 {offsets = [0, 0, 0], sizes = [24, 8, 28], strides = [1, 1, 1]} : vector<28x8x28xf32> to vector<24x8x28xf32>
    %4 = vector.shape_cast %3 : vector<24x8x28xf32> to vector<192x28xf32>
    %5 = arith.truncf %4 : vector<192x28xf32> to vector<192x28xbf16>
    %c0_3 = arith.constant 0 : index
    %c0_4 = arith.constant 0 : index
    %c0_5 = arith.constant 0 : index
    %c0_6 = arith.constant 0 : index
    %6 = vector.load %arg2[%c0_3, %c0_4, %c0_5, %c0_6] : memref<2x5x28x192xbf16, #tpu.memory_space<vmem>>, vector<1x1x28x192xbf16>
    %7 = vector.shape_cast %6 : vector<1x1x28x192xbf16> to vector<28x192xbf16>
    %cst_7 = arith.constant dense<0.000000e+00> : vector<192x192xf32>
    %8 = tpu.matmul %5, %7, %cst_7 {dimension_numbers = #tpu.dot_dimension_numbers<[1], [0], [0], [1], [0, 0, 1, 1], [], []>} : vector<192x28xbf16>, vector<28x192xbf16>, vector<192x192xf32> -> vector<192x192xf32>
    %9 = arith.addf %1, %8 : vector<192x192xf32>
    %c1 = arith.constant 1 : index
    %c0_8 = arith.constant 0 : index
    %c0_9 = arith.constant 0 : index
    %c0_10 = arith.constant 0 : index
    %10 = vector.load %arg2[%c1, %c0_8, %c0_9, %c0_10] : memref<2x5x28x192xbf16, #tpu.memory_space<vmem>>, vector<1x1x28x192xbf16>
    %11 = vector.shape_cast %10 : vector<1x1x28x192xbf16> to vector<28x192xbf16>
    %cst_11 = arith.constant dense<0.000000e+00> : vector<192x192xf32>
    %12 = tpu.matmul %5, %11, %cst_11 {dimension_numbers = #tpu.dot_dimension_numbers<[1], [0], [0], [1], [0, 0, 1, 1], [], []>} : vector<192x28xbf16>, vector<28x192xbf16>, vector<192x192xf32> -> vector<192x192xf32>
    %13 = arith.addf %2, %12 : vector<192x192xf32>
    %14 = vector.extract_strided_slice %0 {offsets = [1, 0, 0], sizes = [24, 8, 28], strides = [1, 1, 1]} : vector<28x8x28xf32> to vector<24x8x28xf32>
    %15 = vector.shape_cast %14 : vector<24x8x28xf32> to vector<192x28xf32>
    %16 = arith.truncf %15 : vector<192x28xf32> to vector<192x28xbf16>
    %c0_12 = arith.constant 0 : index
    %c1_13 = arith.constant 1 : index
    %c0_14 = arith.constant 0 : index
    %c0_15 = arith.constant 0 : index
    %17 = vector.load %arg2[%c0_12, %c1_13, %c0_14, %c0_15] : memref<2x5x28x192xbf16, #tpu.memory_space<vmem>>, vector<1x1x28x192xbf16>
    %18 = vector.shape_cast %17 : vector<1x1x28x192xbf16> to vector<28x192xbf16>
    %cst_16 = arith.constant dense<0.000000e+00> : vector<192x192xf32>
    %19 = tpu.matmul %16, %18, %cst_16 {dimension_numbers = #tpu.dot_dimension_numbers<[1], [0], [0], [1], [0, 0, 1, 1], [], []>} : vector<192x28xbf16>, vector<28x192xbf16>, vector<192x192xf32> -> vector<192x192xf32>
    %20 = arith.addf %9, %19 : vector<192x192xf32>
    %c1_17 = arith.constant 1 : index
    %c1_18 = arith.constant 1 : index
    %c0_19 = arith.constant 0 : index
    %c0_20 = arith.constant 0 : index
    %21 = vector.load %arg2[%c1_17, %c1_18, %c0_19, %c0_20] : memref<2x5x28x192xbf16, #tpu.memory_space<vmem>>, vector<1x1x28x192xbf16>
    %22 = vector.shape_cast %21 : vector<1x1x28x192xbf16> to vector<28x192xbf16>
    %cst_21 = arith.constant dense<0.000000e+00> : vector<192x192xf32>
    %23 = tpu.matmul %16, %22, %cst_21 {dimension_numbers = #tpu.dot_dimension_numbers<[1], [0], [0], [1], [0, 0, 1, 1], [], []>} : vector<192x28xbf16>, vector<28x192xbf16>, vector<192x192xf32> -> vector<192x192xf32>
    %24 = arith.addf %13, %23 : vector<192x192xf32>
    %25 = vector.extract_strided_slice %0 {offsets = [2, 0, 0], sizes = [24, 8, 28], strides = [1, 1, 1]} : vector<28x8x28xf32> to vector<24x8x28xf32>
    %26 = vector.shape_cast %25 : vector<24x8x28xf32> to vector<192x28xf32>
    %27 = arith.truncf %26 : vector<192x28xf32> to vector<192x28xbf16>
    %c0_22 = arith.constant 0 : index
    %c2 = arith.constant 2 : index
    %c0_23 = arith.constant 0 : index
    %c0_24 = arith.constant 0 : index
    %28 = vector.load %arg2[%c0_22, %c2, %c0_23, %c0_24] : memref<2x5x28x192xbf16, #tpu.memory_space<vmem>>, vector<1x1x28x192xbf16>
    %29 = vector.shape_cast %28 : vector<1x1x28x192xbf16> to vector<28x192xbf16>
    %cst_25 = arith.constant dense<0.000000e+00> : vector<192x192xf32>
    %30 = tpu.matmul %27, %29, %cst_25 {dimension_numbers = #tpu.dot_dimension_numbers<[1], [0], [0], [1], [0, 0, 1, 1], [], []>} : vector<192x28xbf16>, vector<28x192xbf16>, vector<192x192xf32> -> vector<192x192xf32>
    %31 = arith.addf %20, %30 : vector<192x192xf32>
    %c1_26 = arith.constant 1 : index
    %c2_27 = arith.constant 2 : index
    %c0_28 = arith.constant 0 : index
    %c0_29 = arith.constant 0 : index
    %32 = vector.load %arg2[%c1_26, %c2_27, %c0_28, %c0_29] : memref<2x5x28x192xbf16, #tpu.memory_space<vmem>>, vector<1x1x28x192xbf16>
    %33 = vector.shape_cast %32 : vector<1x1x28x192xbf16> to vector<28x192xbf16>
    %cst_30 = arith.constant dense<0.000000e+00> : vector<192x192xf32>
    %34 = tpu.matmul %27, %33, %cst_30 {dimension_numbers = #tpu.dot_dimension_numbers<[1], [0], [0], [1], [0, 0, 1, 1], [], []>} : vector<192x28xbf16>, vector<28x192xbf16>, vector<192x192xf32> -> vector<192x192xf32>
    %35 = arith.addf %24, %34 : vector<192x192xf32>
    %36 = vector.extract_strided_slice %0 {offsets = [3, 0, 0], sizes = [24, 8, 28], strides = [1, 1, 1]} : vector<28x8x28xf32> to vector<24x8x28xf32>
    %37 = vector.shape_cast %36 : vector<24x8x28xf32> to vector<192x28xf32>
    %38 = arith.truncf %37 : vector<192x28xf32> to vector<192x28xbf16>
    %c0_31 = arith.constant 0 : index
    %c3 = arith.constant 3 : index
    %c0_32 = arith.constant 0 : index
    %c0_33 = arith.constant 0 : index
    %39 = vector.load %arg2[%c0_31, %c3, %c0_32, %c0_33] : memref<2x5x28x192xbf16, #tpu.memory_space<vmem>>, vector<1x1x28x192xbf16>
    %40 = vector.shape_cast %39 : vector<1x1x28x192xbf16> to vector<28x192xbf16>
    %cst_34 = arith.constant dense<0.000000e+00> : vector<192x192xf32>
    %41 = tpu.matmul %38, %40, %cst_34 {dimension_numbers = #tpu.dot_dimension_numbers<[1], [0], [0], [1], [0, 0, 1, 1], [], []>} : vector<192x28xbf16>, vector<28x192xbf16>, vector<192x192xf32> -> vector<192x192xf32>
    %42 = arith.addf %31, %41 : vector<192x192xf32>
    %c1_35 = arith.constant 1 : index
    %c3_36 = arith.constant 3 : index
    %c0_37 = arith.constant 0 : index
    %c0_38 = arith.constant 0 : index
    %43 = vector.load %arg2[%c1_35, %c3_36, %c0_37, %c0_38] : memref<2x5x28x192xbf16, #tpu.memory_space<vmem>>, vector<1x1x28x192xbf16>
    %44 = vector.shape_cast %43 : vector<1x1x28x192xbf16> to vector<28x192xbf16>
    %cst_39 = arith.constant dense<0.000000e+00> : vector<192x192xf32>
    %45 = tpu.matmul %38, %44, %cst_39 {dimension_numbers = #tpu.dot_dimension_numbers<[1], [0], [0], [1], [0, 0, 1, 1], [], []>} : vector<192x28xbf16>, vector<28x192xbf16>, vector<192x192xf32> -> vector<192x192xf32>
    %46 = arith.addf %35, %45 : vector<192x192xf32>
    %47 = vector.extract_strided_slice %0 {offsets = [4, 0, 0], sizes = [24, 8, 28], strides = [1, 1, 1]} : vector<28x8x28xf32> to vector<24x8x28xf32>
    %48 = vector.shape_cast %47 : vector<24x8x28xf32> to vector<192x28xf32>
    %49 = arith.truncf %48 : vector<192x28xf32> to vector<192x28xbf16>
    %c0_40 = arith.constant 0 : index
    %c4 = arith.constant 4 : index
    %c0_41 = arith.constant 0 : index
    %c0_42 = arith.constant 0 : index
    %50 = vector.load %arg2[%c0_40, %c4, %c0_41, %c0_42] : memref<2x5x28x192xbf16, #tpu.memory_space<vmem>>, vector<1x1x28x192xbf16>
    %51 = vector.shape_cast %50 : vector<1x1x28x192xbf16> to vector<28x192xbf16>
    %cst_43 = arith.constant dense<0.000000e+00> : vector<192x192xf32>
    %52 = tpu.matmul %49, %51, %cst_43 {dimension_numbers = #tpu.dot_dimension_numbers<[1], [0], [0], [1], [0, 0, 1, 1], [], []>} : vector<192x28xbf16>, vector<28x192xbf16>, vector<192x192xf32> -> vector<192x192xf32>
    %53 = arith.addf %42, %52 : vector<192x192xf32>
    %c1_44 = arith.constant 1 : index
    %c4_45 = arith.constant 4 : index
    %c0_46 = arith.constant 0 : index
    %c0_47 = arith.constant 0 : index
    %54 = vector.load %arg2[%c1_44, %c4_45, %c0_46, %c0_47] : memref<2x5x28x192xbf16, #tpu.memory_space<vmem>>, vector<1x1x28x192xbf16>
    %55 = vector.shape_cast %54 : vector<1x1x28x192xbf16> to vector<28x192xbf16>
    %cst_48 = arith.constant dense<0.000000e+00> : vector<192x192xf32>
    %56 = tpu.matmul %49, %55, %cst_48 {dimension_numbers = #tpu.dot_dimension_numbers<[1], [0], [0], [1], [0, 0, 1, 1], [], []>} : vector<192x28xbf16>, vector<28x192xbf16>, vector<192x192xf32> -> vector<192x192xf32>
    %57 = arith.addf %46, %56 : vector<192x192xf32>
    %58 = arith.maximumf %53, %57 : vector<192x192xf32>
    %59 = vector.shape_cast %58 : vector<192x192xf32> to vector<12x2x8x192xf32>
    %60 = vector.extract_strided_slice %59 {offsets = [0, 0, 0, 0], sizes = [12, 1, 8, 192], strides = [1, 1, 1, 1]} : vector<12x2x8x192xf32> to vector<12x1x8x192xf32>
    %61 = vector.shape_cast %60 : vector<12x1x8x192xf32> to vector<12x8x192xf32>
    %62 = vector.extract_strided_slice %59 {offsets = [0, 1, 0, 0], sizes = [12, 1, 8, 192], strides = [1, 1, 1, 1]} : vector<12x2x8x192xf32> to vector<12x1x8x192xf32>
    %63 = vector.shape_cast %62 : vector<12x1x8x192xf32> to vector<12x8x192xf32>
    %64 = arith.maximumf %61, %63 : vector<12x8x192xf32>
    %c0_49 = arith.constant 0 : index
    %c0_50 = arith.constant 0 : index
    %65 = vector.load %arg3[%c0_49, %c0_50] : memref<1x192xf32, #tpu.memory_space<vmem>>, vector<1x192xf32>
    %66 = vector.shape_cast %65 : vector<1x192xf32> to vector<1x1x192xf32>
    %67 = vector.broadcast %66 : vector<1x1x192xf32> to vector<12x8x192xf32>
    %68 = arith.addf %64, %67 : vector<12x8x192xf32>
    %cst_51 = arith.constant 0.000000e+00 : f32
    %69 = vector.broadcast %cst_51 : f32 to vector<12x8x192xf32>
    %70 = arith.maximumf %68, %69 : vector<12x8x192xf32>
    %cst_52 = arith.constant 0.000000e+00 : f32
    %71 = vector.broadcast %cst_52 : f32 to vector<64x128xf32>
    %cst_53 = arith.constant 0.000000e+00 : f32
    %72 = vector.broadcast %cst_53 : f32 to vector<64x128xf32>
    %73 = vector.extract_strided_slice %70 {offsets = [0, 0, 0], sizes = [8, 8, 192], strides = [1, 1, 1]} : vector<12x8x192xf32> to vector<8x8x192xf32>
    %74 = vector.shape_cast %73 : vector<8x8x192xf32> to vector<64x192xf32>
    %75 = arith.truncf %74 : vector<64x192xf32> to vector<64x192xbf16>
    %c0_54 = arith.constant 0 : index
    %c0_55 = arith.constant 0 : index
    %c0_56 = arith.constant 0 : index
    %c0_57 = arith.constant 0 : index
    %76 = vector.load %arg4[%c0_54, %c0_55, %c0_56, %c0_57] : memref<2x5x192x128xbf16, #tpu.memory_space<vmem>>, vector<1x1x192x128xbf16>
    %77 = vector.shape_cast %76 : vector<1x1x192x128xbf16> to vector<192x128xbf16>
    %cst_58 = arith.constant dense<0.000000e+00> : vector<64x128xf32>
    %78 = tpu.matmul %75, %77, %cst_58 {dimension_numbers = #tpu.dot_dimension_numbers<[1], [0], [0], [1], [0, 0, 1, 1], [], []>} : vector<64x192xbf16>, vector<192x128xbf16>, vector<64x128xf32> -> vector<64x128xf32>
    %79 = arith.addf %71, %78 : vector<64x128xf32>
    %c1_59 = arith.constant 1 : index
    %c0_60 = arith.constant 0 : index
    %c0_61 = arith.constant 0 : index
    %c0_62 = arith.constant 0 : index
    %80 = vector.load %arg4[%c1_59, %c0_60, %c0_61, %c0_62] : memref<2x5x192x128xbf16, #tpu.memory_space<vmem>>, vector<1x1x192x128xbf16>
    %81 = vector.shape_cast %80 : vector<1x1x192x128xbf16> to vector<192x128xbf16>
    %cst_63 = arith.constant dense<0.000000e+00> : vector<64x128xf32>
    %82 = tpu.matmul %75, %81, %cst_63 {dimension_numbers = #tpu.dot_dimension_numbers<[1], [0], [0], [1], [0, 0, 1, 1], [], []>} : vector<64x192xbf16>, vector<192x128xbf16>, vector<64x128xf32> -> vector<64x128xf32>
    %83 = arith.addf %72, %82 : vector<64x128xf32>
    %84 = vector.extract_strided_slice %70 {offsets = [1, 0, 0], sizes = [8, 8, 192], strides = [1, 1, 1]} : vector<12x8x192xf32> to vector<8x8x192xf32>
    %85 = vector.shape_cast %84 : vector<8x8x192xf32> to vector<64x192xf32>
    %86 = arith.truncf %85 : vector<64x192xf32> to vector<64x192xbf16>
    %c0_64 = arith.constant 0 : index
    %c1_65 = arith.constant 1 : index
    %c0_66 = arith.constant 0 : index
    %c0_67 = arith.constant 0 : index
    %87 = vector.load %arg4[%c0_64, %c1_65, %c0_66, %c0_67] : memref<2x5x192x128xbf16, #tpu.memory_space<vmem>>, vector<1x1x192x128xbf16>
    %88 = vector.shape_cast %87 : vector<1x1x192x128xbf16> to vector<192x128xbf16>
    %cst_68 = arith.constant dense<0.000000e+00> : vector<64x128xf32>
    %89 = tpu.matmul %86, %88, %cst_68 {dimension_numbers = #tpu.dot_dimension_numbers<[1], [0], [0], [1], [0, 0, 1, 1], [], []>} : vector<64x192xbf16>, vector<192x128xbf16>, vector<64x128xf32> -> vector<64x128xf32>
    %90 = arith.addf %79, %89 : vector<64x128xf32>
    %c1_69 = arith.constant 1 : index
    %c1_70 = arith.constant 1 : index
    %c0_71 = arith.constant 0 : index
    %c0_72 = arith.constant 0 : index
    %91 = vector.load %arg4[%c1_69, %c1_70, %c0_71, %c0_72] : memref<2x5x192x128xbf16, #tpu.memory_space<vmem>>, vector<1x1x192x128xbf16>
    %92 = vector.shape_cast %91 : vector<1x1x192x128xbf16> to vector<192x128xbf16>
    %cst_73 = arith.constant dense<0.000000e+00> : vector<64x128xf32>
    %93 = tpu.matmul %86, %92, %cst_73 {dimension_numbers = #tpu.dot_dimension_numbers<[1], [0], [0], [1], [0, 0, 1, 1], [], []>} : vector<64x192xbf16>, vector<192x128xbf16>, vector<64x128xf32> -> vector<64x128xf32>
    %94 = arith.addf %83, %93 : vector<64x128xf32>
    %95 = vector.extract_strided_slice %70 {offsets = [2, 0, 0], sizes = [8, 8, 192], strides = [1, 1, 1]} : vector<12x8x192xf32> to vector<8x8x192xf32>
    %96 = vector.shape_cast %95 : vector<8x8x192xf32> to vector<64x192xf32>
    %97 = arith.truncf %96 : vector<64x192xf32> to vector<64x192xbf16>
    %c0_74 = arith.constant 0 : index
    %c2_75 = arith.constant 2 : index
    %c0_76 = arith.constant 0 : index
    %c0_77 = arith.constant 0 : index
    %98 = vector.load %arg4[%c0_74, %c2_75, %c0_76, %c0_77] : memref<2x5x192x128xbf16, #tpu.memory_space<vmem>>, vector<1x1x192x128xbf16>
    %99 = vector.shape_cast %98 : vector<1x1x192x128xbf16> to vector<192x128xbf16>
    %cst_78 = arith.constant dense<0.000000e+00> : vector<64x128xf32>
    %100 = tpu.matmul %97, %99, %cst_78 {dimension_numbers = #tpu.dot_dimension_numbers<[1], [0], [0], [1], [0, 0, 1, 1], [], []>} : vector<64x192xbf16>, vector<192x128xbf16>, vector<64x128xf32> -> vector<64x128xf32>
    %101 = arith.addf %90, %100 : vector<64x128xf32>
    %c1_79 = arith.constant 1 : index
    %c2_80 = arith.constant 2 : index
    %c0_81 = arith.constant 0 : index
    %c0_82 = arith.constant 0 : index
    %102 = vector.load %arg4[%c1_79, %c2_80, %c0_81, %c0_82] : memref<2x5x192x128xbf16, #tpu.memory_space<vmem>>, vector<1x1x192x128xbf16>
    %103 = vector.shape_cast %102 : vector<1x1x192x128xbf16> to vector<192x128xbf16>
    %cst_83 = arith.constant dense<0.000000e+00> : vector<64x128xf32>
    %104 = tpu.matmul %97, %103, %cst_83 {dimension_numbers = #tpu.dot_dimension_numbers<[1], [0], [0], [1], [0, 0, 1, 1], [], []>} : vector<64x192xbf16>, vector<192x128xbf16>, vector<64x128xf32> -> vector<64x128xf32>
    %105 = arith.addf %94, %104 : vector<64x128xf32>
    %106 = vector.extract_strided_slice %70 {offsets = [3, 0, 0], sizes = [8, 8, 192], strides = [1, 1, 1]} : vector<12x8x192xf32> to vector<8x8x192xf32>
    %107 = vector.shape_cast %106 : vector<8x8x192xf32> to vector<64x192xf32>
    %108 = arith.truncf %107 : vector<64x192xf32> to vector<64x192xbf16>
    %c0_84 = arith.constant 0 : index
    %c3_85 = arith.constant 3 : index
    %c0_86 = arith.constant 0 : index
    %c0_87 = arith.constant 0 : index
    %109 = vector.load %arg4[%c0_84, %c3_85, %c0_86, %c0_87] : memref<2x5x192x128xbf16, #tpu.memory_space<vmem>>, vector<1x1x192x128xbf16>
    %110 = vector.shape_cast %109 : vector<1x1x192x128xbf16> to vector<192x128xbf16>
    %cst_88 = arith.constant dense<0.000000e+00> : vector<64x128xf32>
    %111 = tpu.matmul %108, %110, %cst_88 {dimension_numbers = #tpu.dot_dimension_numbers<[1], [0], [0], [1], [0, 0, 1, 1], [], []>} : vector<64x192xbf16>, vector<192x128xbf16>, vector<64x128xf32> -> vector<64x128xf32>
    %112 = arith.addf %101, %111 : vector<64x128xf32>
    %c1_89 = arith.constant 1 : index
    %c3_90 = arith.constant 3 : index
    %c0_91 = arith.constant 0 : index
    %c0_92 = arith.constant 0 : index
    %113 = vector.load %arg4[%c1_89, %c3_90, %c0_91, %c0_92] : memref<2x5x192x128xbf16, #tpu.memory_space<vmem>>, vector<1x1x192x128xbf16>
    %114 = vector.shape_cast %113 : vector<1x1x192x128xbf16> to vector<192x128xbf16>
    %cst_93 = arith.constant dense<0.000000e+00> : vector<64x128xf32>
    %115 = tpu.matmul %108, %114, %cst_93 {dimension_numbers = #tpu.dot_dimension_numbers<[1], [0], [0], [1], [0, 0, 1, 1], [], []>} : vector<64x192xbf16>, vector<192x128xbf16>, vector<64x128xf32> -> vector<64x128xf32>
    %116 = arith.addf %105, %115 : vector<64x128xf32>
    %117 = vector.extract_strided_slice %70 {offsets = [4, 0, 0], sizes = [8, 8, 192], strides = [1, 1, 1]} : vector<12x8x192xf32> to vector<8x8x192xf32>
    %118 = vector.shape_cast %117 : vector<8x8x192xf32> to vector<64x192xf32>
    %119 = arith.truncf %118 : vector<64x192xf32> to vector<64x192xbf16>
    %c0_94 = arith.constant 0 : index
    %c4_95 = arith.constant 4 : index
    %c0_96 = arith.constant 0 : index
    %c0_97 = arith.constant 0 : index
    %120 = vector.load %arg4[%c0_94, %c4_95, %c0_96, %c0_97] : memref<2x5x192x128xbf16, #tpu.memory_space<vmem>>, vector<1x1x192x128xbf16>
    %121 = vector.shape_cast %120 : vector<1x1x192x128xbf16> to vector<192x128xbf16>
    %cst_98 = arith.constant dense<0.000000e+00> : vector<64x128xf32>
    %122 = tpu.matmul %119, %121, %cst_98 {dimension_numbers = #tpu.dot_dimension_numbers<[1], [0], [0], [1], [0, 0, 1, 1], [], []>} : vector<64x192xbf16>, vector<192x128xbf16>, vector<64x128xf32> -> vector<64x128xf32>
    %123 = arith.addf %112, %122 : vector<64x128xf32>
    %c1_99 = arith.constant 1 : index
    %c4_100 = arith.constant 4 : index
    %c0_101 = arith.constant 0 : index
    %c0_102 = arith.constant 0 : index
    %124 = vector.load %arg4[%c1_99, %c4_100, %c0_101, %c0_102] : memref<2x5x192x128xbf16, #tpu.memory_space<vmem>>, vector<1x1x192x128xbf16>
    %125 = vector.shape_cast %124 : vector<1x1x192x128xbf16> to vector<192x128xbf16>
    %cst_103 = arith.constant dense<0.000000e+00> : vector<64x128xf32>
    %126 = tpu.matmul %119, %125, %cst_103 {dimension_numbers = #tpu.dot_dimension_numbers<[1], [0], [0], [1], [0, 0, 1, 1], [], []>} : vector<64x192xbf16>, vector<192x128xbf16>, vector<64x128xf32> -> vector<64x128xf32>
    %127 = arith.addf %116, %126 : vector<64x128xf32>
    %128 = arith.maximumf %123, %127 : vector<64x128xf32>
    %129 = vector.shape_cast %128 : vector<64x128xf32> to vector<4x2x8x128xf32>
    %130 = vector.extract_strided_slice %129 {offsets = [0, 0, 0, 0], sizes = [4, 1, 8, 128], strides = [1, 1, 1, 1]} : vector<4x2x8x128xf32> to vector<4x1x8x128xf32>
    %131 = vector.shape_cast %130 : vector<4x1x8x128xf32> to vector<4x8x128xf32>
    %132 = vector.extract_strided_slice %129 {offsets = [0, 1, 0, 0], sizes = [4, 1, 8, 128], strides = [1, 1, 1, 1]} : vector<4x2x8x128xf32> to vector<4x1x8x128xf32>
    %133 = vector.shape_cast %132 : vector<4x1x8x128xf32> to vector<4x8x128xf32>
    %134 = arith.maximumf %131, %133 : vector<4x8x128xf32>
    %c0_104 = arith.constant 0 : index
    %c0_105 = arith.constant 0 : index
    %135 = vector.load %arg5[%c0_104, %c0_105] : memref<1x128xf32, #tpu.memory_space<vmem>>, vector<1x128xf32>
    %136 = vector.shape_cast %135 : vector<1x128xf32> to vector<1x1x128xf32>
    %137 = vector.broadcast %136 : vector<1x1x128xf32> to vector<4x8x128xf32>
    %138 = arith.addf %134, %137 : vector<4x8x128xf32>
    %cst_106 = arith.constant 0.000000e+00 : f32
    %139 = vector.broadcast %cst_106 : f32 to vector<4x8x128xf32>
    %140 = arith.maximumf %138, %139 : vector<4x8x128xf32>
    %cst_107 = arith.constant 0.000000e+00 : f32
    %141 = vector.broadcast %cst_107 : f32 to vector<8x128xf32>
    %142 = vector.extract_strided_slice %140 {offsets = [0, 0, 0], sizes = [1, 8, 128], strides = [1, 1, 1]} : vector<4x8x128xf32> to vector<1x8x128xf32>
    %143 = vector.shape_cast %142 : vector<1x8x128xf32> to vector<8x128xf32>
    %144 = arith.truncf %143 : vector<8x128xf32> to vector<8x128xbf16>
    %c0_108 = arith.constant 0 : index
    %c0_109 = arith.constant 0 : index
    %c0_110 = arith.constant 0 : index
    %145 = vector.load %arg6[%c0_108, %c0_109, %c0_110] : memref<4x128x128xbf16, #tpu.memory_space<vmem>>, vector<1x128x128xbf16>
    %146 = vector.shape_cast %145 : vector<1x128x128xbf16> to vector<128x128xbf16>
    %cst_111 = arith.constant dense<0.000000e+00> : vector<8x128xf32>
    %147 = tpu.matmul %144, %146, %cst_111 {dimension_numbers = #tpu.dot_dimension_numbers<[1], [0], [0], [1], [0, 0, 1, 1], [], []>} : vector<8x128xbf16>, vector<128x128xbf16>, vector<8x128xf32> -> vector<8x128xf32>
    %148 = arith.addf %141, %147 : vector<8x128xf32>
    %149 = vector.extract_strided_slice %140 {offsets = [1, 0, 0], sizes = [1, 8, 128], strides = [1, 1, 1]} : vector<4x8x128xf32> to vector<1x8x128xf32>
    %150 = vector.shape_cast %149 : vector<1x8x128xf32> to vector<8x128xf32>
    %151 = arith.truncf %150 : vector<8x128xf32> to vector<8x128xbf16>
    %c1_112 = arith.constant 1 : index
    %c0_113 = arith.constant 0 : index
    %c0_114 = arith.constant 0 : index
    %152 = vector.load %arg6[%c1_112, %c0_113, %c0_114] : memref<4x128x128xbf16, #tpu.memory_space<vmem>>, vector<1x128x128xbf16>
    %153 = vector.shape_cast %152 : vector<1x128x128xbf16> to vector<128x128xbf16>
    %cst_115 = arith.constant dense<0.000000e+00> : vector<8x128xf32>
    %154 = tpu.matmul %151, %153, %cst_115 {dimension_numbers = #tpu.dot_dimension_numbers<[1], [0], [0], [1], [0, 0, 1, 1], [], []>} : vector<8x128xbf16>, vector<128x128xbf16>, vector<8x128xf32> -> vector<8x128xf32>
    %155 = arith.addf %148, %154 : vector<8x128xf32>
    %156 = vector.extract_strided_slice %140 {offsets = [2, 0, 0], sizes = [1, 8, 128], strides = [1, 1, 1]} : vector<4x8x128xf32> to vector<1x8x128xf32>
    %157 = vector.shape_cast %156 : vector<1x8x128xf32> to vector<8x128xf32>
    %158 = arith.truncf %157 : vector<8x128xf32> to vector<8x128xbf16>
    %c2_116 = arith.constant 2 : index
    %c0_117 = arith.constant 0 : index
    %c0_118 = arith.constant 0 : index
    %159 = vector.load %arg6[%c2_116, %c0_117, %c0_118] : memref<4x128x128xbf16, #tpu.memory_space<vmem>>, vector<1x128x128xbf16>
    %160 = vector.shape_cast %159 : vector<1x128x128xbf16> to vector<128x128xbf16>
    %cst_119 = arith.constant dense<0.000000e+00> : vector<8x128xf32>
    %161 = tpu.matmul %158, %160, %cst_119 {dimension_numbers = #tpu.dot_dimension_numbers<[1], [0], [0], [1], [0, 0, 1, 1], [], []>} : vector<8x128xbf16>, vector<128x128xbf16>, vector<8x128xf32> -> vector<8x128xf32>
    %162 = arith.addf %155, %161 : vector<8x128xf32>
    %163 = vector.extract_strided_slice %140 {offsets = [3, 0, 0], sizes = [1, 8, 128], strides = [1, 1, 1]} : vector<4x8x128xf32> to vector<1x8x128xf32>
    %164 = vector.shape_cast %163 : vector<1x8x128xf32> to vector<8x128xf32>
    %165 = arith.truncf %164 : vector<8x128xf32> to vector<8x128xbf16>
    %c3_120 = arith.constant 3 : index
    %c0_121 = arith.constant 0 : index
    %c0_122 = arith.constant 0 : index
    %166 = vector.load %arg6[%c3_120, %c0_121, %c0_122] : memref<4x128x128xbf16, #tpu.memory_space<vmem>>, vector<1x128x128xbf16>
    %167 = vector.shape_cast %166 : vector<1x128x128xbf16> to vector<128x128xbf16>
    %cst_123 = arith.constant dense<0.000000e+00> : vector<8x128xf32>
    %168 = tpu.matmul %165, %167, %cst_123 {dimension_numbers = #tpu.dot_dimension_numbers<[1], [0], [0], [1], [0, 0, 1, 1], [], []>} : vector<8x128xbf16>, vector<128x128xbf16>, vector<8x128xf32> -> vector<8x128xf32>
    %169 = arith.addf %162, %168 : vector<8x128xf32>
    %c0_124 = arith.constant 0 : index
    %c0_125 = arith.constant 0 : index
    %170 = vector.load %arg7[%c0_124, %c0_125] : memref<1x128xf32, #tpu.memory_space<vmem>>, vector<1x128xf32>
    %171 = vector.broadcast %170 : vector<1x128xf32> to vector<8x128xf32>
    %172 = arith.addf %169, %171 : vector<8x128xf32>
    %c0_126 = arith.constant 0 : index
    %c0_127 = arith.constant 0 : index
    %173 = vector.load %arg8[%c0_126, %c0_127] : memref<8x128xf32, #tpu.memory_space<vmem>>, vector<8x128xf32>
    tpu.vector_store %arg8[%c0_126, %c0_127], %172 {strides = array<i32>} : memref<8x128xf32, #tpu.memory_space<vmem>>, vector<8x128xf32>,
    return
  }
  func.func @transform_0(%arg0: i32) -> (i32, i32, i32) {
    %c0_i32 = arith.constant 0 : i32
    %c0_i32_0 = arith.constant 0 : i32
    %c0_i32_1 = arith.constant 0 : i32
    return %c0_i32, %arg0, %c0_i32_0 : i32, i32, i32
  }
  func.func @transform_1(%arg0: i32) -> (i32, i32, i32, i32) {
    %c0_i32 = arith.constant 0 : i32
    %c0_i32_0 = arith.constant 0 : i32
    %c0_i32_1 = arith.constant 0 : i32
    %c0_i32_2 = arith.constant 0 : i32
    %c0_i32_3 = arith.constant 0 : i32
    return %c0_i32, %c0_i32_0, %c0_i32_1, %c0_i32_2 : i32, i32, i32, i32
  }
  func.func @transform_2(%arg0: i32) -> (i32, i32) {
    %c0_i32 = arith.constant 0 : i32
    %c0_i32_0 = arith.constant 0 : i32
    %c0_i32_1 = arith.constant 0 : i32
    return %c0_i32, %c0_i32_0 : i32, i32
  }
  func.func @transform_3(%arg0: i32) -> (i32, i32, i32, i32) {
    %c0_i32 = arith.constant 0 : i32
    %c0_i32_0 = arith.constant 0 : i32
    %c0_i32_1 = arith.constant 0 : i32
    %c0_i32_2 = arith.constant 0 : i32
    %c0_i32_3 = arith.constant 0 : i32
    return %c0_i32, %c0_i32_0, %c0_i32_1, %c0_i32_2 : i32, i32, i32, i32
  }
  func.func @transform_4(%arg0: i32) -> (i32, i32) {
    %c0_i32 = arith.constant 0 : i32
    %c0_i32_0 = arith.constant 0 : i32
    %c0_i32_1 = arith.constant 0 : i32
    return %c0_i32, %c0_i32_0 : i32, i32
  }
  func.func @transform_5(%arg0: i32) -> (i32, i32, i32) {
    %c0_i32 = arith.constant 0 : i32
    %c0_i32_0 = arith.constant 0 : i32
    %c0_i32_1 = arith.constant 0 : i32
    %c0_i32_2 = arith.constant 0 : i32
    return %c0_i32, %c0_i32_0, %c0_i32_1 : i32, i32, i32
  }
  func.func @transform_6(%arg0: i32) -> (i32, i32) {
    %c0_i32 = arith.constant 0 : i32
    %c0_i32_0 = arith.constant 0 : i32
    %c0_i32_1 = arith.constant 0 : i32
    return %c0_i32, %c0_i32_0 : i32, i32
  }
  func.func @transform_7(%arg0: i32) -> (i32, i32) {
    %c0_i32 = arith.constant 0 : i32
    %c0_i32_0 = arith.constant 0 : i32
    return %arg0, %c0_i32 : i32, i32
  }
}

</mosaic_0001>

<llo_original>
// kernel: simple_cnn_forward.1
$region0: #{simple_cnn_forward.1}
  #allocation0 [shape = 'u32[]', space=smem, size = 0x4, offset = 0x4, fixed_abs, tag = 'smem constant byte address 0x4 - core index']
  #allocation1 [shape = 'u32[144,128]{1,0:T(1,128)}', space=vmem, size = 0x12000, scoped, tag = 'internal scratch']
  %s0 = inlined_call_operand.vmem [shape: f32[28,8,28], index: 0, kind: input, shape index: {}]
  %s1 = inlined_call_operand.vmem [shape: bf16[2,5,28,192], index: 1, kind: input, shape index: {}]
  %s2 = inlined_call_operand.vmem [shape: f32[1,192], index: 2, kind: input, shape index: {}]
  %s3 = inlined_call_operand.vmem [shape: bf16[2,5,192,128], index: 3, kind: input, shape index: {}]
  %s4 = inlined_call_operand.vmem [shape: f32[1,128], index: 4, kind: input, shape index: {}]
  %s5 = inlined_call_operand.hbm [shape: bf16[4,128,128], index: 5, kind: input, shape index: {}]
  %s6 = inlined_call_operand.vmem [shape: f32[1,128], index: 6, kind: input, shape index: {}]
  %s7 = inlined_call_operand.vmem [shape: f32[8,128], index: 7, kind: output, shape index: {}]
  %s8 = sld [smem:[#allocation0]]
  $region42: #{simple_cnn_forward.1} parent=0
    _
  %s10 = ssub.s32 1, %s8
  %s11 = scalar_select 0, %s10, %s8
  $region1: #{simple_cnn_forward.1} parent=0
    #allocation2 [shape = 'u8[131072]{0}', space=vmem, size = 0x20000, scoped, tag = 'input window, operand 5, single buffered']
    #allocation3 [shape = 's32[1]{0}', space=sflag, size = 0x4, scoped, tag = 'scoped memory for simple_cnn_forward.1']
    %12 = vsyncpa [#allocation3], 0
    // Predicated region
    $region2: #{simple_cnn_forward.1} parent=1 // pred_check
      _
    $region3: #{simple_cnn_forward.1} parent=1 // pred_check_branch
      %14 = sbr.rel (0) target = $region5
    $region4: #{simple_cnn_forward.1} parent=1 // pred_region
      _
    $region5: #{simple_cnn_forward.1} parent=1 // pred_fallthru
      _
    // Predicated region
    $region6: #{simple_cnn_forward.1} parent=1 // pred_check
      _
    $region7: #{simple_cnn_forward.1} parent=1 // pred_check_branch
      %16 = sbr.rel (0) target = $region9
    $region8: #{simple_cnn_forward.1} parent=1 // pred_region
      _
    $region9: #{simple_cnn_forward.1} parent=1 // pred_fallthru
      _
    // Predicated region
    $region10: #{simple_cnn_forward.1} parent=1 // pred_check
      _
    $region11: #{simple_cnn_forward.1} parent=1 // pred_check_branch
      %18 = sbr.rel (0) target = $region13
    $region12: #{simple_cnn_forward.1} parent=1 // pred_region
      _
    $region13: #{simple_cnn_forward.1} parent=1 // pred_fallthru
      _
    // Predicated region
    $region14: #{simple_cnn_forward.1} parent=1 // pred_check
      _
    $region15: #{simple_cnn_forward.1} parent=1 // pred_check_branch
      %20 = sbr.rel (0) target = $region17
    $region16: #{simple_cnn_forward.1} parent=1 // pred_region
      _
    $region17: #{simple_cnn_forward.1} parent=1 // pred_fallthru
      _
    // Predicated region
    $region18: #{simple_cnn_forward.1} parent=1 // pred_check
      _
    $region19: #{simple_cnn_forward.1} parent=1 // pred_check_branch
      %22 = sbr.rel (0) target = $region21
    $region20: #{simple_cnn_forward.1} parent=1 // pred_region
      _
    $region21: #{simple_cnn_forward.1} parent=1 // pred_fallthru
      _
    // Predicated region
    $region22: #{simple_cnn_forward.1} parent=1 // pred_check
      _
    $region23: #{simple_cnn_forward.1} parent=1 // pred_check_branch
      %24 = sbr.rel (0) target = $region25
    $region24: #{simple_cnn_forward.1} parent=1 // pred_region
      %s26 = ssub.s32 4096, 4096
      %27 = vsyncadd [#allocation3], %s26
      %s28 = sshll.u32 [#allocation2], 4
      %s29 = int_to_ptr.vmem [resolvable:$true] %s28
      %34 = dma.hbm_to_vmem [thread:$0]  %s5, 4096, %s29, [#allocation3], 64, 64, 4
    $region25: #{simple_cnn_forward.1} parent=1 // pred_fallthru
      _
    // Predicated region
    $region26: #{simple_cnn_forward.1} parent=1 // pred_check
      _
    $region27: #{simple_cnn_forward.1} parent=1 // pred_check_branch
      %36 = sbr.rel (0) target = $region29
    $region28: #{simple_cnn_forward.1} parent=1 // pred_region
      _
    $region29: #{simple_cnn_forward.1} parent=1 // pred_fallthru
      _
    // Predicated region
    $region30: #{simple_cnn_forward.1} parent=1 // pred_check
      _
    $region31: #{simple_cnn_forward.1} parent=1 // pred_check_branch
      %38 = sbr.rel (0) target = $region33
    $region32: #{simple_cnn_forward.1} parent=1 // pred_region
      %39 = dma.done [#allocation3], 4096
    $region33: #{simple_cnn_forward.1} parent=1 // pred_fallthru
      _
    %v41 = vld [vmem:[%s0] sm:$0xff]
    %v42 = vld [vmem:[%s0 + $0x8] sm:$0xff]
    %v43 = vld [vmem:[%s0 + $0x10] sm:$0xff]
    %v44 = vld [vmem:[%s0 + $0x18] sm:$0xff]
    %v45 = vld [vmem:[%s0 + $0x20] sm:$0xff]
    %v46 = vld [vmem:[%s0 + $0x28] sm:$0xff]
    %v47 = vld [vmem:[%s0 + $0x30] sm:$0xff]
    %v48 = vld [vmem:[%s0 + $0x38] sm:$0xff]
    %v49 = vld [vmem:[%s0 + $0x40] sm:$0xff]
    %v50 = vld [vmem:[%s0 + $0x48] sm:$0xff]
    %v51 = vld [vmem:[%s0 + $0x50] sm:$0xff]
    %v52 = vld [vmem:[%s0 + $0x58] sm:$0xff]
    %v53 = vld [vmem:[%s0 + $0x60] sm:$0xff]
    %v54 = vld [vmem:[%s0 + $0x68] sm:$0xff]
    %v55 = vld [vmem:[%s0 + $0x70] sm:$0xff]
    %v56 = vld [vmem:[%s0 + $0x78] sm:$0xff]
    %v57 = vld [vmem:[%s0 + $0x80] sm:$0xff]
    %v58 = vld [vmem:[%s0 + $0x88] sm:$0xff]
    %v59 = vld [vmem:[%s0 + $0x90] sm:$0xff]
    %v60 = vld [vmem:[%s0 + $0x98] sm:$0xff]
    %v61 = vld [vmem:[%s0 + $0xa0] sm:$0xff]
    %v62 = vld [vmem:[%s0 + $0xa8] sm:$0xff]
    %v63 = vld [vmem:[%s0 + $0xb0] sm:$0xff]
    %v64 = vld [vmem:[%s0 + $0xb8] sm:$0xff]
    %v65 = vld [vmem:[%s0 + $0xc0] sm:$0xff]
    %v66 = vld [vmem:[%s0 + $0xc8] sm:$0xff]
    %v67 = vld [vmem:[%s0 + $0xd0] sm:$0xff]
    %v68 = vld [vmem:[%s0 + $0xd8] sm:$0xff]
    %v69 = vpack.c.bf16 %v42, %v41
    %v70 = vpack.c.bf16 %v44, %v43
    %v71 = vpack.c.bf16 %v46, %v45
    %v72 = vpack.c.bf16 %v48, %v47
    %v73 = vpack.c.bf16 %v50, %v49
    %v74 = vpack.c.bf16 %v52, %v51
    %v75 = vpack.c.bf16 %v54, %v53
    %v76 = vpack.c.bf16 %v56, %v55
    %v77 = vpack.c.bf16 %v58, %v57
    %v78 = vpack.c.bf16 %v60, %v59
    %v79 = vpack.c.bf16 %v62, %v61
    %v80 = vpack.c.bf16 %v64, %v63
    %v81 = vld [vmem:[%s1] sm:$0xff]
    %v82 = vld [vmem:[%s1 + $0x8] sm:$0xff]
    %v83 = vld [vmem:[%s1 + $0x10] sm:$0xff]
    %v84 = vld [vmem:[%s1 + $0x18] sm:$0x33]
    %s85 = scalar_lea.vmem %s1, 160
    %v86 = vld [vmem:[%s85] sm:$0xff]
    %v87 = vld [vmem:[%s85 + $0x8] sm:$0xff]
    %v88 = vld [vmem:[%s85 + $0x10] sm:$0xff]
    %v89 = vld [vmem:[%s85 + $0x18] sm:$0x33]
    %v90 = vpack.c.bf16 %v43, %v42
    %v91 = vpack.c.bf16 %v45, %v44
    %v92 = vpack.c.bf16 %v47, %v46
    %v93 = vpack.c.bf16 %v49, %v48
    %v94 = vpack.c.bf16 %v51, %v50
    %v95 = vpack.c.bf16 %v53, %v52
    %v96 = vpack.c.bf16 %v55, %v54
    %v97 = vpack.c.bf16 %v57, %v56
    %v98 = vpack.c.bf16 %v59, %v58
    %v99 = vpack.c.bf16 %v61, %v60
    %v100 = vpack.c.bf16 %v63, %v62
    %v101 = vpack.c.bf16 %v65, %v64
    %s102 = scalar_lea.vmem %s1, 32
    %v103 = vld [vmem:[%s102] sm:$0xff]
    %v104 = vld [vmem:[%s102 + $0x8] sm:$0xff]
    %v105 = vld [vmem:[%s102 + $0x10] sm:$0xff]
    %v106 = vld [vmem:[%s102 + $0x18] sm:$0x33]
    %v111 = vunpack.c.l.b16 %v103
    %v112 = vunpack.c.h.b16 %v103
    %v113 = vunpack.c.l.b16 %v104
    %v114 = vunpack.c.h.b16 %v104
    %v115 = vunpack.c.l.b16 %v105
    %v116 = vunpack.c.h.b16 %v105
    %v117 = vunpack.c.l.b16 %v106
    %v118 = vunpack.c.h.b16 %v106
    %v119 = vpack.c.b16 %v113, %v111
    %v120 = vpack.c.b16 %v114, %v112
    %v121 = vpack.c.b16 %v117, %v115
    %v122 = vpack.c.b16 %v118, %v116
    %vm125 = vcmask 228352
    %v127 = vsel %vm125, %v90, 0
    %v130 = vsel %vm125, %v91, 0
    %v133 = vsel %vm125, %v92, 0
    %v136 = vsel %vm125, %v93, 0
    %v139 = vsel %vm125, %v94, 0
    %v142 = vsel %vm125, %v95, 0
    %v145 = vsel %vm125, %v96, 0
    %v148 = vsel %vm125, %v97, 0
    %v151 = vsel %vm125, %v98, 0
    %v154 = vsel %vm125, %v99, 0
    %v157 = vsel %vm125, %v100, 0
    %v160 = vsel %vm125, %v101, 0
    %vm162 = vcmask 1045504
    %v164 = vsel %vm162, %v121, 0
    %v167 = vsel %vm162, %v122, 0
    %169 = vmatprep.subr.bf16.mxu0 %v120
    %170 = vmatpush1.bf16.msra.mxu0 %v119
    %171 = vmatprep.subr.bf16.mxu0 %v167
    %172 = vmatpush1.bf16.msra.mxu0 %v164
    %173 = vmatprep.subr.bf16.mxu0 0
    %174 = vmatpush1.bf16.msra.mxu0 0
    %175 = vmatprep.subr.bf16.mxu0 0
    %176 = vmatpush1.bf16.msra.mxu0 0
    %177 = vmatprep.subr.bf16.mxu0 0
    %178 = vmatpush1.bf16.msra.mxu0 0
    %179 = vmatprep.subr.bf16.mxu0 0
    %180 = vmatpush1.bf16.msra.mxu0 0
    %181 = vmatprep.subr.bf16.mxu0 0
    %182 = vmatpush1.bf16.msra.mxu0 0
    %183 = vmatprep.subr.bf16.mxu0 0
    %184 = vmatpush1.bf16.msra.mxu0 0
    %185 = vmatprep.subr.bf16.mxu0 0
    %186 = vmatpush1.bf16.msra.mxu0 0
    %187 = vmatprep.subr.bf16.mxu0 0
    %188 = vmatpush1.bf16.msra.mxu0 0
    %189 = vmatprep.subr.bf16.mxu0 0
    %190 = vmatpush1.bf16.msra.mxu0 0
    %191 = vmatprep.subr.bf16.mxu0 0
    %192 = vmatpush1.bf16.msra.mxu0 0
    %193 = vmatprep.subr.bf16.mxu0 0
    %194 = vmatpush1.bf16.msra.mxu0 0
    %195 = vmatprep.subr.bf16.mxu0 0
    %196 = vmatpush1.bf16.msra.mxu0 0
    %197 = vmatprep.subr.bf16.mxu0 0
    %198 = vmatpush1.bf16.msra.mxu0 0
    %199 = vmatprep.subr.bf16.mxu0 0
    %200 = vmatpush1.bf16.msra.mxu0 0
    %201 = vmatprep.mubr.bf16.mxu0 0
    %202 = vmatmul.mubr.bf16.gmra.mrb[0].mxu0 %v127
    %v203 = vpop.f32.mrb[0].mxu0
    %v204 = vadd.f32 0.0, %v203
    %v205 = vpop.f32.mrb[0].mxu0
    %v206 = vadd.f32 0.0, %v205
    %v207 = vpop.f32.mrb[0].mxu0
    %v208 = vadd.f32 0.0, %v207
    %v209 = vpop.f32.mrb[0].mxu0
    %v210 = vadd.f32 0.0, %v209
    %211 = vmatprep.mubr.bf16.mxu0 0
    %212 = vmatmul.mubr.bf16.gmra.mrb[0].mxu0 %v130
    %v213 = vpop.f32.mrb[0].mxu0
    %v214 = vadd.f32 0.0, %v213
    %v215 = vpop.f32.mrb[0].mxu0
    %v216 = vadd.f32 0.0, %v215
    %v217 = vpop.f32.mrb[0].mxu0
    %v218 = vadd.f32 0.0, %v217
    %v219 = vpop.f32.mrb[0].mxu0
    %v220 = vadd.f32 0.0, %v219
    %221 = vmatprep.mubr.bf16.mxu0 0
    %222 = vmatmul.mubr.bf16.gmra.mrb[0].mxu0 %v133
    %v223 = vpop.f32.mrb[0].mxu0
    %v224 = vadd.f32 0.0, %v223
    %v225 = vpop.f32.mrb[0].mxu0
    %v226 = vadd.f32 0.0, %v225
    %v227 = vpop.f32.mrb[0].mxu0
    %v228 = vadd.f32 0.0, %v227
    %v229 = vpop.f32.mrb[0].mxu0
    %v230 = vadd.f32 0.0, %v229
    %231 = vmatprep.mubr.bf16.mxu0 0
    %232 = vmatmul.mubr.bf16.gmra.mrb[0].mxu0 %v136
    %v233 = vpop.f32.mrb[0].mxu0
    %v234 = vadd.f32 0.0, %v233
    %v235 = vpop.f32.mrb[0].mxu0
    %v236 = vadd.f32 0.0, %v235
    %v237 = vpop.f32.mrb[0].mxu0
    %v238 = vadd.f32 0.0, %v237
    %v239 = vpop.f32.mrb[0].mxu0
    %v240 = vadd.f32 0.0, %v239
    %241 = vmatprep.mubr.bf16.mxu0 0
    %242 = vmatmul.mubr.bf16.gmra.mrb[0].mxu0 %v139
    %v243 = vpop.f32.mrb[0].mxu0
    %v244 = vadd.f32 0.0, %v243
    %v245 = vpop.f32.mrb[0].mxu0
    %v246 = vadd.f32 0.0, %v245
    %v247 = vpop.f32.mrb[0].mxu0
    %v248 = vadd.f32 0.0, %v247
    %v249 = vpop.f32.mrb[0].mxu0
    %v250 = vadd.f32 0.0, %v249
    %251 = vmatprep.mubr.bf16.mxu0 0
    %252 = vmatmul.mubr.bf16.gmra.mrb[0].mxu0 %v142
    %v253 = vpop.f32.mrb[0].mxu0
    %v254 = vadd.f32 0.0, %v253
    %v255 = vpop.f32.mrb[0].mxu0
    %v256 = vadd.f32 0.0, %v255
    %v257 = vpop.f32.mrb[0].mxu0
    %v258 = vadd.f32 0.0, %v257
    %v259 = vpop.f32.mrb[0].mxu0
    %v260 = vadd.f32 0.0, %v259
    %261 = vmatprep.mubr.bf16.mxu0 0
    %262 = vmatmul.mubr.bf16.gmra.mrb[0].mxu0 %v145
    %v263 = vpop.f32.mrb[0].mxu0
    %v264 = vadd.f32 0.0, %v263
    %v265 = vpop.f32.mrb[0].mxu0
    %v266 = vadd.f32 0.0, %v265
    %v267 = vpop.f32.mrb[0].mxu0
    %v268 = vadd.f32 0.0, %v267
    %v269 = vpop.f32.mrb[0].mxu0
    %v270 = vadd.f32 0.0, %v269
    %271 = vmatprep.mubr.bf16.mxu0 0
    %272 = vmatmul.mubr.bf16.gmra.mrb[0].mxu0 %v148
    %v273 = vpop.f32.mrb[0].mxu0
    %v274 = vadd.f32 0.0, %v273
    %v275 = vpop.f32.mrb[0].mxu0
    %v276 = vadd.f32 0.0, %v275
    %v277 = vpop.f32.mrb[0].mxu0
    %v278 = vadd.f32 0.0, %v277
    %v279 = vpop.f32.mrb[0].mxu0
    %v280 = vadd.f32 0.0, %v279
    %281 = vmatprep.mubr.bf16.mxu0 0
    %282 = vmatmul.mubr.bf16.gmra.mrb[0].mxu0 %v151
    %v283 = vpop.f32.mrb[0].mxu0
    %v284 = vadd.f32 0.0, %v283
    %v285 = vpop.f32.mrb[0].mxu0
    %v286 = vadd.f32 0.0, %v285
    %v287 = vpop.f32.mrb[0].mxu0
    %v288 = vadd.f32 0.0, %v287
    %v289 = vpop.f32.mrb[0].mxu0
    %v290 = vadd.f32 0.0, %v289
    %291 = vmatprep.mubr.bf16.mxu0 0
    %292 = vmatmul.mubr.bf16.gmra.mrb[0].mxu0 %v154
    %v293 = vpop.f32.mrb[0].mxu0
    %v294 = vadd.f32 0.0, %v293
    %v295 = vpop.f32.mrb[0].mxu0
    %v296 = vadd.f32 0.0, %v295
    %v297 = vpop.f32.mrb[0].mxu0
    %v298 = vadd.f32 0.0, %v297
    %v299 = vpop.f32.mrb[0].mxu0
    %v300 = vadd.f32 0.0, %v299
    %301 = vmatprep.mubr.bf16.mxu0 0
    %302 = vmatmul.mubr.bf16.gmra.mrb[0].mxu0 %v157
    %v303 = vpop.f32.mrb[0].mxu0
    %v304 = vadd.f32 0.0, %v303
    %v305 = vpop.f32.mrb[0].mxu0
    %v306 = vadd.f32 0.0, %v305
    %v307 = vpop.f32.mrb[0].mxu0
    %v308 = vadd.f32 0.0, %v307
    %v309 = vpop.f32.mrb[0].mxu0
    %v310 = vadd.f32 0.0, %v309
    %311 = vmatprep.mubr.bf16.mxu0 0
    %312 = vmatmul.mubr.bf16.gmra.mrb[0].mxu0 %v160
    %v313 = vpop.f32.mrb[0].mxu0
    %v314 = vadd.f32 0.0, %v313
    %v315 = vpop.f32.mrb[0].mxu0
    %v316 = vadd.f32 0.0, %v315
    %v317 = vpop.f32.mrb[0].mxu0
    %v318 = vadd.f32 0.0, %v317
    %v319 = vpop.f32.mrb[0].mxu0
    %v320 = vadd.f32 0.0, %v319
    %321 = vdwg.mxu0
    %v326 = vunpack.c.l.b16 %v81
    %v327 = vunpack.c.h.b16 %v81
    %v328 = vunpack.c.l.b16 %v82
    %v329 = vunpack.c.h.b16 %v82
    %v330 = vunpack.c.l.b16 %v83
    %v331 = vunpack.c.h.b16 %v83
    %v332 = vunpack.c.l.b16 %v84
    %v333 = vunpack.c.h.b16 %v84
    %v334 = vpack.c.b16 %v328, %v326
    %v335 = vpack.c.b16 %v329, %v327
    %v336 = vpack.c.b16 %v332, %v330
    %v337 = vpack.c.b16 %v333, %v331
    %v341 = vsel %vm125, %v69, 0
    %v344 = vsel %vm125, %v70, 0
    %v347 = vsel %vm125, %v71, 0
    %v350 = vsel %vm125, %v72, 0
    %v353 = vsel %vm125, %v73, 0
    %v356 = vsel %vm125, %v74, 0
    %v359 = vsel %vm125, %v75, 0
    %v362 = vsel %vm125, %v76, 0
    %v365 = vsel %vm125, %v77, 0
    %v368 = vsel %vm125, %v78, 0
    %v371 = vsel %vm125, %v79, 0
    %v374 = vsel %vm125, %v80, 0
    %v377 = vsel %vm162, %v336, 0
    %v380 = vsel %vm162, %v337, 0
    %382 = vmatprep.subr.bf16.mxu0 %v335
    %383 = vmatpush1.bf16.msra.mxu0 %v334
    %384 = vmatprep.subr.bf16.mxu0 %v380
    %385 = vmatpush1.bf16.msra.mxu0 %v377
    %386 = vmatprep.subr.bf16.mxu0 0
    %387 = vmatpush1.bf16.msra.mxu0 0
    %388 = vmatprep.subr.bf16.mxu0 0
    %389 = vmatpush1.bf16.msra.mxu0 0
    %390 = vmatprep.subr.bf16.mxu0 0
    %391 = vmatpush1.bf16.msra.mxu0 0
    %392 = vmatprep.subr.bf16.mxu0 0
    %393 = vmatpush1.bf16.msra.mxu0 0
    %394 = vmatprep.subr.bf16.mxu0 0
    %395 = vmatpush1.bf16.msra.mxu0 0
    %396 = vmatprep.subr.bf16.mxu0 0
    %397 = vmatpush1.bf16.msra.mxu0 0
    %398 = vmatprep.subr.bf16.mxu0 0
    %399 = vmatpush1.bf16.msra.mxu0 0
    %400 = vmatprep.subr.bf16.mxu0 0
    %401 = vmatpush1.bf16.msra.mxu0 0
    %402 = vmatprep.subr.bf16.mxu0 0
    %403 = vmatpush1.bf16.msra.mxu0 0
    %404 = vmatprep.subr.bf16.mxu0 0
    %405 = vmatpush1.bf16.msra.mxu0 0
    %406 = vmatprep.subr.bf16.mxu0 0
    %407 = vmatpush1.bf16.msra.mxu0 0
    %408 = vmatprep.subr.bf16.mxu0 0
    %409 = vmatpush1.bf16.msra.mxu0 0
    %410 = vmatprep.subr.bf16.mxu0 0
    %411 = vmatpush1.bf16.msra.mxu0 0
    %412 = vmatprep.subr.bf16.mxu0 0
    %413 = vmatpush1.bf16.msra.mxu0 0
    %414 = vmatprep.mubr.bf16.mxu0 0
    %415 = vmatmul.mubr.bf16.gmra.mrb[0].mxu0 %v341
    %v416 = vpop.f32.mrb[0].mxu0
    %v417 = vadd.f32 %v204, %v416
    %v418 = vpop.f32.mrb[0].mxu0
    %v419 = vadd.f32 %v206, %v418
    %v420 = vpop.f32.mrb[0].mxu0
    %v421 = vadd.f32 %v208, %v420
    %v422 = vpop.f32.mrb[0].mxu0
    %v423 = vadd.f32 %v210, %v422
    %424 = vmatprep.mubr.bf16.mxu0 0
    %425 = vmatmul.mubr.bf16.gmra.mrb[0].mxu0 %v344
    %v426 = vpop.f32.mrb[0].mxu0
    %v427 = vadd.f32 %v214, %v426
    %v428 = vpop.f32.mrb[0].mxu0
    %v429 = vadd.f32 %v216, %v428
    %v430 = vpop.f32.mrb[0].mxu0
    %v431 = vadd.f32 %v218, %v430
    %v432 = vpop.f32.mrb[0].mxu0
    %v433 = vadd.f32 %v220, %v432
    %434 = vmatprep.mubr.bf16.mxu0 0
    %435 = vmatmul.mubr.bf16.gmra.mrb[0].mxu0 %v347
    %v436 = vpop.f32.mrb[0].mxu0
    %v437 = vadd.f32 %v224, %v436
    %v438 = vpop.f32.mrb[0].mxu0
    %v439 = vadd.f32 %v226, %v438
    %v440 = vpop.f32.mrb[0].mxu0
    %v441 = vadd.f32 %v228, %v440
    %v442 = vpop.f32.mrb[0].mxu0
    %v443 = vadd.f32 %v230, %v442
    %444 = vmatprep.mubr.bf16.mxu0 0
    %445 = vmatmul.mubr.bf16.gmra.mrb[0].mxu0 %v350
    %v446 = vpop.f32.mrb[0].mxu0
    %v447 = vadd.f32 %v234, %v446
    %v448 = vpop.f32.mrb[0].mxu0
    %v449 = vadd.f32 %v236, %v448
    %v450 = vpop.f32.mrb[0].mxu0
    %v451 = vadd.f32 %v238, %v450
    %v452 = vpop.f32.mrb[0].mxu0
    %v453 = vadd.f32 %v240, %v452
    %454 = vmatprep.mubr.bf16.mxu0 0
    %455 = vmatmul.mubr.bf16.gmra.mrb[0].mxu0 %v353
    %v456 = vpop.f32.mrb[0].mxu0
    %v457 = vadd.f32 %v244, %v456
    %v458 = vpop.f32.mrb[0].mxu0
    %v459 = vadd.f32 %v246, %v458
    %v460 = vpop.f32.mrb[0].mxu0
    %v461 = vadd.f32 %v248, %v460
    %v462 = vpop.f32.mrb[0].mxu0
    %v463 = vadd.f32 %v250, %v462
    %464 = vmatprep.mubr.bf16.mxu0 0
    %465 = vmatmul.mubr.bf16.gmra.mrb[0].mxu0 %v356
    %v466 = vpop.f32.mrb[0].mxu0
    %v467 = vadd.f32 %v254, %v466
    %v468 = vpop.f32.mrb[0].mxu0
    %v469 = vadd.f32 %v256, %v468
    %v470 = vpop.f32.mrb[0].mxu0
    %v471 = vadd.f32 %v258, %v470
    %v472 = vpop.f32.mrb[0].mxu0
    %v473 = vadd.f32 %v260, %v472
    %474 = vmatprep.mubr.bf16.mxu0 0
    %475 = vmatmul.mubr.bf16.gmra.mrb[0].mxu0 %v359
    %v476 = vpop.f32.mrb[0].mxu0
    %v477 = vadd.f32 %v264, %v476
    %v478 = vpop.f32.mrb[0].mxu0
    %v479 = vadd.f32 %v266, %v478
    %v480 = vpop.f32.mrb[0].mxu0
    %v481 = vadd.f32 %v268, %v480
    %v482 = vpop.f32.mrb[0].mxu0
    %v483 = vadd.f32 %v270, %v482
    %484 = vmatprep.mubr.bf16.mxu0 0
    %485 = vmatmul.mubr.bf16.gmra.mrb[0].mxu0 %v362
    %v486 = vpop.f32.mrb[0].mxu0
    %v487 = vadd.f32 %v274, %v486
    %v488 = vpop.f32.mrb[0].mxu0
    %v489 = vadd.f32 %v276, %v488
    %v490 = vpop.f32.mrb[0].mxu0
    %v491 = vadd.f32 %v278, %v490
    %v492 = vpop.f32.mrb[0].mxu0
    %v493 = vadd.f32 %v280, %v492
    %494 = vmatprep.mubr.bf16.mxu0 0
    %495 = vmatmul.mubr.bf16.gmra.mrb[0].mxu0 %v365
    %v496 = vpop.f32.mrb[0].mxu0
    %v497 = vadd.f32 %v284, %v496
    %v498 = vpop.f32.mrb[0].mxu0
    %v499 = vadd.f32 %v286, %v498
    %v500 = vpop.f32.mrb[0].mxu0
    %v501 = vadd.f32 %v288, %v500
    %v502 = vpop.f32.mrb[0].mxu0
    %v503 = vadd.f32 %v290, %v502
    %504 = vmatprep.mubr.bf16.mxu0 0
    %505 = vmatmul.mubr.bf16.gmra.mrb[0].mxu0 %v368
    %v506 = vpop.f32.mrb[0].mxu0
    %v507 = vadd.f32 %v294, %v506
    %v508 = vpop.f32.mrb[0].mxu0
    %v509 = vadd.f32 %v296, %v508
    %v510 = vpop.f32.mrb[0].mxu0
    %v511 = vadd.f32 %v298, %v510
    %v512 = vpop.f32.mrb[0].mxu0
    %v513 = vadd.f32 %v300, %v512
    %514 = vmatprep.mubr.bf16.mxu0 0
    %515 = vmatmul.mubr.bf16.gmra.mrb[0].mxu0 %v371
    %v516 = vpop.f32.mrb[0].mxu0
    %v517 = vadd.f32 %v304, %v516
    %v518 = vpop.f32.mrb[0].mxu0
    %v519 = vadd.f32 %v306, %v518
    %v520 = vpop.f32.mrb[0].mxu0
    %v521 = vadd.f32 %v308, %v520
    %v522 = vpop.f32.mrb[0].mxu0
    %v523 = vadd.f32 %v310, %v522
    %524 = vmatprep.mubr.bf16.mxu0 0
    %525 = vmatmul.mubr.bf16.gmra.mrb[0].mxu0 %v374
    %v526 = vpop.f32.mrb[0].mxu0
    %v527 = vadd.f32 %v314, %v526
    %v528 = vpop.f32.mrb[0].mxu0
    %v529 = vadd.f32 %v316, %v528
    %v530 = vpop.f32.mrb[0].mxu0
    %v531 = vadd.f32 %v318, %v530
    %v532 = vpop.f32.mrb[0].mxu0
    %v533 = vadd.f32 %v320, %v532
    %534 = vdwg.mxu0
    %s535 = scalar_lea.vmem %s1, 192
    %v536 = vld [vmem:[%s535] sm:$0xff]
    %v537 = vld [vmem:[%s535 + $0x8] sm:$0xff]
    %v538 = vld [vmem:[%s535 + $0x10] sm:$0xff]
    %v539 = vld [vmem:[%s535 + $0x18] sm:$0x33]
    %v544 = vunpack.c.l.b16 %v536
    %v545 = vunpack.c.h.b16 %v536
    %v546 = vunpack.c.l.b16 %v537
    %v547 = vunpack.c.h.b16 %v537
    %v548 = vunpack.c.l.b16 %v538
    %v549 = vunpack.c.h.b16 %v538
    %v550 = vunpack.c.l.b16 %v539
    %v551 = vunpack.c.h.b16 %v539
    %v552 = vpack.c.b16 %v546, %v544
    %v553 = vpack.c.b16 %v547, %v545
    %v554 = vpack.c.b16 %v550, %v548
    %v555 = vpack.c.b16 %v551, %v549
    %v559 = vsel %vm162, %v554, 0
    %v562 = vsel %vm162, %v555, 0
    %564 = vmatprep.subr.bf16.mxu0 %v553
    %565 = vmatpush1.bf16.msra.mxu0 %v552
    %566 = vmatprep.subr.bf16.mxu0 %v562
    %567 = vmatpush1.bf16.msra.mxu0 %v559
    %568 = vmatprep.subr.bf16.mxu0 0
    %569 = vmatpush1.bf16.msra.mxu0 0
    %570 = vmatprep.subr.bf16.mxu0 0
    %571 = vmatpush1.bf16.msra.mxu0 0
    %572 = vmatprep.subr.bf16.mxu0 0
    %573 = vmatpush1.bf16.msra.mxu0 0
    %574 = vmatprep.subr.bf16.mxu0 0
    %575 = vmatpush1.bf16.msra.mxu0 0
    %576 = vmatprep.subr.bf16.mxu0 0
    %577 = vmatpush1.bf16.msra.mxu0 0
    %578 = vmatprep.subr.bf16.mxu0 0
    %579 = vmatpush1.bf16.msra.mxu0 0
    %580 = vmatprep.subr.bf16.mxu0 0
    %581 = vmatpush1.bf16.msra.mxu0 0
    %582 = vmatprep.subr.bf16.mxu0 0
    %583 = vmatpush1.bf16.msra.mxu0 0
    %584 = vmatprep.subr.bf16.mxu0 0
    %585 = vmatpush1.bf16.msra.mxu0 0
    %586 = vmatprep.subr.bf16.mxu0 0
    %587 = vmatpush1.bf16.msra.mxu0 0
    %588 = vmatprep.subr.bf16.mxu0 0
    %589 = vmatpush1.bf16.msra.mxu0 0
    %590 = vmatprep.subr.bf16.mxu0 0
    %591 = vmatpush1.bf16.msra.mxu0 0
    %592 = vmatprep.subr.bf16.mxu0 0
    %593 = vmatpush1.bf16.msra.mxu0 0
    %594 = vmatprep.subr.bf16.mxu0 0
    %595 = vmatpush1.bf16.msra.mxu0 0
    %596 = vmatprep.mubr.bf16.mxu0 0
    %597 = vmatmul.mubr.bf16.gmra.mrb[0].mxu0 %v127
    %v598 = vpop.f32.mrb[0].mxu0
    %v599 = vadd.f32 0.0, %v598
    %v600 = vpop.f32.mrb[0].mxu0
    %v601 = vadd.f32 0.0, %v600
    %v602 = vpop.f32.mrb[0].mxu0
    %v603 = vadd.f32 0.0, %v602
    %v604 = vpop.f32.mrb[0].mxu0
    %v605 = vadd.f32 0.0, %v604
    %606 = vmatprep.mubr.bf16.mxu0 0
    %607 = vmatmul.mubr.bf16.gmra.mrb[0].mxu0 %v130
    %v608 = vpop.f32.mrb[0].mxu0
    %v609 = vadd.f32 0.0, %v608
    %v610 = vpop.f32.mrb[0].mxu0
    %v611 = vadd.f32 0.0, %v610
    %v612 = vpop.f32.mrb[0].mxu0
    %v613 = vadd.f32 0.0, %v612
    %v614 = vpop.f32.mrb[0].mxu0
    %v615 = vadd.f32 0.0, %v614
    %616 = vmatprep.mubr.bf16.mxu0 0
    %617 = vmatmul.mubr.bf16.gmra.mrb[0].mxu0 %v133
    %v618 = vpop.f32.mrb[0].mxu0
    %v619 = vadd.f32 0.0, %v618
    %v620 = vpop.f32.mrb[0].mxu0
    %v621 = vadd.f32 0.0, %v620
    %v622 = vpop.f32.mrb[0].mxu0
    %v623 = vadd.f32 0.0, %v622
    %v624 = vpop.f32.mrb[0].mxu0
    %v625 = vadd.f32 0.0, %v624
    %626 = vmatprep.mubr.bf16.mxu0 0
    %627 = vmatmul.mubr.bf16.gmra.mrb[0].mxu0 %v136
    %v628 = vpop.f32.mrb[0].mxu0
    %v629 = vadd.f32 0.0, %v628
    %v630 = vpop.f32.mrb[0].mxu0
    %v631 = vadd.f32 0.0, %v630
    %v632 = vpop.f32.mrb[0].mxu0
    %v633 = vadd.f32 0.0, %v632
    %v634 = vpop.f32.mrb[0].mxu0
    %v635 = vadd.f32 0.0, %v634
    %636 = vmatprep.mubr.bf16.mxu0 0
    %637 = vmatmul.mubr.bf16.gmra.mrb[0].mxu0 %v139
    %v638 = vpop.f32.mrb[0].mxu0
    %v639 = vadd.f32 0.0, %v638
    %v640 = vpop.f32.mrb[0].mxu0
    %v641 = vadd.f32 0.0, %v640
    %v642 = vpop.f32.mrb[0].mxu0
    %v643 = vadd.f32 0.0, %v642
    %v644 = vpop.f32.mrb[0].mxu0
    %v645 = vadd.f32 0.0, %v644
    %646 = vmatprep.mubr.bf16.mxu0 0
    %647 = vmatmul.mubr.bf16.gmra.mrb[0].mxu0 %v142
    %v648 = vpop.f32.mrb[0].mxu0
    %v649 = vadd.f32 0.0, %v648
    %v650 = vpop.f32.mrb[0].mxu0
    %v651 = vadd.f32 0.0, %v650
    %v652 = vpop.f32.mrb[0].mxu0
    %v653 = vadd.f32 0.0, %v652
    %v654 = vpop.f32.mrb[0].mxu0
    %v655 = vadd.f32 0.0, %v654
    %656 = vmatprep.mubr.bf16.mxu0 0
    %657 = vmatmul.mubr.bf16.gmra.mrb[0].mxu0 %v145
    %v658 = vpop.f32.mrb[0].mxu0
    %v659 = vadd.f32 0.0, %v658
    %v660 = vpop.f32.mrb[0].mxu0
    %v661 = vadd.f32 0.0, %v660
    %v662 = vpop.f32.mrb[0].mxu0
    %v663 = vadd.f32 0.0, %v662
    %v664 = vpop.f32.mrb[0].mxu0
    %v665 = vadd.f32 0.0, %v664
    %666 = vmatprep.mubr.bf16.mxu0 0
    %667 = vmatmul.mubr.bf16.gmra.mrb[0].mxu0 %v148
    %v668 = vpop.f32.mrb[0].mxu0
    %v669 = vadd.f32 0.0, %v668
    %v670 = vpop.f32.mrb[0].mxu0
    %v671 = vadd.f32 0.0, %v670
    %v672 = vpop.f32.mrb[0].mxu0
    %v673 = vadd.f32 0.0, %v672
    %v674 = vpop.f32.mrb[0].mxu0
    %v675 = vadd.f32 0.0, %v674
    %676 = vmatprep.mubr.bf16.mxu0 0
    %677 = vmatmul.mubr.bf16.gmra.mrb[0].mxu0 %v151
    %v678 = vpop.f32.mrb[0].mxu0
    %v679 = vadd.f32 0.0, %v678
    %v680 = vpop.f32.mrb[0].mxu0
    %v681 = vadd.f32 0.0, %v680
    %v682 = vpop.f32.mrb[0].mxu0
    %v683 = vadd.f32 0.0, %v682
    %v684 = vpop.f32.mrb[0].mxu0
    %v685 = vadd.f32 0.0, %v684
    %686 = vmatprep.mubr.bf16.mxu0 0
    %687 = vmatmul.mubr.bf16.gmra.mrb[0].mxu0 %v154
    %v688 = vpop.f32.mrb[0].mxu0
    %v689 = vadd.f32 0.0, %v688
    %v690 = vpop.f32.mrb[0].mxu0
    %v691 = vadd.f32 0.0, %v690
    %v692 = vpop.f32.mrb[0].mxu0
    %v693 = vadd.f32 0.0, %v692
    %v694 = vpop.f32.mrb[0].mxu0
    %v695 = vadd.f32 0.0, %v694
    %696 = vmatprep.mubr.bf16.mxu0 0
    %697 = vmatmul.mubr.bf16.gmra.mrb[0].mxu0 %v157
    %v698 = vpop.f32.mrb[0].mxu0
    %v699 = vadd.f32 0.0, %v698
    %v700 = vpop.f32.mrb[0].mxu0
    %v701 = vadd.f32 0.0, %v700
    %v702 = vpop.f32.mrb[0].mxu0
    %v703 = vadd.f32 0.0, %v702
    %v704 = vpop.f32.mrb[0].mxu0
    %v705 = vadd.f32 0.0, %v704
    %706 = vmatprep.mubr.bf16.mxu0 0
    %707 = vmatmul.mubr.bf16.gmra.mrb[0].mxu0 %v160
    %v708 = vpop.f32.mrb[0].mxu0
    %v709 = vadd.f32 0.0, %v708
    %v710 = vpop.f32.mrb[0].mxu0
    %v711 = vadd.f32 0.0, %v710
    %v712 = vpop.f32.mrb[0].mxu0
    %v713 = vadd.f32 0.0, %v712
    %v714 = vpop.f32.mrb[0].mxu0
    %v715 = vadd.f32 0.0, %v714
    %716 = vdwg.mxu0
    %v721 = vunpack.c.l.b16 %v86
    %v722 = vunpack.c.h.b16 %v86
    %v723 = vunpack.c.l.b16 %v87
    %v724 = vunpack.c.h.b16 %v87
    %v725 = vunpack.c.l.b16 %v88
    %v726 = vunpack.c.h.b16 %v88
    %v727 = vunpack.c.l.b16 %v89
    %v728 = vunpack.c.h.b16 %v89
    %v729 = vpack.c.b16 %v723, %v721
    %v730 = vpack.c.b16 %v724, %v722
    %v731 = vpack.c.b16 %v727, %v725
    %v732 = vpack.c.b16 %v728, %v726
    %v736 = vsel %vm162, %v731, 0
    %v739 = vsel %vm162, %v732, 0
    %741 = vmatprep.subr.bf16.mxu0 %v730
    %742 = vmatpush1.bf16.msra.mxu0 %v729
    %743 = vmatprep.subr.bf16.mxu0 %v739
    %744 = vmatpush1.bf16.msra.mxu0 %v736
    %745 = vmatprep.subr.bf16.mxu0 0
    %746 = vmatpush1.bf16.msra.mxu0 0
    %747 = vmatprep.subr.bf16.mxu0 0
    %748 = vmatpush1.bf16.msra.mxu0 0
    %749 = vmatprep.subr.bf16.mxu0 0
    %750 = vmatpush1.bf16.msra.mxu0 0
    %751 = vmatprep.subr.bf16.mxu0 0
    %752 = vmatpush1.bf16.msra.mxu0 0
    %753 = vmatprep.subr.bf16.mxu0 0
    %754 = vmatpush1.bf16.msra.mxu0 0
    %755 = vmatprep.subr.bf16.mxu0 0
    %756 = vmatpush1.bf16.msra.mxu0 0
    %757 = vmatprep.subr.bf16.mxu0 0
    %758 = vmatpush1.bf16.msra.mxu0 0
    %759 = vmatprep.subr.bf16.mxu0 0
    %760 = vmatpush1.bf16.msra.mxu0 0
    %761 = vmatprep.subr.bf16.mxu0 0
    %762 = vmatpush1.bf16.msra.mxu0 0
    %763 = vmatprep.subr.bf16.mxu0 0
    %764 = vmatpush1.bf16.msra.mxu0 0
    %765 = vmatprep.subr.bf16.mxu0 0
    %766 = vmatpush1.bf16.msra.mxu0 0
    %767 = vmatprep.subr.bf16.mxu0 0
    %768 = vmatpush1.bf16.msra.mxu0 0
    %769 = vmatprep.subr.bf16.mxu0 0
    %770 = vmatpush1.bf16.msra.mxu0 0
    %771 = vmatprep.subr.bf16.mxu0 0
    %772 = vmatpush1.bf16.msra.mxu0 0
    %773 = vmatprep.mubr.bf16.mxu0 0
    %774 = vmatmul.mubr.bf16.gmra.mrb[0].mxu0 %v341
    %v775 = vpop.f32.mrb[0].mxu0
    %v776 = vadd.f32 %v599, %v775
    %v777 = vpop.f32.mrb[0].mxu0
    %v778 = vadd.f32 %v601, %v777
    %v779 = vpop.f32.mrb[0].mxu0
    %v780 = vadd.f32 %v603, %v779
    %v781 = vpop.f32.mrb[0].mxu0
    %v782 = vadd.f32 %v605, %v781
    %783 = vmatprep.mubr.bf16.mxu0 0
    %784 = vmatmul.mubr.bf16.gmra.mrb[0].mxu0 %v344
    %v785 = vpop.f32.mrb[0].mxu0
    %v786 = vadd.f32 %v609, %v785
    %v787 = vpop.f32.mrb[0].mxu0
    %v788 = vadd.f32 %v611, %v787
    %v789 = vpop.f32.mrb[0].mxu0
    %v790 = vadd.f32 %v613, %v789
    %v791 = vpop.f32.mrb[0].mxu0
    %v792 = vadd.f32 %v615, %v791
    %793 = vmatprep.mubr.bf16.mxu0 0
    %794 = vmatmul.mubr.bf16.gmra.mrb[0].mxu0 %v347
    %v795 = vpop.f32.mrb[0].mxu0
    %v796 = vadd.f32 %v619, %v795
    %v797 = vpop.f32.mrb[0].mxu0
    %v798 = vadd.f32 %v621, %v797
    %v799 = vpop.f32.mrb[0].mxu0
    %v800 = vadd.f32 %v623, %v799
    %v801 = vpop.f32.mrb[0].mxu0
    %v802 = vadd.f32 %v625, %v801
    %803 = vmatprep.mubr.bf16.mxu0 0
    %804 = vmatmul.mubr.bf16.gmra.mrb[0].mxu0 %v350
    %v805 = vpop.f32.mrb[0].mxu0
    %v806 = vadd.f32 %v629, %v805
    %v807 = vpop.f32.mrb[0].mxu0
    %v808 = vadd.f32 %v631, %v807
    %v809 = vpop.f32.mrb[0].mxu0
    %v810 = vadd.f32 %v633, %v809
    %v811 = vpop.f32.mrb[0].mxu0
    %v812 = vadd.f32 %v635, %v811
    %813 = vmatprep.mubr.bf16.mxu0 0
    %814 = vmatmul.mubr.bf16.gmra.mrb[0].mxu0 %v353
    %v815 = vpop.f32.mrb[0].mxu0
    %v816 = vadd.f32 %v639, %v815
    %v817 = vpop.f32.mrb[0].mxu0
    %v818 = vadd.f32 %v641, %v817
    %v819 = vpop.f32.mrb[0].mxu0
    %v820 = vadd.f32 %v643, %v819
    %v821 = vpop.f32.mrb[0].mxu0
    %v822 = vadd.f32 %v645, %v821
    %823 = vmatprep.mubr.bf16.mxu0 0
    %824 = vmatmul.mubr.bf16.gmra.mrb[0].mxu0 %v356
    %v825 = vpop.f32.mrb[0].mxu0
    %v826 = vadd.f32 %v649, %v825
    %v827 = vpop.f32.mrb[0].mxu0
    %v828 = vadd.f32 %v651, %v827
    %v829 = vpop.f32.mrb[0].mxu0
    %v830 = vadd.f32 %v653, %v829
    %v831 = vpop.f32.mrb[0].mxu0
    %v832 = vadd.f32 %v655, %v831
    %833 = vmatprep.mubr.bf16.mxu0 0
    %834 = vmatmul.mubr.bf16.gmra.mrb[0].mxu0 %v359
    %v835 = vpop.f32.mrb[0].mxu0
    %v836 = vadd.f32 %v659, %v835
    %v837 = vpop.f32.mrb[0].mxu0
    %v838 = vadd.f32 %v661, %v837
    %v839 = vpop.f32.mrb[0].mxu0
    %v840 = vadd.f32 %v663, %v839
    %v841 = vpop.f32.mrb[0].mxu0
    %v842 = vadd.f32 %v665, %v841
    %843 = vmatprep.mubr.bf16.mxu0 0
    %844 = vmatmul.mubr.bf16.gmra.mrb[0].mxu0 %v362
    %v845 = vpop.f32.mrb[0].mxu0
    %v846 = vadd.f32 %v669, %v845
    %v847 = vpop.f32.mrb[0].mxu0
    %v848 = vadd.f32 %v671, %v847
    %v849 = vpop.f32.mrb[0].mxu0
    %v850 = vadd.f32 %v673, %v849
    %v851 = vpop.f32.mrb[0].mxu0
    %v852 = vadd.f32 %v675, %v851
    %853 = vmatprep.mubr.bf16.mxu0 0
    %854 = vmatmul.mubr.bf16.gmra.mrb[0].mxu0 %v365
    %v855 = vpop.f32.mrb[0].mxu0
    %v856 = vadd.f32 %v679, %v855
    %v857 = vpop.f32.mrb[0].mxu0
    %v858 = vadd.f32 %v681, %v857
    %v859 = vpop.f32.mrb[0].mxu0
    %v860 = vadd.f32 %v683, %v859
    %v861 = vpop.f32.mrb[0].mxu0
    %v862 = vadd.f32 %v685, %v861
    %863 = vmatprep.mubr.bf16.mxu0 0
    %864 = vmatmul.mubr.bf16.gmra.mrb[0].mxu0 %v368
    %v865 = vpop.f32.mrb[0].mxu0
    %v866 = vadd.f32 %v689, %v865
    %v867 = vpop.f32.mrb[0].mxu0
    %v868 = vadd.f32 %v691, %v867
    %v869 = vpop.f32.mrb[0].mxu0
    %v870 = vadd.f32 %v693, %v869
    %v871 = vpop.f32.mrb[0].mxu0
    %v872 = vadd.f32 %v695, %v871
    %873 = vmatprep.mubr.bf16.mxu0 0
    %874 = vmatmul.mubr.bf16.gmra.mrb[0].mxu0 %v371
    %v875 = vpop.f32.mrb[0].mxu0
    %v876 = vadd.f32 %v699, %v875
    %v877 = vpop.f32.mrb[0].mxu0
    %v878 = vadd.f32 %v701, %v877
    %v879 = vpop.f32.mrb[0].mxu0
    %v880 = vadd.f32 %v703, %v879
    %v881 = vpop.f32.mrb[0].mxu0
    %v882 = vadd.f32 %v705, %v881
    %883 = vmatprep.mubr.bf16.mxu0 0
    %884 = vmatmul.mubr.bf16.gmra.mrb[0].mxu0 %v374
    %v885 = vpop.f32.mrb[0].mxu0
    %v886 = vadd.f32 %v709, %v885
    %v887 = vpop.f32.mrb[0].mxu0
    %v888 = vadd.f32 %v711, %v887
    %v889 = vpop.f32.mrb[0].mxu0
    %v890 = vadd.f32 %v713, %v889
    %v891 = vpop.f32.mrb[0].mxu0
    %v892 = vadd.f32 %v715, %v891
    %893 = vdwg.mxu0
    %v894 = vpack.c.bf16 %v66, %v65
    %s895 = scalar_lea.vmem %s1, 64
    %v896 = vld [vmem:[%s895] sm:$0xff]
    %v897 = vld [vmem:[%s895 + $0x8] sm:$0xff]
    %v898 = vld [vmem:[%s895 + $0x10] sm:$0xff]
    %v899 = vld [vmem:[%s895 + $0x18] sm:$0x33]
    %v904 = vunpack.c.l.b16 %v896
    %v905 = vunpack.c.h.b16 %v896
    %v906 = vunpack.c.l.b16 %v897
    %v907 = vunpack.c.h.b16 %v897
    %v908 = vunpack.c.l.b16 %v898
    %v909 = vunpack.c.h.b16 %v898
    %v910 = vunpack.c.l.b16 %v899
    %v911 = vunpack.c.h.b16 %v899
    %v912 = vpack.c.b16 %v906, %v904
    %v913 = vpack.c.b16 %v907, %v905
    %v914 = vpack.c.b16 %v910, %v908
    %v915 = vpack.c.b16 %v911, %v909
    %v919 = vsel %vm125, %v894, 0
    %v922 = vsel %vm162, %v914, 0
    %v925 = vsel %vm162, %v915, 0
    %927 = vmatprep.subr.bf16.mxu0 %v913
    %928 = vmatpush1.bf16.msra.mxu0 %v912
    %929 = vmatprep.subr.bf16.mxu0 %v925
    %930 = vmatpush1.bf16.msra.mxu0 %v922
    %931 = vmatprep.subr.bf16.mxu0 0
    %932 = vmatpush1.bf16.msra.mxu0 0
    %933 = vmatprep.subr.bf16.mxu0 0
    %934 = vmatpush1.bf16.msra.mxu0 0
    %935 = vmatprep.subr.bf16.mxu0 0
    %936 = vmatpush1.bf16.msra.mxu0 0
    %937 = vmatprep.subr.bf16.mxu0 0
    %938 = vmatpush1.bf16.msra.mxu0 0
    %939 = vmatprep.subr.bf16.mxu0 0
    %940 = vmatpush1.bf16.msra.mxu0 0
    %941 = vmatprep.subr.bf16.mxu0 0
    %942 = vmatpush1.bf16.msra.mxu0 0
    %943 = vmatprep.subr.bf16.mxu0 0
    %944 = vmatpush1.bf16.msra.mxu0 0
    %945 = vmatprep.subr.bf16.mxu0 0
    %946 = vmatpush1.bf16.msra.mxu0 0
    %947 = vmatprep.subr.bf16.mxu0 0
    %948 = vmatpush1.bf16.msra.mxu0 0
    %949 = vmatprep.subr.bf16.mxu0 0
    %950 = vmatpush1.bf16.msra.mxu0 0
    %951 = vmatprep.subr.bf16.mxu0 0
    %952 = vmatpush1.bf16.msra.mxu0 0
    %953 = vmatprep.subr.bf16.mxu0 0
    %954 = vmatpush1.bf16.msra.mxu0 0
    %955 = vmatprep.subr.bf16.mxu0 0
    %956 = vmatpush1.bf16.msra.mxu0 0
    %957 = vmatprep.subr.bf16.mxu0 0
    %958 = vmatpush1.bf16.msra.mxu0 0
    %959 = vmatprep.mubr.bf16.mxu0 0
    %960 = vmatmul.mubr.bf16.gmra.mrb[0].mxu0 %v344
    %v961 = vpop.f32.mrb[0].mxu0
    %v962 = vadd.f32 0.0, %v961
    %v963 = vpop.f32.mrb[0].mxu0
    %v964 = vadd.f32 0.0, %v963
    %v965 = vpop.f32.mrb[0].mxu0
    %v966 = vadd.f32 0.0, %v965
    %v967 = vpop.f32.mrb[0].mxu0
    %v968 = vadd.f32 0.0, %v967
    %969 = vmatprep.mubr.bf16.mxu0 0
    %970 = vmatmul.mubr.bf16.gmra.mrb[0].mxu0 %v347
    %v971 = vpop.f32.mrb[0].mxu0
    %v972 = vadd.f32 0.0, %v971
    %v973 = vpop.f32.mrb[0].mxu0
    %v974 = vadd.f32 0.0, %v973
    %v975 = vpop.f32.mrb[0].mxu0
    %v976 = vadd.f32 0.0, %v975
    %v977 = vpop.f32.mrb[0].mxu0
    %v978 = vadd.f32 0.0, %v977
    %979 = vmatprep.mubr.bf16.mxu0 0
    %980 = vmatmul.mubr.bf16.gmra.mrb[0].mxu0 %v350
    %v981 = vpop.f32.mrb[0].mxu0
    %v982 = vadd.f32 0.0, %v981
    %v983 = vpop.f32.mrb[0].mxu0
    %v984 = vadd.f32 0.0, %v983
    %v985 = vpop.f32.mrb[0].mxu0
    %v986 = vadd.f32 0.0, %v985
    %v987 = vpop.f32.mrb[0].mxu0
    %v988 = vadd.f32 0.0, %v987
    %989 = vmatprep.mubr.bf16.mxu0 0
    %990 = vmatmul.mubr.bf16.gmra.mrb[0].mxu0 %v353
    %v991 = vpop.f32.mrb[0].mxu0
    %v992 = vadd.f32 0.0, %v991
    %v993 = vpop.f32.mrb[0].mxu0
    %v994 = vadd.f32 0.0, %v993
    %v995 = vpop.f32.mrb[0].mxu0
    %v996 = vadd.f32 0.0, %v995
    %v997 = vpop.f32.mrb[0].mxu0
    %v998 = vadd.f32 0.0, %v997
    %999 = vmatprep.mubr.bf16.mxu0 0
    %1000 = vmatmul.mubr.bf16.gmra.mrb[0].mxu0 %v356
    %v1001 = vpop.f32.mrb[0].mxu0
    %v1002 = vadd.f32 0.0, %v1001
    %v1003 = vpop.f32.mrb[0].mxu0
    %v1004 = vadd.f32 0.0, %v1003
    %v1005 = vpop.f32.mrb[0].mxu0
    %v1006 = vadd.f32 0.0, %v1005
    %v1007 = vpop.f32.mrb[0].mxu0
    %v1008 = vadd.f32 0.0, %v1007
    %1009 = vmatprep.mubr.bf16.mxu0 0
    %1010 = vmatmul.mubr.bf16.gmra.mrb[0].mxu0 %v359
    %v1011 = vpop.f32.mrb[0].mxu0
    %v1012 = vadd.f32 0.0, %v1011
    %v1013 = vpop.f32.mrb[0].mxu0
    %v1014 = vadd.f32 0.0, %v1013
    %v1015 = vpop.f32.mrb[0].mxu0
    %v1016 = vadd.f32 0.0, %v1015
    %v1017 = vpop.f32.mrb[0].mxu0
    %v1018 = vadd.f32 0.0, %v1017
    %1019 = vmatprep.mubr.bf16.mxu0 0
    %1020 = vmatmul.mubr.bf16.gmra.mrb[0].mxu0 %v362
    %v1021 = vpop.f32.mrb[0].mxu0
    %v1022 = vadd.f32 0.0, %v1021
    %v1023 = vpop.f32.mrb[0].mxu0
    %v1024 = vadd.f32 0.0, %v1023
    %v1025 = vpop.f32.mrb[0].mxu0
    %v1026 = vadd.f32 0.0, %v1025
    %v1027 = vpop.f32.mrb[0].mxu0
    %v1028 = vadd.f32 0.0, %v1027
    %1029 = vmatprep.mubr.bf16.mxu0 0
    %1030 = vmatmul.mubr.bf16.gmra.mrb[0].mxu0 %v365
    %v1031 = vpop.f32.mrb[0].mxu0
    %v1032 = vadd.f32 0.0, %v1031
    %v1033 = vpop.f32.mrb[0].mxu0
    %v1034 = vadd.f32 0.0, %v1033
    %v1035 = vpop.f32.mrb[0].mxu0
    %v1036 = vadd.f32 0.0, %v1035
    %v1037 = vpop.f32.mrb[0].mxu0
    %v1038 = vadd.f32 0.0, %v1037
    %1039 = vmatprep.mubr.bf16.mxu0 0
    %1040 = vmatmul.mubr.bf16.gmra.mrb[0].mxu0 %v368
    %v1041 = vpop.f32.mrb[0].mxu0
    %v1042 = vadd.f32 0.0, %v1041
    %v1043 = vpop.f32.mrb[0].mxu0
    %v1044 = vadd.f32 0.0, %v1043
    %v1045 = vpop.f32.mrb[0].mxu0
    %v1046 = vadd.f32 0.0, %v1045
    %v1047 = vpop.f32.mrb[0].mxu0
    %v1048 = vadd.f32 0.0, %v1047
    %1049 = vmatprep.mubr.bf16.mxu0 0
    %1050 = vmatmul.mubr.bf16.gmra.mrb[0].mxu0 %v371
    %v1051 = vpop.f32.mrb[0].mxu0
    %v1052 = vadd.f32 0.0, %v1051
    %v1053 = vpop.f32.mrb[0].mxu0
    %v1054 = vadd.f32 0.0, %v1053
    %v1055 = vpop.f32.mrb[0].mxu0
    %v1056 = vadd.f32 0.0, %v1055
    %v1057 = vpop.f32.mrb[0].mxu0
    %v1058 = vadd.f32 0.0, %v1057
    %1059 = vmatprep.mubr.bf16.mxu0 0
    %1060 = vmatmul.mubr.bf16.gmra.mrb[0].mxu0 %v374
    %v1061 = vpop.f32.mrb[0].mxu0
    %v1062 = vadd.f32 0.0, %v1061
    %v1063 = vpop.f32.mrb[0].mxu0
    %v1064 = vadd.f32 0.0, %v1063
    %v1065 = vpop.f32.mrb[0].mxu0
    %v1066 = vadd.f32 0.0, %v1065
    %v1067 = vpop.f32.mrb[0].mxu0
    %v1068 = vadd.f32 0.0, %v1067
    %1069 = vmatprep.mubr.bf16.mxu0 0
    %1070 = vmatmul.mubr.bf16.gmra.mrb[0].mxu0 %v919
    %v1071 = vpop.f32.mrb[0].mxu0
    %v1072 = vadd.f32 0.0, %v1071
    %v1073 = vpop.f32.mrb[0].mxu0
    %v1074 = vadd.f32 0.0, %v1073
    %v1075 = vpop.f32.mrb[0].mxu0
    %v1076 = vadd.f32 0.0, %v1075
    %v1077 = vpop.f32.mrb[0].mxu0
    %v1078 = vadd.f32 0.0, %v1077
    %1079 = vdwg.mxu0
    %v1080 = vadd.f32 %v417, %v962
    %v1081 = vadd.f32 %v419, %v964
    %v1082 = vadd.f32 %v421, %v966
    %v1083 = vadd.f32 %v423, %v968
    %v1084 = vadd.f32 %v427, %v972
    %v1085 = vadd.f32 %v429, %v974
    %v1086 = vadd.f32 %v431, %v976
    %v1087 = vadd.f32 %v433, %v978
    %v1088 = vadd.f32 %v437, %v982
    %v1089 = vadd.f32 %v439, %v984
    %v1090 = vadd.f32 %v441, %v986
    %v1091 = vadd.f32 %v443, %v988
    %v1092 = vadd.f32 %v447, %v992
    %v1093 = vadd.f32 %v449, %v994
    %v1094 = vadd.f32 %v451, %v996
    %v1095 = vadd.f32 %v453, %v998
    %v1096 = vadd.f32 %v457, %v1002
    %v1097 = vadd.f32 %v459, %v1004
    %v1098 = vadd.f32 %v461, %v1006
    %v1099 = vadd.f32 %v463, %v1008
    %v1100 = vadd.f32 %v467, %v1012
    %v1101 = vadd.f32 %v469, %v1014
    %v1102 = vadd.f32 %v471, %v1016
    %v1103 = vadd.f32 %v473, %v1018
    %v1104 = vadd.f32 %v477, %v1022
    %v1105 = vadd.f32 %v479, %v1024
    %v1106 = vadd.f32 %v481, %v1026
    %v1107 = vadd.f32 %v483, %v1028
    %v1108 = vadd.f32 %v487, %v1032
    %v1109 = vadd.f32 %v489, %v1034
    %v1110 = vadd.f32 %v491, %v1036
    %v1111 = vadd.f32 %v493, %v1038
    %v1112 = vadd.f32 %v497, %v1042
    %v1113 = vadd.f32 %v499, %v1044
    %v1114 = vadd.f32 %v501, %v1046
    %v1115 = vadd.f32 %v503, %v1048
    %v1116 = vadd.f32 %v507, %v1052
    %v1117 = vadd.f32 %v509, %v1054
    %v1118 = vadd.f32 %v511, %v1056
    %v1119 = vadd.f32 %v513, %v1058
    %v1120 = vadd.f32 %v517, %v1062
    %v1121 = vadd.f32 %v519, %v1064
    %v1122 = vadd.f32 %v521, %v1066
    %v1123 = vadd.f32 %v523, %v1068
    %v1124 = vadd.f32 %v527, %v1072
    %v1125 = vadd.f32 %v529, %v1074
    %v1126 = vadd.f32 %v531, %v1076
    %v1127 = vadd.f32 %v533, %v1078
    %s1128 = scalar_lea.vmem %s1, 224
    %v1129 = vld [vmem:[%s1128] sm:$0xff]
    %v1130 = vld [vmem:[%s1128 + $0x8] sm:$0xff]
    %v1131 = vld [vmem:[%s1128 + $0x10] sm:$0xff]
    %v1132 = vld [vmem:[%s1128 + $0x18] sm:$0x33]
    %v1137 = vunpack.c.l.b16 %v1129
    %v1138 = vunpack.c.h.b16 %v1129
    %v1139 = vunpack.c.l.b16 %v1130
    %v1140 = vunpack.c.h.b16 %v1130
    %v1141 = vunpack.c.l.b16 %v1131
    %v1142 = vunpack.c.h.b16 %v1131
    %v1143 = vunpack.c.l.b16 %v1132
    %v1144 = vunpack.c.h.b16 %v1132
    %v1145 = vpack.c.b16 %v1139, %v1137
    %v1146 = vpack.c.b16 %v1140, %v1138
    %v1147 = vpack.c.b16 %v1143, %v1141
    %v1148 = vpack.c.b16 %v1144, %v1142
    %v1152 = vsel %vm162, %v1147, 0
    %v1155 = vsel %vm162, %v1148, 0
    %1157 = vmatprep.subr.bf16.mxu0 %v1146
    %1158 = vmatpush1.bf16.msra.mxu0 %v1145
    %1159 = vmatprep.subr.bf16.mxu0 %v1155
    %1160 = vmatpush1.bf16.msra.mxu0 %v1152
    %1161 = vmatprep.subr.bf16.mxu0 0
    %1162 = vmatpush1.bf16.msra.mxu0 0
    %1163 = vmatprep.subr.bf16.mxu0 0
    %1164 = vmatpush1.bf16.msra.mxu0 0
    %1165 = vmatprep.subr.bf16.mxu0 0
    %1166 = vmatpush1.bf16.msra.mxu0 0
    %1167 = vmatprep.subr.bf16.mxu0 0
    %1168 = vmatpush1.bf16.msra.mxu0 0
    %1169 = vmatprep.subr.bf16.mxu0 0
    %1170 = vmatpush1.bf16.msra.mxu0 0
    %1171 = vmatprep.subr.bf16.mxu0 0
    %1172 = vmatpush1.bf16.msra.mxu0 0
    %1173 = vmatprep.subr.bf16.mxu0 0
    %1174 = vmatpush1.bf16.msra.mxu0 0
    %1175 = vmatprep.subr.bf16.mxu0 0
    %1176 = vmatpush1.bf16.msra.mxu0 0
    %1177 = vmatprep.subr.bf16.mxu0 0
    %1178 = vmatpush1.bf16.msra.mxu0 0
    %1179 = vmatprep.subr.bf16.mxu0 0
    %1180 = vmatpush1.bf16.msra.mxu0 0
    %1181 = vmatprep.subr.bf16.mxu0 0
    %1182 = vmatpush1.bf16.msra.mxu0 0
    %1183 = vmatprep.subr.bf16.mxu0 0
    %1184 = vmatpush1.bf16.msra.mxu0 0
    %1185 = vmatprep.subr.bf16.mxu0 0
    %1186 = vmatpush1.bf16.msra.mxu0 0
    %1187 = vmatprep.subr.bf16.mxu0 0
    %1188 = vmatpush1.bf16.msra.mxu0 0
    %1189 = vmatprep.mubr.bf16.mxu0 0
    %1190 = vmatmul.mubr.bf16.gmra.mrb[0].mxu0 %v344
    %v1191 = vpop.f32.mrb[0].mxu0
    %v1192 = vadd.f32 0.0, %v1191
    %v1193 = vpop.f32.mrb[0].mxu0
    %v1194 = vadd.f32 0.0, %v1193
    %v1195 = vpop.f32.mrb[0].mxu0
    %v1196 = vadd.f32 0.0, %v1195
    %v1197 = vpop.f32.mrb[0].mxu0
    %v1198 = vadd.f32 0.0, %v1197
    %1199 = vmatprep.mubr.bf16.mxu0 0
    %1200 = vmatmul.mubr.bf16.gmra.mrb[0].mxu0 %v347
    %v1201 = vpop.f32.mrb[0].mxu0
    %v1202 = vadd.f32 0.0, %v1201
    %v1203 = vpop.f32.mrb[0].mxu0
    %v1204 = vadd.f32 0.0, %v1203
    %v1205 = vpop.f32.mrb[0].mxu0
    %v1206 = vadd.f32 0.0, %v1205
    %v1207 = vpop.f32.mrb[0].mxu0
    %v1208 = vadd.f32 0.0, %v1207
    %1209 = vmatprep.mubr.bf16.mxu0 0
    %1210 = vmatmul.mubr.bf16.gmra.mrb[0].mxu0 %v350
    %v1211 = vpop.f32.mrb[0].mxu0
    %v1212 = vadd.f32 0.0, %v1211
    %v1213 = vpop.f32.mrb[0].mxu0
    %v1214 = vadd.f32 0.0, %v1213
    %v1215 = vpop.f32.mrb[0].mxu0
    %v1216 = vadd.f32 0.0, %v1215
    %v1217 = vpop.f32.mrb[0].mxu0
    %v1218 = vadd.f32 0.0, %v1217
    %1219 = vmatprep.mubr.bf16.mxu0 0
    %1220 = vmatmul.mubr.bf16.gmra.mrb[0].mxu0 %v353
    %v1221 = vpop.f32.mrb[0].mxu0
    %v1222 = vadd.f32 0.0, %v1221
    %v1223 = vpop.f32.mrb[0].mxu0
    %v1224 = vadd.f32 0.0, %v1223
    %v1225 = vpop.f32.mrb[0].mxu0
    %v1226 = vadd.f32 0.0, %v1225
    %v1227 = vpop.f32.mrb[0].mxu0
    %v1228 = vadd.f32 0.0, %v1227
    %1229 = vmatprep.mubr.bf16.mxu0 0
    %1230 = vmatmul.mubr.bf16.gmra.mrb[0].mxu0 %v356
    %v1231 = vpop.f32.mrb[0].mxu0
    %v1232 = vadd.f32 0.0, %v1231
    %v1233 = vpop.f32.mrb[0].mxu0
    %v1234 = vadd.f32 0.0, %v1233
    %v1235 = vpop.f32.mrb[0].mxu0
    %v1236 = vadd.f32 0.0, %v1235
    %v1237 = vpop.f32.mrb[0].mxu0
    %v1238 = vadd.f32 0.0, %v1237
    %1239 = vmatprep.mubr.bf16.mxu0 0
    %1240 = vmatmul.mubr.bf16.gmra.mrb[0].mxu0 %v359
    %v1241 = vpop.f32.mrb[0].mxu0
    %v1242 = vadd.f32 0.0, %v1241
    %v1243 = vpop.f32.mrb[0].mxu0
    %v1244 = vadd.f32 0.0, %v1243
    %v1245 = vpop.f32.mrb[0].mxu0
    %v1246 = vadd.f32 0.0, %v1245
    %v1247 = vpop.f32.mrb[0].mxu0
    %v1248 = vadd.f32 0.0, %v1247
    %1249 = vmatprep.mubr.bf16.mxu0 0
    %1250 = vmatmul.mubr.bf16.gmra.mrb[0].mxu0 %v362
    %v1251 = vpop.f32.mrb[0].mxu0
    %v1252 = vadd.f32 0.0, %v1251
    %v1253 = vpop.f32.mrb[0].mxu0
    %v1254 = vadd.f32 0.0, %v1253
    %v1255 = vpop.f32.mrb[0].mxu0
    %v1256 = vadd.f32 0.0, %v1255
    %v1257 = vpop.f32.mrb[0].mxu0
    %v1258 = vadd.f32 0.0, %v1257
    %1259 = vmatprep.mubr.bf16.mxu0 0
    %1260 = vmatmul.mubr.bf16.gmra.mrb[0].mxu0 %v365
    %v1261 = vpop.f32.mrb[0].mxu0
    %v1262 = vadd.f32 0.0, %v1261
    %v1263 = vpop.f32.mrb[0].mxu0
    %v1264 = vadd.f32 0.0, %v1263
    %v1265 = vpop.f32.mrb[0].mxu0
    %v1266 = vadd.f32 0.0, %v1265
    %v1267 = vpop.f32.mrb[0].mxu0
    %v1268 = vadd.f32 0.0, %v1267
    %1269 = vmatprep.mubr.bf16.mxu0 0
    %1270 = vmatmul.mubr.bf16.gmra.mrb[0].mxu0 %v368
    %v1271 = vpop.f32.mrb[0].mxu0
    %v1272 = vadd.f32 0.0, %v1271
    %v1273 = vpop.f32.mrb[0].mxu0
    %v1274 = vadd.f32 0.0, %v1273
    %v1275 = vpop.f32.mrb[0].mxu0
    %v1276 = vadd.f32 0.0, %v1275
    %v1277 = vpop.f32.mrb[0].mxu0
    %v1278 = vadd.f32 0.0, %v1277
    %1279 = vmatprep.mubr.bf16.mxu0 0
    %1280 = vmatmul.mubr.bf16.gmra.mrb[0].mxu0 %v371
    %v1281 = vpop.f32.mrb[0].mxu0
    %v1282 = vadd.f32 0.0, %v1281
    %v1283 = vpop.f32.mrb[0].mxu0
    %v1284 = vadd.f32 0.0, %v1283
    %v1285 = vpop.f32.mrb[0].mxu0
    %v1286 = vadd.f32 0.0, %v1285
    %v1287 = vpop.f32.mrb[0].mxu0
    %v1288 = vadd.f32 0.0, %v1287
    %1289 = vmatprep.mubr.bf16.mxu0 0
    %1290 = vmatmul.mubr.bf16.gmra.mrb[0].mxu0 %v374
    %v1291 = vpop.f32.mrb[0].mxu0
    %v1292 = vadd.f32 0.0, %v1291
    %v1293 = vpop.f32.mrb[0].mxu0
    %v1294 = vadd.f32 0.0, %v1293
    %v1295 = vpop.f32.mrb[0].mxu0
    %v1296 = vadd.f32 0.0, %v1295
    %v1297 = vpop.f32.mrb[0].mxu0
    %v1298 = vadd.f32 0.0, %v1297
    %1299 = vmatprep.mubr.bf16.mxu0 0
    %1300 = vmatmul.mubr.bf16.gmra.mrb[0].mxu0 %v919
    %v1301 = vpop.f32.mrb[0].mxu0
    %v1302 = vadd.f32 0.0, %v1301
    %v1303 = vpop.f32.mrb[0].mxu0
    %v1304 = vadd.f32 0.0, %v1303
    %v1305 = vpop.f32.mrb[0].mxu0
    %v1306 = vadd.f32 0.0, %v1305
    %v1307 = vpop.f32.mrb[0].mxu0
    %v1308 = vadd.f32 0.0, %v1307
    %1309 = vdwg.mxu0
    %v1310 = vadd.f32 %v776, %v1192
    %v1311 = vadd.f32 %v778, %v1194
    %v1312 = vadd.f32 %v780, %v1196
    %v1313 = vadd.f32 %v782, %v1198
    %v1314 = vadd.f32 %v786, %v1202
    %v1315 = vadd.f32 %v788, %v1204
    %v1316 = vadd.f32 %v790, %v1206
    %v1317 = vadd.f32 %v792, %v1208
    %v1318 = vadd.f32 %v796, %v1212
    %v1319 = vadd.f32 %v798, %v1214
    %v1320 = vadd.f32 %v800, %v1216
    %v1321 = vadd.f32 %v802, %v1218
    %v1322 = vadd.f32 %v806, %v1222
    %v1323 = vadd.f32 %v808, %v1224
    %v1324 = vadd.f32 %v810, %v1226
    %v1325 = vadd.f32 %v812, %v1228
    %v1326 = vadd.f32 %v816, %v1232
    %v1327 = vadd.f32 %v818, %v1234
    %v1328 = vadd.f32 %v820, %v1236
    %v1329 = vadd.f32 %v822, %v1238
    %v1330 = vadd.f32 %v826, %v1242
    %v1331 = vadd.f32 %v828, %v1244
    %v1332 = vadd.f32 %v830, %v1246
    %v1333 = vadd.f32 %v832, %v1248
    %v1334 = vadd.f32 %v836, %v1252
    %v1335 = vadd.f32 %v838, %v1254
    %v1336 = vadd.f32 %v840, %v1256
    %v1337 = vadd.f32 %v842, %v1258
    %v1338 = vadd.f32 %v846, %v1262
    %v1339 = vadd.f32 %v848, %v1264
    %v1340 = vadd.f32 %v850, %v1266
    %v1341 = vadd.f32 %v852, %v1268
    %v1342 = vadd.f32 %v856, %v1272
    %v1343 = vadd.f32 %v858, %v1274
    %v1344 = vadd.f32 %v860, %v1276
    %v1345 = vadd.f32 %v862, %v1278
    %v1346 = vadd.f32 %v866, %v1282
    %v1347 = vadd.f32 %v868, %v1284
    %v1348 = vadd.f32 %v870, %v1286
    %v1349 = vadd.f32 %v872, %v1288
    %v1350 = vadd.f32 %v876, %v1292
    %v1351 = vadd.f32 %v878, %v1294
    %v1352 = vadd.f32 %v880, %v1296
    %v1353 = vadd.f32 %v882, %v1298
    %v1354 = vadd.f32 %v886, %v1302
    %v1355 = vadd.f32 %v888, %v1304
    %v1356 = vadd.f32 %v890, %v1306
    %v1357 = vadd.f32 %v892, %v1308
    %v1358 = vpack.c.bf16 %v67, %v66
    %s1359 = scalar_lea.vmem %s1, 96
    %v1360 = vld [vmem:[%s1359] sm:$0xff]
    %v1361 = vld [vmem:[%s1359 + $0x8] sm:$0xff]
    %v1362 = vld [vmem:[%s1359 + $0x10] sm:$0xff]
    %v1363 = vld [vmem:[%s1359 + $0x18] sm:$0x33]
    %v1368 = vunpack.c.l.b16 %v1360
    %v1369 = vunpack.c.h.b16 %v1360
    %v1370 = vunpack.c.l.b16 %v1361
    %v1371 = vunpack.c.h.b16 %v1361
    %v1372 = vunpack.c.l.b16 %v1362
    %v1373 = vunpack.c.h.b16 %v1362
    %v1374 = vunpack.c.l.b16 %v1363
    %v1375 = vunpack.c.h.b16 %v1363
    %v1376 = vpack.c.b16 %v1370, %v1368
    %v1377 = vpack.c.b16 %v1371, %v1369
    %v1378 = vpack.c.b16 %v1374, %v1372
    %v1379 = vpack.c.b16 %v1375, %v1373
    %v1383 = vsel %vm125, %v1358, 0
    %v1386 = vsel %vm162, %v1378, 0
    %v1389 = vsel %vm162, %v1379, 0
    %1391 = vmatprep.subr.bf16.mxu0 %v1377
    %1392 = vmatpush1.bf16.msra.mxu0 %v1376
    %1393 = vmatprep.subr.bf16.mxu0 %v1389
    %1394 = vmatpush1.bf16.msra.mxu0 %v1386
    %1395 = vmatprep.subr.bf16.mxu0 0
    %1396 = vmatpush1.bf16.msra.mxu0 0
    %1397 = vmatprep.subr.bf16.mxu0 0
    %1398 = vmatpush1.bf16.msra.mxu0 0
    %1399 = vmatprep.subr.bf16.mxu0 0
    %1400 = vmatpush1.bf16.msra.mxu0 0
    %1401 = vmatprep.subr.bf16.mxu0 0
    %1402 = vmatpush1.bf16.msra.mxu0 0
    %1403 = vmatprep.subr.bf16.mxu0 0
    %1404 = vmatpush1.bf16.msra.mxu0 0
    %1405 = vmatprep.subr.bf16.mxu0 0
    %1406 = vmatpush1.bf16.msra.mxu0 0
    %1407 = vmatprep.subr.bf16.mxu0 0
    %1408 = vmatpush1.bf16.msra.mxu0 0
    %1409 = vmatprep.subr.bf16.mxu0 0
    %1410 = vmatpush1.bf16.msra.mxu0 0
    %1411 = vmatprep.subr.bf16.mxu0 0
    %1412 = vmatpush1.bf16.msra.mxu0 0
    %1413 = vmatprep.subr.bf16.mxu0 0
    %1414 = vmatpush1.bf16.msra.mxu0 0
    %1415 = vmatprep.subr.bf16.mxu0 0
    %1416 = vmatpush1.bf16.msra.mxu0 0
    %1417 = vmatprep.subr.bf16.mxu0 0
    %1418 = vmatpush1.bf16.msra.mxu0 0
    %1419 = vmatprep.subr.bf16.mxu0 0
    %1420 = vmatpush1.bf16.msra.mxu0 0
    %1421 = vmatprep.subr.bf16.mxu0 0
    %1422 = vmatpush1.bf16.msra.mxu0 0
    %1423 = vmatprep.mubr.bf16.mxu0 0
    %1424 = vmatmul.mubr.bf16.gmra.mrb[0].mxu0 %v130
    %v1425 = vpop.f32.mrb[0].mxu0
    %v1426 = vadd.f32 0.0, %v1425
    %v1427 = vpop.f32.mrb[0].mxu0
    %v1428 = vadd.f32 0.0, %v1427
    %v1429 = vpop.f32.mrb[0].mxu0
    %v1430 = vadd.f32 0.0, %v1429
    %v1431 = vpop.f32.mrb[0].mxu0
    %v1432 = vadd.f32 0.0, %v1431
    %1433 = vmatprep.mubr.bf16.mxu0 0
    %1434 = vmatmul.mubr.bf16.gmra.mrb[0].mxu0 %v133
    %v1435 = vpop.f32.mrb[0].mxu0
    %v1436 = vadd.f32 0.0, %v1435
    %v1437 = vpop.f32.mrb[0].mxu0
    %v1438 = vadd.f32 0.0, %v1437
    %v1439 = vpop.f32.mrb[0].mxu0
    %v1440 = vadd.f32 0.0, %v1439
    %v1441 = vpop.f32.mrb[0].mxu0
    %v1442 = vadd.f32 0.0, %v1441
    %1443 = vmatprep.mubr.bf16.mxu0 0
    %1444 = vmatmul.mubr.bf16.gmra.mrb[0].mxu0 %v136
    %v1445 = vpop.f32.mrb[0].mxu0
    %v1446 = vadd.f32 0.0, %v1445
    %v1447 = vpop.f32.mrb[0].mxu0
    %v1448 = vadd.f32 0.0, %v1447
    %v1449 = vpop.f32.mrb[0].mxu0
    %v1450 = vadd.f32 0.0, %v1449
    %v1451 = vpop.f32.mrb[0].mxu0
    %v1452 = vadd.f32 0.0, %v1451
    %1453 = vmatprep.mubr.bf16.mxu0 0
    %1454 = vmatmul.mubr.bf16.gmra.mrb[0].mxu0 %v139
    %v1455 = vpop.f32.mrb[0].mxu0
    %v1456 = vadd.f32 0.0, %v1455
    %v1457 = vpop.f32.mrb[0].mxu0
    %v1458 = vadd.f32 0.0, %v1457
    %v1459 = vpop.f32.mrb[0].mxu0
    %v1460 = vadd.f32 0.0, %v1459
    %v1461 = vpop.f32.mrb[0].mxu0
    %v1462 = vadd.f32 0.0, %v1461
    %1463 = vmatprep.mubr.bf16.mxu0 0
    %1464 = vmatmul.mubr.bf16.gmra.mrb[0].mxu0 %v142
    %v1465 = vpop.f32.mrb[0].mxu0
    %v1466 = vadd.f32 0.0, %v1465
    %v1467 = vpop.f32.mrb[0].mxu0
    %v1468 = vadd.f32 0.0, %v1467
    %v1469 = vpop.f32.mrb[0].mxu0
    %v1470 = vadd.f32 0.0, %v1469
    %v1471 = vpop.f32.mrb[0].mxu0
    %v1472 = vadd.f32 0.0, %v1471
    %1473 = vmatprep.mubr.bf16.mxu0 0
    %1474 = vmatmul.mubr.bf16.gmra.mrb[0].mxu0 %v145
    %v1475 = vpop.f32.mrb[0].mxu0
    %v1476 = vadd.f32 0.0, %v1475
    %v1477 = vpop.f32.mrb[0].mxu0
    %v1478 = vadd.f32 0.0, %v1477
    %v1479 = vpop.f32.mrb[0].mxu0
    %v1480 = vadd.f32 0.0, %v1479
    %v1481 = vpop.f32.mrb[0].mxu0
    %v1482 = vadd.f32 0.0, %v1481
    %1483 = vmatprep.mubr.bf16.mxu0 0
    %1484 = vmatmul.mubr.bf16.gmra.mrb[0].mxu0 %v148
    %v1485 = vpop.f32.mrb[0].mxu0
    %v1486 = vadd.f32 0.0, %v1485
    %v1487 = vpop.f32.mrb[0].mxu0
    %v1488 = vadd.f32 0.0, %v1487
    %v1489 = vpop.f32.mrb[0].mxu0
    %v1490 = vadd.f32 0.0, %v1489
    %v1491 = vpop.f32.mrb[0].mxu0
    %v1492 = vadd.f32 0.0, %v1491
    %1493 = vmatprep.mubr.bf16.mxu0 0
    %1494 = vmatmul.mubr.bf16.gmra.mrb[0].mxu0 %v151
    %v1495 = vpop.f32.mrb[0].mxu0
    %v1496 = vadd.f32 0.0, %v1495
    %v1497 = vpop.f32.mrb[0].mxu0
    %v1498 = vadd.f32 0.0, %v1497
    %v1499 = vpop.f32.mrb[0].mxu0
    %v1500 = vadd.f32 0.0, %v1499
    %v1501 = vpop.f32.mrb[0].mxu0
    %v1502 = vadd.f32 0.0, %v1501
    %1503 = vmatprep.mubr.bf16.mxu0 0
    %1504 = vmatmul.mubr.bf16.gmra.mrb[0].mxu0 %v154
    %v1505 = vpop.f32.mrb[0].mxu0
    %v1506 = vadd.f32 0.0, %v1505
    %v1507 = vpop.f32.mrb[0].mxu0
    %v1508 = vadd.f32 0.0, %v1507
    %v1509 = vpop.f32.mrb[0].mxu0
    %v1510 = vadd.f32 0.0, %v1509
    %v1511 = vpop.f32.mrb[0].mxu0
    %v1512 = vadd.f32 0.0, %v1511
    %1513 = vmatprep.mubr.bf16.mxu0 0
    %1514 = vmatmul.mubr.bf16.gmra.mrb[0].mxu0 %v157
    %v1515 = vpop.f32.mrb[0].mxu0
    %v1516 = vadd.f32 0.0, %v1515
    %v1517 = vpop.f32.mrb[0].mxu0
    %v1518 = vadd.f32 0.0, %v1517
    %v1519 = vpop.f32.mrb[0].mxu0
    %v1520 = vadd.f32 0.0, %v1519
    %v1521 = vpop.f32.mrb[0].mxu0
    %v1522 = vadd.f32 0.0, %v1521
    %1523 = vmatprep.mubr.bf16.mxu0 0
    %1524 = vmatmul.mubr.bf16.gmra.mrb[0].mxu0 %v160
    %v1525 = vpop.f32.mrb[0].mxu0
    %v1526 = vadd.f32 0.0, %v1525
    %v1527 = vpop.f32.mrb[0].mxu0
    %v1528 = vadd.f32 0.0, %v1527
    %v1529 = vpop.f32.mrb[0].mxu0
    %v1530 = vadd.f32 0.0, %v1529
    %v1531 = vpop.f32.mrb[0].mxu0
    %v1532 = vadd.f32 0.0, %v1531
    %1533 = vmatprep.mubr.bf16.mxu0 0
    %1534 = vmatmul.mubr.bf16.gmra.mrb[0].mxu0 %v1383
    %v1535 = vpop.f32.mrb[0].mxu0
    %v1536 = vadd.f32 0.0, %v1535
    %v1537 = vpop.f32.mrb[0].mxu0
    %v1538 = vadd.f32 0.0, %v1537
    %v1539 = vpop.f32.mrb[0].mxu0
    %v1540 = vadd.f32 0.0, %v1539
    %v1541 = vpop.f32.mrb[0].mxu0
    %v1542 = vadd.f32 0.0, %v1541
    %1543 = vdwg.mxu0
    %v1544 = vadd.f32 %v1080, %v1426
    %v1545 = vadd.f32 %v1081, %v1428
    %v1546 = vadd.f32 %v1082, %v1430
    %v1547 = vadd.f32 %v1083, %v1432
    %v1548 = vadd.f32 %v1084, %v1436
    %v1549 = vadd.f32 %v1085, %v1438
    %v1550 = vadd.f32 %v1086, %v1440
    %v1551 = vadd.f32 %v1087, %v1442
    %v1552 = vadd.f32 %v1088, %v1446
    %v1553 = vadd.f32 %v1089, %v1448
    %v1554 = vadd.f32 %v1090, %v1450
    %v1555 = vadd.f32 %v1091, %v1452
    %v1556 = vadd.f32 %v1092, %v1456
    %v1557 = vadd.f32 %v1093, %v1458
    %v1558 = vadd.f32 %v1094, %v1460
    %v1559 = vadd.f32 %v1095, %v1462
    %v1560 = vadd.f32 %v1096, %v1466
    %v1561 = vadd.f32 %v1097, %v1468
    %v1562 = vadd.f32 %v1098, %v1470
    %v1563 = vadd.f32 %v1099, %v1472
    %v1564 = vadd.f32 %v1100, %v1476
    %v1565 = vadd.f32 %v1101, %v1478
    %v1566 = vadd.f32 %v1102, %v1480
    %v1567 = vadd.f32 %v1103, %v1482
    %v1568 = vadd.f32 %v1104, %v1486
    %v1569 = vadd.f32 %v1105, %v1488
    %v1570 = vadd.f32 %v1106, %v1490
    %v1571 = vadd.f32 %v1107, %v1492
    %v1572 = vadd.f32 %v1108, %v1496
    %v1573 = vadd.f32 %v1109, %v1498
    %v1574 = vadd.f32 %v1110, %v1500
    %v1575 = vadd.f32 %v1111, %v1502
    %v1576 = vadd.f32 %v1112, %v1506
    %v1577 = vadd.f32 %v1113, %v1508
    %v1578 = vadd.f32 %v1114, %v1510
    %v1579 = vadd.f32 %v1115, %v1512
    %v1580 = vadd.f32 %v1116, %v1516
    %v1581 = vadd.f32 %v1117, %v1518
    %v1582 = vadd.f32 %v1118, %v1520
    %v1583 = vadd.f32 %v1119, %v1522
    %v1584 = vadd.f32 %v1120, %v1526
    %v1585 = vadd.f32 %v1121, %v1528
    %v1586 = vadd.f32 %v1122, %v1530
    %v1587 = vadd.f32 %v1123, %v1532
    %v1588 = vadd.f32 %v1124, %v1536
    %v1589 = vadd.f32 %v1125, %v1538
    %v1590 = vadd.f32 %v1126, %v1540
    %v1591 = vadd.f32 %v1127, %v1542
    %s1592 = scalar_lea.vmem %s1, 256
    %v1593 = vld [vmem:[%s1592] sm:$0xff]
    %v1594 = vld [vmem:[%s1592 + $0x8] sm:$0xff]
    %v1595 = vld [vmem:[%s1592 + $0x10] sm:$0xff]
    %v1596 = vld [vmem:[%s1592 + $0x18] sm:$0x33]
    %v1601 = vunpack.c.l.b16 %v1593
    %v1602 = vunpack.c.h.b16 %v1593
    %v1603 = vunpack.c.l.b16 %v1594
    %v1604 = vunpack.c.h.b16 %v1594
    %v1605 = vunpack.c.l.b16 %v1595
    %v1606 = vunpack.c.h.b16 %v1595
    %v1607 = vunpack.c.l.b16 %v1596
    %v1608 = vunpack.c.h.b16 %v1596
    %v1609 = vpack.c.b16 %v1603, %v1601
    %v1610 = vpack.c.b16 %v1604, %v1602
    %v1611 = vpack.c.b16 %v1607, %v1605
    %v1612 = vpack.c.b16 %v1608, %v1606
    %v1616 = vsel %vm162, %v1611, 0
    %v1619 = vsel %vm162, %v1612, 0
    %1621 = vmatprep.subr.bf16.mxu0 %v1610
    %1622 = vmatpush1.bf16.msra.mxu0 %v1609
    %1623 = vmatprep.subr.bf16.mxu0 %v1619
    %1624 = vmatpush1.bf16.msra.mxu0 %v1616
    %1625 = vmatprep.subr.bf16.mxu0 0
    %1626 = vmatpush1.bf16.msra.mxu0 0
    %1627 = vmatprep.subr.bf16.mxu0 0
    %1628 = vmatpush1.bf16.msra.mxu0 0
    %1629 = vmatprep.subr.bf16.mxu0 0
    %1630 = vmatpush1.bf16.msra.mxu0 0
    %1631 = vmatprep.subr.bf16.mxu0 0
    %1632 = vmatpush1.bf16.msra.mxu0 0
    %1633 = vmatprep.subr.bf16.mxu0 0
    %1634 = vmatpush1.bf16.msra.mxu0 0
    %1635 = vmatprep.subr.bf16.mxu0 0
    %1636 = vmatpush1.bf16.msra.mxu0 0
    %1637 = vmatprep.subr.bf16.mxu0 0
    %1638 = vmatpush1.bf16.msra.mxu0 0
    %1639 = vmatprep.subr.bf16.mxu0 0
    %1640 = vmatpush1.bf16.msra.mxu0 0
    %1641 = vmatprep.subr.bf16.mxu0 0
    %1642 = vmatpush1.bf16.msra.mxu0 0
    %1643 = vmatprep.subr.bf16.mxu0 0
    %1644 = vmatpush1.bf16.msra.mxu0 0
    %1645 = vmatprep.subr.bf16.mxu0 0
    %1646 = vmatpush1.bf16.msra.mxu0 0
    %1647 = vmatprep.subr.bf16.mxu0 0
    %1648 = vmatpush1.bf16.msra.mxu0 0
    %1649 = vmatprep.subr.bf16.mxu0 0
    %1650 = vmatpush1.bf16.msra.mxu0 0
    %1651 = vmatprep.subr.bf16.mxu0 0
    %1652 = vmatpush1.bf16.msra.mxu0 0
    %1653 = vmatprep.mubr.bf16.mxu0 0
    %1654 = vmatmul.mubr.bf16.gmra.mrb[0].mxu0 %v130
    %v1655 = vpop.f32.mrb[0].mxu0
    %v1656 = vadd.f32 0.0, %v1655
    %v1657 = vpop.f32.mrb[0].mxu0
    %v1658 = vadd.f32 0.0, %v1657
    %v1659 = vpop.f32.mrb[0].mxu0
    %v1660 = vadd.f32 0.0, %v1659
    %v1661 = vpop.f32.mrb[0].mxu0
    %v1662 = vadd.f32 0.0, %v1661
    %1663 = vmatprep.mubr.bf16.mxu0 0
    %1664 = vmatmul.mubr.bf16.gmra.mrb[0].mxu0 %v133
    %v1665 = vpop.f32.mrb[0].mxu0
    %v1666 = vadd.f32 0.0, %v1665
    %v1667 = vpop.f32.mrb[0].mxu0
    %v1668 = vadd.f32 0.0, %v1667
    %v1669 = vpop.f32.mrb[0].mxu0
    %v1670 = vadd.f32 0.0, %v1669
    %v1671 = vpop.f32.mrb[0].mxu0
    %v1672 = vadd.f32 0.0, %v1671
    %1673 = vmatprep.mubr.bf16.mxu0 0
    %1674 = vmatmul.mubr.bf16.gmra.mrb[0].mxu0 %v136
    %v1675 = vpop.f32.mrb[0].mxu0
    %v1676 = vadd.f32 0.0, %v1675
    %v1677 = vpop.f32.mrb[0].mxu0
    %v1678 = vadd.f32 0.0, %v1677
    %v1679 = vpop.f32.mrb[0].mxu0
    %v1680 = vadd.f32 0.0, %v1679
    %v1681 = vpop.f32.mrb[0].mxu0
    %v1682 = vadd.f32 0.0, %v1681
    %1683 = vmatprep.mubr.bf16.mxu0 0
    %1684 = vmatmul.mubr.bf16.gmra.mrb[0].mxu0 %v139
    %v1685 = vpop.f32.mrb[0].mxu0
    %v1686 = vadd.f32 0.0, %v1685
    %v1687 = vpop.f32.mrb[0].mxu0
    %v1688 = vadd.f32 0.0, %v1687
    %v1689 = vpop.f32.mrb[0].mxu0
    %v1690 = vadd.f32 0.0, %v1689
    %v1691 = vpop.f32.mrb[0].mxu0
    %v1692 = vadd.f32 0.0, %v1691
    %1693 = vmatprep.mubr.bf16.mxu0 0
    %1694 = vmatmul.mubr.bf16.gmra.mrb[0].mxu0 %v142
    %v1695 = vpop.f32.mrb[0].mxu0
    %v1696 = vadd.f32 0.0, %v1695
    %v1697 = vpop.f32.mrb[0].mxu0
    %v1698 = vadd.f32 0.0, %v1697
    %v1699 = vpop.f32.mrb[0].mxu0
    %v1700 = vadd.f32 0.0, %v1699
    %v1701 = vpop.f32.mrb[0].mxu0
    %v1702 = vadd.f32 0.0, %v1701
    %1703 = vmatprep.mubr.bf16.mxu0 0
    %1704 = vmatmul.mubr.bf16.gmra.mrb[0].mxu0 %v145
    %v1705 = vpop.f32.mrb[0].mxu0
    %v1706 = vadd.f32 0.0, %v1705
    %v1707 = vpop.f32.mrb[0].mxu0
    %v1708 = vadd.f32 0.0, %v1707
    %v1709 = vpop.f32.mrb[0].mxu0
    %v1710 = vadd.f32 0.0, %v1709
    %v1711 = vpop.f32.mrb[0].mxu0
    %v1712 = vadd.f32 0.0, %v1711
    %1713 = vmatprep.mubr.bf16.mxu0 0
    %1714 = vmatmul.mubr.bf16.gmra.mrb[0].mxu0 %v148
    %v1715 = vpop.f32.mrb[0].mxu0
    %v1716 = vadd.f32 0.0, %v1715
    %v1717 = vpop.f32.mrb[0].mxu0
    %v1718 = vadd.f32 0.0, %v1717
    %v1719 = vpop.f32.mrb[0].mxu0
    %v1720 = vadd.f32 0.0, %v1719
    %v1721 = vpop.f32.mrb[0].mxu0
    %v1722 = vadd.f32 0.0, %v1721
    %1723 = vmatprep.mubr.bf16.mxu0 0
    %1724 = vmatmul.mubr.bf16.gmra.mrb[0].mxu0 %v151
    %v1725 = vpop.f32.mrb[0].mxu0
    %v1726 = vadd.f32 0.0, %v1725
    %v1727 = vpop.f32.mrb[0].mxu0
    %v1728 = vadd.f32 0.0, %v1727
    %v1729 = vpop.f32.mrb[0].mxu0
    %v1730 = vadd.f32 0.0, %v1729
    %v1731 = vpop.f32.mrb[0].mxu0
    %v1732 = vadd.f32 0.0, %v1731
    %1733 = vmatprep.mubr.bf16.mxu0 0
    %1734 = vmatmul.mubr.bf16.gmra.mrb[0].mxu0 %v154
    %v1735 = vpop.f32.mrb[0].mxu0
    %v1736 = vadd.f32 0.0, %v1735
    %v1737 = vpop.f32.mrb[0].mxu0
    %v1738 = vadd.f32 0.0, %v1737
    %v1739 = vpop.f32.mrb[0].mxu0
    %v1740 = vadd.f32 0.0, %v1739
    %v1741 = vpop.f32.mrb[0].mxu0
    %v1742 = vadd.f32 0.0, %v1741
    %1743 = vmatprep.mubr.bf16.mxu0 0
    %1744 = vmatmul.mubr.bf16.gmra.mrb[0].mxu0 %v157
    %v1745 = vpop.f32.mrb[0].mxu0
    %v1746 = vadd.f32 0.0, %v1745
    %v1747 = vpop.f32.mrb[0].mxu0
    %v1748 = vadd.f32 0.0, %v1747
    %v1749 = vpop.f32.mrb[0].mxu0
    %v1750 = vadd.f32 0.0, %v1749
    %v1751 = vpop.f32.mrb[0].mxu0
    %v1752 = vadd.f32 0.0, %v1751
    %1753 = vmatprep.mubr.bf16.mxu0 0
    %1754 = vmatmul.mubr.bf16.gmra.mrb[0].mxu0 %v160
    %v1755 = vpop.f32.mrb[0].mxu0
    %v1756 = vadd.f32 0.0, %v1755
    %v1757 = vpop.f32.mrb[0].mxu0
    %v1758 = vadd.f32 0.0, %v1757
    %v1759 = vpop.f32.mrb[0].mxu0
    %v1760 = vadd.f32 0.0, %v1759
    %v1761 = vpop.f32.mrb[0].mxu0
    %v1762 = vadd.f32 0.0, %v1761
    %1763 = vmatprep.mubr.bf16.mxu0 0
    %1764 = vmatmul.mubr.bf16.gmra.mrb[0].mxu0 %v1383
    %v1765 = vpop.f32.mrb[0].mxu0
    %v1766 = vadd.f32 0.0, %v1765
    %v1767 = vpop.f32.mrb[0].mxu0
    %v1768 = vadd.f32 0.0, %v1767
    %v1769 = vpop.f32.mrb[0].mxu0
    %v1770 = vadd.f32 0.0, %v1769
    %v1771 = vpop.f32.mrb[0].mxu0
    %v1772 = vadd.f32 0.0, %v1771
    %1773 = vdwg.mxu0
    %v1774 = vadd.f32 %v1310, %v1656
    %v1775 = vadd.f32 %v1311, %v1658
    %v1776 = vadd.f32 %v1312, %v1660
    %v1777 = vadd.f32 %v1313, %v1662
    %v1778 = vadd.f32 %v1314, %v1666
    %v1779 = vadd.f32 %v1315, %v1668
    %v1780 = vadd.f32 %v1316, %v1670
    %v1781 = vadd.f32 %v1317, %v1672
    %v1782 = vadd.f32 %v1318, %v1676
    %v1783 = vadd.f32 %v1319, %v1678
    %v1784 = vadd.f32 %v1320, %v1680
    %v1785 = vadd.f32 %v1321, %v1682
    %v1786 = vadd.f32 %v1322, %v1686
    %v1787 = vadd.f32 %v1323, %v1688
    %v1788 = vadd.f32 %v1324, %v1690
    %v1789 = vadd.f32 %v1325, %v1692
    %v1790 = vadd.f32 %v1326, %v1696
    %v1791 = vadd.f32 %v1327, %v1698
    %v1792 = vadd.f32 %v1328, %v1700
    %v1793 = vadd.f32 %v1329, %v1702
    %v1794 = vadd.f32 %v1330, %v1706
    %v1795 = vadd.f32 %v1331, %v1708
    %v1796 = vadd.f32 %v1332, %v1710
    %v1797 = vadd.f32 %v1333, %v1712
    %v1798 = vadd.f32 %v1334, %v1716
    %v1799 = vadd.f32 %v1335, %v1718
    %v1800 = vadd.f32 %v1336, %v1720
    %v1801 = vadd.f32 %v1337, %v1722
    %v1802 = vadd.f32 %v1338, %v1726
    %v1803 = vadd.f32 %v1339, %v1728
    %v1804 = vadd.f32 %v1340, %v1730
    %v1805 = vadd.f32 %v1341, %v1732
    %v1806 = vadd.f32 %v1342, %v1736
    %v1807 = vadd.f32 %v1343, %v1738
    %v1808 = vadd.f32 %v1344, %v1740
    %v1809 = vadd.f32 %v1345, %v1742
    %v1810 = vadd.f32 %v1346, %v1746
    %v1811 = vadd.f32 %v1347, %v1748
    %v1812 = vadd.f32 %v1348, %v1750
    %v1813 = vadd.f32 %v1349, %v1752
    %v1814 = vadd.f32 %v1350, %v1756
    %v1815 = vadd.f32 %v1351, %v1758
    %v1816 = vadd.f32 %v1352, %v1760
    %v1817 = vadd.f32 %v1353, %v1762
    %v1818 = vadd.f32 %v1354, %v1766
    %v1819 = vadd.f32 %v1355, %v1768
    %v1820 = vadd.f32 %v1356, %v1770
    %v1821 = vadd.f32 %v1357, %v1772
    %v1822 = vpack.c.bf16 %v68, %v67
    %s1823 = scalar_lea.vmem %s1, 128
    %v1824 = vld [vmem:[%s1823] sm:$0xff]
    %v1825 = vld [vmem:[%s1823 + $0x8] sm:$0xff]
    %v1826 = vld [vmem:[%s1823 + $0x10] sm:$0xff]
    %v1827 = vld [vmem:[%s1823 + $0x18] sm:$0x33]
    %v1832 = vunpack.c.l.b16 %v1824
    %v1833 = vunpack.c.h.b16 %v1824
    %v1834 = vunpack.c.l.b16 %v1825
    %v1835 = vunpack.c.h.b16 %v1825
    %v1836 = vunpack.c.l.b16 %v1826
    %v1837 = vunpack.c.h.b16 %v1826
    %v1838 = vunpack.c.l.b16 %v1827
    %v1839 = vunpack.c.h.b16 %v1827
    %v1840 = vpack.c.b16 %v1834, %v1832
    %v1841 = vpack.c.b16 %v1835, %v1833
    %v1842 = vpack.c.b16 %v1838, %v1836
    %v1843 = vpack.c.b16 %v1839, %v1837
    %v1847 = vsel %vm125, %v1822, 0
    %v1850 = vsel %vm162, %v1842, 0
    %v1853 = vsel %vm162, %v1843, 0
    %1855 = vmatprep.subr.bf16.mxu0 %v1841
    %1856 = vmatpush1.bf16.msra.mxu0 %v1840
    %1857 = vmatprep.subr.bf16.mxu0 %v1853
    %1858 = vmatpush1.bf16.msra.mxu0 %v1850
    %1859 = vmatprep.subr.bf16.mxu0 0
    %1860 = vmatpush1.bf16.msra.mxu0 0
    %1861 = vmatprep.subr.bf16.mxu0 0
    %1862 = vmatpush1.bf16.msra.mxu0 0
    %1863 = vmatprep.subr.bf16.mxu0 0
    %1864 = vmatpush1.bf16.msra.mxu0 0
    %1865 = vmatprep.subr.bf16.mxu0 0
    %1866 = vmatpush1.bf16.msra.mxu0 0
    %1867 = vmatprep.subr.bf16.mxu0 0
    %1868 = vmatpush1.bf16.msra.mxu0 0
    %1869 = vmatprep.subr.bf16.mxu0 0
    %1870 = vmatpush1.bf16.msra.mxu0 0
    %1871 = vmatprep.subr.bf16.mxu0 0
    %1872 = vmatpush1.bf16.msra.mxu0 0
    %1873 = vmatprep.subr.bf16.mxu0 0
    %1874 = vmatpush1.bf16.msra.mxu0 0
    %1875 = vmatprep.subr.bf16.mxu0 0
    %1876 = vmatpush1.bf16.msra.mxu0 0
    %1877 = vmatprep.subr.bf16.mxu0 0
    %1878 = vmatpush1.bf16.msra.mxu0 0
    %1879 = vmatprep.subr.bf16.mxu0 0
    %1880 = vmatpush1.bf16.msra.mxu0 0
    %1881 = vmatprep.subr.bf16.mxu0 0
    %1882 = vmatpush1.bf16.msra.mxu0 0
    %1883 = vmatprep.subr.bf16.mxu0 0
    %1884 = vmatpush1.bf16.msra.mxu0 0
    %1885 = vmatprep.subr.bf16.mxu0 0
    %1886 = vmatpush1.bf16.msra.mxu0 0
    %1887 = vmatprep.mubr.bf16.mxu0 0
    %1888 = vmatmul.mubr.bf16.gmra.mrb[0].mxu0 %v347
    %v1889 = vpop.f32.mrb[0].mxu0
    %v1890 = vadd.f32 0.0, %v1889
    %v1891 = vpop.f32.mrb[0].mxu0
    %v1892 = vadd.f32 0.0, %v1891
    %v1893 = vpop.f32.mrb[0].mxu0
    %v1894 = vadd.f32 0.0, %v1893
    %v1895 = vpop.f32.mrb[0].mxu0
    %v1896 = vadd.f32 0.0, %v1895
    %1897 = vmatprep.mubr.bf16.mxu0 0
    %1898 = vmatmul.mubr.bf16.gmra.mrb[0].mxu0 %v350
    %v1899 = vpop.f32.mrb[0].mxu0
    %v1900 = vadd.f32 0.0, %v1899
    %v1901 = vpop.f32.mrb[0].mxu0
    %v1902 = vadd.f32 0.0, %v1901
    %v1903 = vpop.f32.mrb[0].mxu0
    %v1904 = vadd.f32 0.0, %v1903
    %v1905 = vpop.f32.mrb[0].mxu0
    %v1906 = vadd.f32 0.0, %v1905
    %1907 = vmatprep.mubr.bf16.mxu0 0
    %1908 = vmatmul.mubr.bf16.gmra.mrb[0].mxu0 %v353
    %v1909 = vpop.f32.mrb[0].mxu0
    %v1910 = vadd.f32 0.0, %v1909
    %v1911 = vpop.f32.mrb[0].mxu0
    %v1912 = vadd.f32 0.0, %v1911
    %v1913 = vpop.f32.mrb[0].mxu0
    %v1914 = vadd.f32 0.0, %v1913
    %v1915 = vpop.f32.mrb[0].mxu0
    %v1916 = vadd.f32 0.0, %v1915
    %1917 = vmatprep.mubr.bf16.mxu0 0
    %1918 = vmatmul.mubr.bf16.gmra.mrb[0].mxu0 %v356
    %v1919 = vpop.f32.mrb[0].mxu0
    %v1920 = vadd.f32 0.0, %v1919
    %v1921 = vpop.f32.mrb[0].mxu0
    %v1922 = vadd.f32 0.0, %v1921
    %v1923 = vpop.f32.mrb[0].mxu0
    %v1924 = vadd.f32 0.0, %v1923
    %v1925 = vpop.f32.mrb[0].mxu0
    %v1926 = vadd.f32 0.0, %v1925
    %1927 = vmatprep.mubr.bf16.mxu0 0
    %1928 = vmatmul.mubr.bf16.gmra.mrb[0].mxu0 %v359
    %v1929 = vpop.f32.mrb[0].mxu0
    %v1930 = vadd.f32 0.0, %v1929
    %v1931 = vpop.f32.mrb[0].mxu0
    %v1932 = vadd.f32 0.0, %v1931
    %v1933 = vpop.f32.mrb[0].mxu0
    %v1934 = vadd.f32 0.0, %v1933
    %v1935 = vpop.f32.mrb[0].mxu0
    %v1936 = vadd.f32 0.0, %v1935
    %1937 = vmatprep.mubr.bf16.mxu0 0
    %1938 = vmatmul.mubr.bf16.gmra.mrb[0].mxu0 %v362
    %v1939 = vpop.f32.mrb[0].mxu0
    %v1940 = vadd.f32 0.0, %v1939
    %v1941 = vpop.f32.mrb[0].mxu0
    %v1942 = vadd.f32 0.0, %v1941
    %v1943 = vpop.f32.mrb[0].mxu0
    %v1944 = vadd.f32 0.0, %v1943
    %v1945 = vpop.f32.mrb[0].mxu0
    %v1946 = vadd.f32 0.0, %v1945
    %1947 = vmatprep.mubr.bf16.mxu0 0
    %1948 = vmatmul.mubr.bf16.gmra.mrb[0].mxu0 %v365
    %v1949 = vpop.f32.mrb[0].mxu0
    %v1950 = vadd.f32 0.0, %v1949
    %v1951 = vpop.f32.mrb[0].mxu0
    %v1952 = vadd.f32 0.0, %v1951
    %v1953 = vpop.f32.mrb[0].mxu0
    %v1954 = vadd.f32 0.0, %v1953
    %v1955 = vpop.f32.mrb[0].mxu0
    %v1956 = vadd.f32 0.0, %v1955
    %1957 = vmatprep.mubr.bf16.mxu0 0
    %1958 = vmatmul.mubr.bf16.gmra.mrb[0].mxu0 %v368
    %v1959 = vpop.f32.mrb[0].mxu0
    %v1960 = vadd.f32 0.0, %v1959
    %v1961 = vpop.f32.mrb[0].mxu0
    %v1962 = vadd.f32 0.0, %v1961
    %v1963 = vpop.f32.mrb[0].mxu0
    %v1964 = vadd.f32 0.0, %v1963
    %v1965 = vpop.f32.mrb[0].mxu0
    %v1966 = vadd.f32 0.0, %v1965
    %1967 = vmatprep.mubr.bf16.mxu0 0
    %1968 = vmatmul.mubr.bf16.gmra.mrb[0].mxu0 %v371
    %v1969 = vpop.f32.mrb[0].mxu0
    %v1970 = vadd.f32 0.0, %v1969
    %v1971 = vpop.f32.mrb[0].mxu0
    %v1972 = vadd.f32 0.0, %v1971
    %v1973 = vpop.f32.mrb[0].mxu0
    %v1974 = vadd.f32 0.0, %v1973
    %v1975 = vpop.f32.mrb[0].mxu0
    %v1976 = vadd.f32 0.0, %v1975
    %1977 = vmatprep.mubr.bf16.mxu0 0
    %1978 = vmatmul.mubr.bf16.gmra.mrb[0].mxu0 %v374
    %v1979 = vpop.f32.mrb[0].mxu0
    %v1980 = vadd.f32 0.0, %v1979
    %v1981 = vpop.f32.mrb[0].mxu0
    %v1982 = vadd.f32 0.0, %v1981
    %v1983 = vpop.f32.mrb[0].mxu0
    %v1984 = vadd.f32 0.0, %v1983
    %v1985 = vpop.f32.mrb[0].mxu0
    %v1986 = vadd.f32 0.0, %v1985
    %1987 = vmatprep.mubr.bf16.mxu0 0
    %1988 = vmatmul.mubr.bf16.gmra.mrb[0].mxu0 %v919
    %v1989 = vpop.f32.mrb[0].mxu0
    %v1990 = vadd.f32 0.0, %v1989
    %v1991 = vpop.f32.mrb[0].mxu0
    %v1992 = vadd.f32 0.0, %v1991
    %v1993 = vpop.f32.mrb[0].mxu0
    %v1994 = vadd.f32 0.0, %v1993
    %v1995 = vpop.f32.mrb[0].mxu0
    %v1996 = vadd.f32 0.0, %v1995
    %1997 = vmatprep.mubr.bf16.mxu0 0
    %1998 = vmatmul.mubr.bf16.gmra.mrb[0].mxu0 %v1847
    %v1999 = vpop.f32.mrb[0].mxu0
    %v2000 = vadd.f32 0.0, %v1999
    %v2001 = vpop.f32.mrb[0].mxu0
    %v2002 = vadd.f32 0.0, %v2001
    %v2003 = vpop.f32.mrb[0].mxu0
    %v2004 = vadd.f32 0.0, %v2003
    %v2005 = vpop.f32.mrb[0].mxu0
    %v2006 = vadd.f32 0.0, %v2005
    %2007 = vdwg.mxu0
    %v2008 = vadd.f32 %v1544, %v1890
    %v2009 = vadd.f32 %v1545, %v1892
    %v2010 = vadd.f32 %v1546, %v1894
    %v2011 = vadd.f32 %v1547, %v1896
    %v2012 = vadd.f32 %v1548, %v1900
    %v2013 = vadd.f32 %v1549, %v1902
    %v2014 = vadd.f32 %v1550, %v1904
    %v2015 = vadd.f32 %v1551, %v1906
    %v2016 = vadd.f32 %v1552, %v1910
    %v2017 = vadd.f32 %v1553, %v1912
    %v2018 = vadd.f32 %v1554, %v1914
    %v2019 = vadd.f32 %v1555, %v1916
    %v2020 = vadd.f32 %v1556, %v1920
    %v2021 = vadd.f32 %v1557, %v1922
    %v2022 = vadd.f32 %v1558, %v1924
    %v2023 = vadd.f32 %v1559, %v1926
    %v2024 = vadd.f32 %v1560, %v1930
    %v2025 = vadd.f32 %v1561, %v1932
    %v2026 = vadd.f32 %v1562, %v1934
    %v2027 = vadd.f32 %v1563, %v1936
    %v2028 = vadd.f32 %v1564, %v1940
    %v2029 = vadd.f32 %v1565, %v1942
    %v2030 = vadd.f32 %v1566, %v1944
    %v2031 = vadd.f32 %v1567, %v1946
    %v2032 = vadd.f32 %v1568, %v1950
    %v2033 = vadd.f32 %v1569, %v1952
    %v2034 = vadd.f32 %v1570, %v1954
    %v2035 = vadd.f32 %v1571, %v1956
    %v2036 = vadd.f32 %v1572, %v1960
    %v2037 = vadd.f32 %v1573, %v1962
    %v2038 = vadd.f32 %v1574, %v1964
    %v2039 = vadd.f32 %v1575, %v1966
    %v2040 = vadd.f32 %v1576, %v1970
    %v2041 = vadd.f32 %v1577, %v1972
    %v2042 = vadd.f32 %v1578, %v1974
    %v2043 = vadd.f32 %v1579, %v1976
    %v2044 = vadd.f32 %v1580, %v1980
    %v2045 = vadd.f32 %v1581, %v1982
    %v2046 = vadd.f32 %v1582, %v1984
    %v2047 = vadd.f32 %v1583, %v1986
    %v2048 = vadd.f32 %v1584, %v1990
    %v2049 = vadd.f32 %v1585, %v1992
    %v2050 = vadd.f32 %v1586, %v1994
    %v2051 = vadd.f32 %v1587, %v1996
    %v2052 = vadd.f32 %v1588, %v2000
    %v2053 = vadd.f32 %v1589, %v2002
    %v2054 = vadd.f32 %v1590, %v2004
    %v2055 = vadd.f32 %v1591, %v2006
    %s2056 = scalar_lea.vmem %s1, 288
    %v2057 = vld [vmem:[%s2056] sm:$0xff]
    %v2058 = vld [vmem:[%s2056 + $0x8] sm:$0xff]
    %v2059 = vld [vmem:[%s2056 + $0x10] sm:$0xff]
    %v2060 = vld [vmem:[%s2056 + $0x18] sm:$0x33]
    %v2065 = vunpack.c.l.b16 %v2057
    %v2066 = vunpack.c.h.b16 %v2057
    %v2067 = vunpack.c.l.b16 %v2058
    %v2068 = vunpack.c.h.b16 %v2058
    %v2069 = vunpack.c.l.b16 %v2059
    %v2070 = vunpack.c.h.b16 %v2059
    %v2071 = vunpack.c.l.b16 %v2060
    %v2072 = vunpack.c.h.b16 %v2060
    %v2073 = vpack.c.b16 %v2067, %v2065
    %v2074 = vpack.c.b16 %v2068, %v2066
    %v2075 = vpack.c.b16 %v2071, %v2069
    %v2076 = vpack.c.b16 %v2072, %v2070
    %v2080 = vsel %vm162, %v2075, 0
    %v2083 = vsel %vm162, %v2076, 0
    %2085 = vmatprep.subr.bf16.mxu0 %v2074
    %2086 = vmatpush1.bf16.msra.mxu0 %v2073
    %2087 = vmatprep.subr.bf16.mxu0 %v2083
    %2088 = vmatpush1.bf16.msra.mxu0 %v2080
    %2089 = vmatprep.subr.bf16.mxu0 0
    %2090 = vmatpush1.bf16.msra.mxu0 0
    %2091 = vmatprep.subr.bf16.mxu0 0
    %2092 = vmatpush1.bf16.msra.mxu0 0
    %2093 = vmatprep.subr.bf16.mxu0 0
    %2094 = vmatpush1.bf16.msra.mxu0 0
    %2095 = vmatprep.subr.bf16.mxu0 0
    %2096 = vmatpush1.bf16.msra.mxu0 0
    %2097 = vmatprep.subr.bf16.mxu0 0
    %2098 = vmatpush1.bf16.msra.mxu0 0
    %2099 = vmatprep.subr.bf16.mxu0 0
    %2100 = vmatpush1.bf16.msra.mxu0 0
    %2101 = vmatprep.subr.bf16.mxu0 0
    %2102 = vmatpush1.bf16.msra.mxu0 0
    %2103 = vmatprep.subr.bf16.mxu0 0
    %2104 = vmatpush1.bf16.msra.mxu0 0
    %2105 = vmatprep.subr.bf16.mxu0 0
    %2106 = vmatpush1.bf16.msra.mxu0 0
    %2107 = vmatprep.subr.bf16.mxu0 0
    %2108 = vmatpush1.bf16.msra.mxu0 0
    %2109 = vmatprep.subr.bf16.mxu0 0
    %2110 = vmatpush1.bf16.msra.mxu0 0
    %2111 = vmatprep.subr.bf16.mxu0 0
    %2112 = vmatpush1.bf16.msra.mxu0 0
    %2113 = vmatprep.subr.bf16.mxu0 0
    %2114 = vmatpush1.bf16.msra.mxu0 0
    %2115 = vmatprep.subr.bf16.mxu0 0
    %2116 = vmatpush1.bf16.msra.mxu0 0
    %2117 = vmatprep.mubr.bf16.mxu0 0
    %2118 = vmatmul.mubr.bf16.gmra.mrb[0].mxu0 %v347
    %v2119 = vpop.f32.mrb[0].mxu0
    %v2120 = vadd.f32 0.0, %v2119
    %v2121 = vpop.f32.mrb[0].mxu0
    %v2122 = vadd.f32 0.0, %v2121
    %v2123 = vpop.f32.mrb[0].mxu0
    %v2124 = vadd.f32 0.0, %v2123
    %v2125 = vpop.f32.mrb[0].mxu0
    %v2126 = vadd.f32 0.0, %v2125
    %2127 = vmatprep.mubr.bf16.mxu0 0
    %2128 = vmatmul.mubr.bf16.gmra.mrb[0].mxu0 %v350
    %v2129 = vpop.f32.mrb[0].mxu0
    %v2130 = vadd.f32 0.0, %v2129
    %v2131 = vpop.f32.mrb[0].mxu0
    %v2132 = vadd.f32 0.0, %v2131
    %v2133 = vpop.f32.mrb[0].mxu0
    %v2134 = vadd.f32 0.0, %v2133
    %v2135 = vpop.f32.mrb[0].mxu0
    %v2136 = vadd.f32 0.0, %v2135
    %2137 = vmatprep.mubr.bf16.mxu0 0
    %2138 = vmatmul.mubr.bf16.gmra.mrb[0].mxu0 %v353
    %v2139 = vpop.f32.mrb[0].mxu0
    %v2140 = vadd.f32 0.0, %v2139
    %v2141 = vpop.f32.mrb[0].mxu0
    %v2142 = vadd.f32 0.0, %v2141
    %v2143 = vpop.f32.mrb[0].mxu0
    %v2144 = vadd.f32 0.0, %v2143
    %v2145 = vpop.f32.mrb[0].mxu0
    %v2146 = vadd.f32 0.0, %v2145
    %2147 = vmatprep.mubr.bf16.mxu0 0
    %2148 = vmatmul.mubr.bf16.gmra.mrb[0].mxu0 %v356
    %v2149 = vpop.f32.mrb[0].mxu0
    %v2150 = vadd.f32 0.0, %v2149
    %v2151 = vpop.f32.mrb[0].mxu0
    %v2152 = vadd.f32 0.0, %v2151
    %v2153 = vpop.f32.mrb[0].mxu0
    %v2154 = vadd.f32 0.0, %v2153
    %v2155 = vpop.f32.mrb[0].mxu0
    %v2156 = vadd.f32 0.0, %v2155
    %2157 = vmatprep.mubr.bf16.mxu0 0
    %2158 = vmatmul.mubr.bf16.gmra.mrb[0].mxu0 %v359
    %v2159 = vpop.f32.mrb[0].mxu0
    %v2160 = vadd.f32 0.0, %v2159
    %v2161 = vpop.f32.mrb[0].mxu0
    %v2162 = vadd.f32 0.0, %v2161
    %v2163 = vpop.f32.mrb[0].mxu0
    %v2164 = vadd.f32 0.0, %v2163
    %v2165 = vpop.f32.mrb[0].mxu0
    %v2166 = vadd.f32 0.0, %v2165
    %2167 = vmatprep.mubr.bf16.mxu0 0
    %2168 = vmatmul.mubr.bf16.gmra.mrb[0].mxu0 %v362
    %v2169 = vpop.f32.mrb[0].mxu0
    %v2170 = vadd.f32 0.0, %v2169
    %v2171 = vpop.f32.mrb[0].mxu0
    %v2172 = vadd.f32 0.0, %v2171
    %v2173 = vpop.f32.mrb[0].mxu0
    %v2174 = vadd.f32 0.0, %v2173
    %v2175 = vpop.f32.mrb[0].mxu0
    %v2176 = vadd.f32 0.0, %v2175
    %2177 = vmatprep.mubr.bf16.mxu0 0
    %2178 = vmatmul.mubr.bf16.gmra.mrb[0].mxu0 %v365
    %v2179 = vpop.f32.mrb[0].mxu0
    %v2180 = vadd.f32 0.0, %v2179
    %v2181 = vpop.f32.mrb[0].mxu0
    %v2182 = vadd.f32 0.0, %v2181
    %v2183 = vpop.f32.mrb[0].mxu0
    %v2184 = vadd.f32 0.0, %v2183
    %v2185 = vpop.f32.mrb[0].mxu0
    %v2186 = vadd.f32 0.0, %v2185
    %2187 = vmatprep.mubr.bf16.mxu0 0
    %2188 = vmatmul.mubr.bf16.gmra.mrb[0].mxu0 %v368
    %v2189 = vpop.f32.mrb[0].mxu0
    %v2190 = vadd.f32 0.0, %v2189
    %v2191 = vpop.f32.mrb[0].mxu0
    %v2192 = vadd.f32 0.0, %v2191
    %v2193 = vpop.f32.mrb[0].mxu0
    %v2194 = vadd.f32 0.0, %v2193
    %v2195 = vpop.f32.mrb[0].mxu0
    %v2196 = vadd.f32 0.0, %v2195
    %2197 = vmatprep.mubr.bf16.mxu0 0
    %2198 = vmatmul.mubr.bf16.gmra.mrb[0].mxu0 %v371
    %v2199 = vpop.f32.mrb[0].mxu0
    %v2200 = vadd.f32 0.0, %v2199
    %v2201 = vpop.f32.mrb[0].mxu0
    %v2202 = vadd.f32 0.0, %v2201
    %v2203 = vpop.f32.mrb[0].mxu0
    %v2204 = vadd.f32 0.0, %v2203
    %v2205 = vpop.f32.mrb[0].mxu0
    %v2206 = vadd.f32 0.0, %v2205
    %2207 = vmatprep.mubr.bf16.mxu0 0
    %2208 = vmatmul.mubr.bf16.gmra.mrb[0].mxu0 %v374
    %v2209 = vpop.f32.mrb[0].mxu0
    %v2210 = vadd.f32 0.0, %v2209
    %v2211 = vpop.f32.mrb[0].mxu0
    %v2212 = vadd.f32 0.0, %v2211
    %v2213 = vpop.f32.mrb[0].mxu0
    %v2214 = vadd.f32 0.0, %v2213
    %v2215 = vpop.f32.mrb[0].mxu0
    %v2216 = vadd.f32 0.0, %v2215
    %2217 = vmatprep.mubr.bf16.mxu0 0
    %2218 = vmatmul.mubr.bf16.gmra.mrb[0].mxu0 %v919
    %v2219 = vpop.f32.mrb[0].mxu0
    %v2220 = vadd.f32 0.0, %v2219
    %v2221 = vpop.f32.mrb[0].mxu0
    %v2222 = vadd.f32 0.0, %v2221
    %v2223 = vpop.f32.mrb[0].mxu0
    %v2224 = vadd.f32 0.0, %v2223
    %v2225 = vpop.f32.mrb[0].mxu0
    %v2226 = vadd.f32 0.0, %v2225
    %2227 = vmatprep.mubr.bf16.mxu0 0
    %2228 = vmatmul.mubr.bf16.gmra.mrb[0].mxu0 %v1847
    %v2229 = vpop.f32.mrb[0].mxu0
    %v2230 = vadd.f32 0.0, %v2229
    %v2231 = vpop.f32.mrb[0].mxu0
    %v2232 = vadd.f32 0.0, %v2231
    %v2233 = vpop.f32.mrb[0].mxu0
    %v2234 = vadd.f32 0.0, %v2233
    %v2235 = vpop.f32.mrb[0].mxu0
    %v2236 = vadd.f32 0.0, %v2235
    %2237 = vdwg.mxu0
    %v2238 = vadd.f32 %v1774, %v2120
    %v2239 = vadd.f32 %v1775, %v2122
    %v2240 = vadd.f32 %v1776, %v2124
    %v2241 = vadd.f32 %v1777, %v2126
    %v2242 = vadd.f32 %v1778, %v2130
    %v2243 = vadd.f32 %v1779, %v2132
    %v2244 = vadd.f32 %v1780, %v2134
    %v2245 = vadd.f32 %v1781, %v2136
    %v2246 = vadd.f32 %v1782, %v2140
    %v2247 = vadd.f32 %v1783, %v2142
    %v2248 = vadd.f32 %v1784, %v2144
    %v2249 = vadd.f32 %v1785, %v2146
    %v2250 = vadd.f32 %v1786, %v2150
    %v2251 = vadd.f32 %v1787, %v2152
    %v2252 = vadd.f32 %v1788, %v2154
    %v2253 = vadd.f32 %v1789, %v2156
    %v2254 = vadd.f32 %v1790, %v2160
    %v2255 = vadd.f32 %v1791, %v2162
    %v2256 = vadd.f32 %v1792, %v2164
    %v2257 = vadd.f32 %v1793, %v2166
    %v2258 = vadd.f32 %v1794, %v2170
    %v2259 = vadd.f32 %v1795, %v2172
    %v2260 = vadd.f32 %v1796, %v2174
    %v2261 = vadd.f32 %v1797, %v2176
    %v2262 = vadd.f32 %v1798, %v2180
    %v2263 = vadd.f32 %v1799, %v2182
    %v2264 = vadd.f32 %v1800, %v2184
    %v2265 = vadd.f32 %v1801, %v2186
    %v2266 = vadd.f32 %v1802, %v2190
    %v2267 = vadd.f32 %v1803, %v2192
    %v2268 = vadd.f32 %v1804, %v2194
    %v2269 = vadd.f32 %v1805, %v2196
    %v2270 = vadd.f32 %v1806, %v2200
    %v2271 = vadd.f32 %v1807, %v2202
    %v2272 = vadd.f32 %v1808, %v2204
    %v2273 = vadd.f32 %v1809, %v2206
    %v2274 = vadd.f32 %v1810, %v2210
    %v2275 = vadd.f32 %v1811, %v2212
    %v2276 = vadd.f32 %v1812, %v2214
    %v2277 = vadd.f32 %v1813, %v2216
    %v2278 = vadd.f32 %v1814, %v2220
    %v2279 = vadd.f32 %v1815, %v2222
    %v2280 = vadd.f32 %v1816, %v2224
    %v2281 = vadd.f32 %v1817, %v2226
    %v2282 = vadd.f32 %v1818, %v2230
    %v2283 = vadd.f32 %v1819, %v2232
    %v2284 = vadd.f32 %v1820, %v2234
    %v2285 = vadd.f32 %v1821, %v2236
    %v2286 = vmax.f32 %v2008, %v2238
    %v2287 = vmax.f32 %v2009, %v2239
    %v2288 = vmax.f32 %v2010, %v2240
    %v2289 = vmax.f32 %v2011, %v2241
    %v2290 = vmax.f32 %v2012, %v2242
    %v2291 = vmax.f32 %v2013, %v2243
    %v2292 = vmax.f32 %v2014, %v2244
    %v2293 = vmax.f32 %v2015, %v2245
    %v2294 = vmax.f32 %v2016, %v2246
    %v2295 = vmax.f32 %v2017, %v2247
    %v2296 = vmax.f32 %v2018, %v2248
    %v2297 = vmax.f32 %v2019, %v2249
    %v2298 = vmax.f32 %v2020, %v2250
    %v2299 = vmax.f32 %v2021, %v2251
    %v2300 = vmax.f32 %v2022, %v2252
    %v2301 = vmax.f32 %v2023, %v2253
    %v2302 = vmax.f32 %v2024, %v2254
    %v2303 = vmax.f32 %v2025, %v2255
    %v2304 = vmax.f32 %v2026, %v2256
    %v2305 = vmax.f32 %v2027, %v2257
    %v2306 = vmax.f32 %v2028, %v2258
    %v2307 = vmax.f32 %v2029, %v2259
    %v2308 = vmax.f32 %v2030, %v2260
    %v2309 = vmax.f32 %v2031, %v2261
    %v2310 = vmax.f32 %v2032, %v2262
    %v2311 = vmax.f32 %v2033, %v2263
    %v2312 = vmax.f32 %v2034, %v2264
    %v2313 = vmax.f32 %v2035, %v2265
    %v2314 = vmax.f32 %v2036, %v2266
    %v2315 = vmax.f32 %v2037, %v2267
    %v2316 = vmax.f32 %v2038, %v2268
    %v2317 = vmax.f32 %v2039, %v2269
    %v2318 = vmax.f32 %v2040, %v2270
    %v2319 = vmax.f32 %v2041, %v2271
    %v2320 = vmax.f32 %v2042, %v2272
    %v2321 = vmax.f32 %v2043, %v2273
    %v2322 = vmax.f32 %v2044, %v2274
    %v2323 = vmax.f32 %v2045, %v2275
    %v2324 = vmax.f32 %v2046, %v2276
    %v2325 = vmax.f32 %v2047, %v2277
    %v2326 = vmax.f32 %v2048, %v2278
    %v2327 = vmax.f32 %v2049, %v2279
    %v2328 = vmax.f32 %v2050, %v2280
    %v2329 = vmax.f32 %v2051, %v2281
    %v2330 = vmax.f32 %v2052, %v2282
    %v2331 = vmax.f32 %v2053, %v2283
    %v2332 = vmax.f32 %v2054, %v2284
    %v2333 = vmax.f32 %v2055, %v2285
    %v2334 = vmax.f32 %v2286, %v2288
    %v2335 = vmax.f32 %v2287, %v2289
    %v2336 = vmax.f32 %v2290, %v2292
    %v2337 = vmax.f32 %v2291, %v2293
    %v2338 = vmax.f32 %v2294, %v2296
    %v2339 = vmax.f32 %v2295, %v2297
    %v2340 = vmax.f32 %v2298, %v2300
    %v2341 = vmax.f32 %v2299, %v2301
    %v2342 = vmax.f32 %v2302, %v2304
    %v2343 = vmax.f32 %v2303, %v2305
    %v2344 = vmax.f32 %v2306, %v2308
    %v2345 = vmax.f32 %v2307, %v2309
    %v2346 = vmax.f32 %v2310, %v2312
    %v2347 = vmax.f32 %v2311, %v2313
    %v2348 = vmax.f32 %v2314, %v2316
    %v2349 = vmax.f32 %v2315, %v2317
    %v2350 = vmax.f32 %v2318, %v2320
    %v2351 = vmax.f32 %v2319, %v2321
    %v2352 = vmax.f32 %v2322, %v2324
    %v2353 = vmax.f32 %v2323, %v2325
    %v2354 = vmax.f32 %v2326, %v2328
    %v2355 = vmax.f32 %v2327, %v2329
    %v2356 = vmax.f32 %v2330, %v2332
    %v2357 = vmax.f32 %v2331, %v2333
    %v2358 = vld [vmem:[%s2] sm:$0x3]
    %v2360 = vlaneseq
    %v2361 = vshrl.u32 %v2360, 7
    %v2362 = vsub.s32 0, %v2361
    %v2363 = vrot.slane %v2358, %v2362
    %v2364 = vlaneseq
    %v2365 = vshrl.u32 %v2364, 7
    %v2366 = vsub.s32 1, %v2365
    %v2367 = vrot.slane %v2358, %v2366
    %v2370 = vadd.f32 %v2334, %v2363
    %v2371 = vadd.f32 %v2335, %v2367
    %v2372 = vadd.f32 %v2336, %v2363
    %v2373 = vadd.f32 %v2337, %v2367
    %v2374 = vadd.f32 %v2338, %v2363
    %v2375 = vadd.f32 %v2339, %v2367
    %v2376 = vadd.f32 %v2340, %v2363
    %v2377 = vadd.f32 %v2341, %v2367
    %v2378 = vadd.f32 %v2342, %v2363
    %v2379 = vadd.f32 %v2343, %v2367
    %v2380 = vadd.f32 %v2344, %v2363
    %v2381 = vadd.f32 %v2345, %v2367
    %v2382 = vadd.f32 %v2346, %v2363
    %v2383 = vadd.f32 %v2347, %v2367
    %v2384 = vadd.f32 %v2348, %v2363
    %v2385 = vadd.f32 %v2349, %v2367
    %v2386 = vadd.f32 %v2350, %v2363
    %v2387 = vadd.f32 %v2351, %v2367
    %v2388 = vadd.f32 %v2352, %v2363
    %v2389 = vadd.f32 %v2353, %v2367
    %v2390 = vadd.f32 %v2354, %v2363
    %v2391 = vadd.f32 %v2355, %v2367
    %v2392 = vadd.f32 %v2356, %v2363
    %v2393 = vadd.f32 %v2357, %v2367
    %v2394 = vmax.f32 %v2370, 0.0
    %v2395 = vmax.f32 %v2371, 0.0
    %v2396 = vmax.f32 %v2372, 0.0
    %v2397 = vmax.f32 %v2373, 0.0
    %v2398 = vmax.f32 %v2374, 0.0
    %v2399 = vmax.f32 %v2375, 0.0
    %v2400 = vmax.f32 %v2376, 0.0
    %v2401 = vmax.f32 %v2377, 0.0
    %v2402 = vmax.f32 %v2378, 0.0
    %v2403 = vmax.f32 %v2379, 0.0
    %v2404 = vmax.f32 %v2380, 0.0
    %v2405 = vmax.f32 %v2381, 0.0
    %v2406 = vmax.f32 %v2382, 0.0
    %v2407 = vmax.f32 %v2383, 0.0
    %v2408 = vmax.f32 %v2384, 0.0
    %v2409 = vmax.f32 %v2385, 0.0
    %v2410 = vmax.f32 %v2386, 0.0
    %v2411 = vmax.f32 %v2387, 0.0
    %v2412 = vmax.f32 %v2388, 0.0
    %v2413 = vmax.f32 %v2389, 0.0
    %v2414 = vmax.f32 %v2390, 0.0
    %v2415 = vmax.f32 %v2391, 0.0
    %v2416 = vmax.f32 %v2392, 0.0
    %v2417 = vmax.f32 %v2393, 0.0
    %v2418 = vpack.c.bf16 %v2396, %v2394
    %v2419 = vpack.c.bf16 %v2397, %v2395
    %v2420 = vpack.c.bf16 %v2400, %v2398
    %v2421 = vpack.c.bf16 %v2401, %v2399
    %v2422 = vpack.c.bf16 %v2404, %v2402
    %v2423 = vpack.c.bf16 %v2405, %v2403
    %v2424 = vpack.c.bf16 %v2408, %v2406
    %v2425 = vpack.c.bf16 %v2409, %v2407
    %v2426 = vld [vmem:[%s3] sm:$0xf]
    %v2427 = vld [vmem:[%s3 + $0x4] sm:$0xf]
    %v2428 = vld [vmem:[%s3 + $0x8] sm:$0xf]
    %v2429 = vld [vmem:[%s3 + $0xc] sm:$0xf]
    %v2430 = vld [vmem:[%s3 + $0x10] sm:$0xf]
    %v2431 = vld [vmem:[%s3 + $0x14] sm:$0xf]
    %v2432 = vld [vmem:[%s3 + $0x18] sm:$0xf]
    %v2433 = vld [vmem:[%s3 + $0x1c] sm:$0xf]
    %v2434 = vld [vmem:[%s3 + $0x20] sm:$0xf]
    %v2435 = vld [vmem:[%s3 + $0x24] sm:$0xf]
    %v2436 = vld [vmem:[%s3 + $0x28] sm:$0xf]
    %v2437 = vld [vmem:[%s3 + $0x2c] sm:$0xf]
    %v2438 = vld [vmem:[%s3 + $0x30] sm:$0xf]
    %v2439 = vld [vmem:[%s3 + $0x34] sm:$0xf]
    %v2440 = vld [vmem:[%s3 + $0x38] sm:$0xf]
    %v2441 = vld [vmem:[%s3 + $0x3c] sm:$0xf]
    %v2442 = vld [vmem:[%s3 + $0x40] sm:$0xf]
    %v2443 = vld [vmem:[%s3 + $0x44] sm:$0xf]
    %v2444 = vld [vmem:[%s3 + $0x48] sm:$0xf]
    %v2445 = vld [vmem:[%s3 + $0x4c] sm:$0xf]
    %v2446 = vld [vmem:[%s3 + $0x50] sm:$0xf]
    %v2447 = vld [vmem:[%s3 + $0x54] sm:$0xf]
    %v2448 = vld [vmem:[%s3 + $0x58] sm:$0xf]
    %v2449 = vld [vmem:[%s3 + $0x5c] sm:$0xf]
    %s2450 = scalar_lea.vmem %s3, 480
    %v2451 = vld [vmem:[%s2450] sm:$0xf]
    %v2452 = vld [vmem:[%s2450 + $0x4] sm:$0xf]
    %v2453 = vld [vmem:[%s2450 + $0x8] sm:$0xf]
    %v2454 = vld [vmem:[%s2450 + $0xc] sm:$0xf]
    %v2455 = vld [vmem:[%s2450 + $0x10] sm:$0xf]
    %v2456 = vld [vmem:[%s2450 + $0x14] sm:$0xf]
    %v2457 = vld [vmem:[%s2450 + $0x18] sm:$0xf]
    %v2458 = vld [vmem:[%s2450 + $0x1c] sm:$0xf]
    %v2459 = vld [vmem:[%s2450 + $0x20] sm:$0xf]
    %v2460 = vld [vmem:[%s2450 + $0x24] sm:$0xf]
    %v2461 = vld [vmem:[%s2450 + $0x28] sm:$0xf]
    %v2462 = vld [vmem:[%s2450 + $0x2c] sm:$0xf]
    %v2463 = vld [vmem:[%s2450 + $0x30] sm:$0xf]
    %v2464 = vld [vmem:[%s2450 + $0x34] sm:$0xf]
    %v2465 = vld [vmem:[%s2450 + $0x38] sm:$0xf]
    %v2466 = vld [vmem:[%s2450 + $0x3c] sm:$0xf]
    %v2467 = vld [vmem:[%s2450 + $0x40] sm:$0xf]
    %v2468 = vld [vmem:[%s2450 + $0x44] sm:$0xf]
    %v2469 = vld [vmem:[%s2450 + $0x48] sm:$0xf]
    %v2470 = vld [vmem:[%s2450 + $0x4c] sm:$0xf]
    %v2471 = vld [vmem:[%s2450 + $0x50] sm:$0xf]
    %v2472 = vld [vmem:[%s2450 + $0x54] sm:$0xf]
    %v2473 = vld [vmem:[%s2450 + $0x58] sm:$0xf]
    %v2474 = vld [vmem:[%s2450 + $0x5c] sm:$0xf]
    %v2475 = vpack.c.bf16 %v2398, %v2396
    %v2476 = vpack.c.bf16 %v2399, %v2397
    %v2477 = vpack.c.bf16 %v2402, %v2400
    %v2478 = vpack.c.bf16 %v2403, %v2401
    %v2479 = vpack.c.bf16 %v2406, %v2404
    %v2480 = vpack.c.bf16 %v2407, %v2405
    %v2481 = vpack.c.bf16 %v2410, %v2408
    %v2482 = vpack.c.bf16 %v2411, %v2409
    %s2483 = scalar_lea.vmem %s3, 96
    %v2484 = vld [vmem:[%s2483] sm:$0xf]
    %v2485 = vld [vmem:[%s2483 + $0x4] sm:$0xf]
    %v2486 = vld [vmem:[%s2483 + $0x8] sm:$0xf]
    %v2487 = vld [vmem:[%s2483 + $0xc] sm:$0xf]
    %v2488 = vld [vmem:[%s2483 + $0x10] sm:$0xf]
    %v2489 = vld [vmem:[%s2483 + $0x14] sm:$0xf]
    %v2490 = vld [vmem:[%s2483 + $0x18] sm:$0xf]
    %v2491 = vld [vmem:[%s2483 + $0x1c] sm:$0xf]
    %v2492 = vld [vmem:[%s2483 + $0x20] sm:$0xf]
    %v2493 = vld [vmem:[%s2483 + $0x24] sm:$0xf]
    %v2494 = vld [vmem:[%s2483 + $0x28] sm:$0xf]
    %v2495 = vld [vmem:[%s2483 + $0x2c] sm:$0xf]
    %v2496 = vld [vmem:[%s2483 + $0x30] sm:$0xf]
    %v2497 = vld [vmem:[%s2483 + $0x34] sm:$0xf]
    %v2498 = vld [vmem:[%s2483 + $0x38] sm:$0xf]
    %v2499 = vld [vmem:[%s2483 + $0x3c] sm:$0xf]
    %v2500 = vld [vmem:[%s2483 + $0x40] sm:$0xf]
    %v2501 = vld [vmem:[%s2483 + $0x44] sm:$0xf]
    %v2502 = vld [vmem:[%s2483 + $0x48] sm:$0xf]
    %v2503 = vld [vmem:[%s2483 + $0x4c] sm:$0xf]
    %v2504 = vld [vmem:[%s2483 + $0x50] sm:$0xf]
    %v2505 = vld [vmem:[%s2483 + $0x54] sm:$0xf]
    %v2506 = vld [vmem:[%s2483 + $0x58] sm:$0xf]
    %v2507 = vld [vmem:[%s2483 + $0x5c] sm:$0xf]
    %v2532 = vunpack.c.l.b16 %v2484
    %v2533 = vunpack.c.l.b16 %v2485
    %v2534 = vunpack.c.l.b16 %v2486
    %v2535 = vunpack.c.l.b16 %v2487
    %v2536 = vunpack.c.l.b16 %v2488
    %v2537 = vunpack.c.l.b16 %v2489
    %v2538 = vunpack.c.l.b16 %v2490
    %v2539 = vunpack.c.l.b16 %v2491
    %v2540 = vunpack.c.l.b16 %v2492
    %v2541 = vunpack.c.l.b16 %v2493
    %v2542 = vunpack.c.l.b16 %v2494
    %v2543 = vunpack.c.l.b16 %v2495
    %v2544 = vunpack.c.l.b16 %v2496
    %v2545 = vunpack.c.l.b16 %v2497
    %v2546 = vunpack.c.l.b16 %v2498
    %v2547 = vunpack.c.l.b16 %v2499
    %v2548 = vunpack.c.l.b16 %v2500
    %v2549 = vunpack.c.l.b16 %v2501
    %v2550 = vunpack.c.l.b16 %v2502
    %v2551 = vunpack.c.l.b16 %v2503
    %v2552 = vunpack.c.l.b16 %v2504
    %v2553 = vunpack.c.l.b16 %v2505
    %v2554 = vunpack.c.l.b16 %v2506
    %v2555 = vunpack.c.l.b16 %v2507
    %v2556 = vpack.c.b16 %v2533, %v2532
    %v2557 = vpack.c.b16 %v2535, %v2534
    %v2558 = vpack.c.b16 %v2537, %v2536
    %v2559 = vpack.c.b16 %v2539, %v2538
    %v2560 = vpack.c.b16 %v2541, %v2540
    %v2561 = vpack.c.b16 %v2543, %v2542
    %v2562 = vpack.c.b16 %v2545, %v2544
    %v2563 = vpack.c.b16 %v2547, %v2546
    %v2564 = vpack.c.b16 %v2549, %v2548
    %v2565 = vpack.c.b16 %v2551, %v2550
    %v2566 = vpack.c.b16 %v2553, %v2552
    %v2567 = vpack.c.b16 %v2555, %v2554
    %vm2580 = vcmask 523264
    %v2582 = vsel %vm2580, %v2476, 0
    %v2585 = vsel %vm2580, %v2478, 0
    %v2588 = vsel %vm2580, %v2480, 0
    %v2591 = vsel %vm2580, %v2482, 0
    %2593 = vmatprep.subr.bf16.mxu0 0
    %2594 = vmatpush1.bf16.msra.mxu0 %v2556
    %2595 = vmatprep.subr.bf16.mxu0 0
    %2596 = vmatpush1.bf16.msra.mxu0 %v2557
    %2597 = vmatprep.subr.bf16.mxu0 0
    %2598 = vmatpush1.bf16.msra.mxu0 %v2558
    %2599 = vmatprep.subr.bf16.mxu0 0
    %2600 = vmatpush1.bf16.msra.mxu0 %v2559
    %2601 = vmatprep.subr.bf16.mxu0 0
    %2602 = vmatpush1.bf16.msra.mxu0 %v2560
    %2603 = vmatprep.subr.bf16.mxu0 0
    %2604 = vmatpush1.bf16.msra.mxu0 %v2561
    %2605 = vmatprep.subr.bf16.mxu0 0
    %2606 = vmatpush1.bf16.msra.mxu0 %v2562
    %2607 = vmatprep.subr.bf16.mxu0 0
    %2608 = vmatpush1.bf16.msra.mxu0 %v2563
    %2609 = vmatprep.subr.bf16.mxu0 0
    %2610 = vmatpush1.bf16.msra.mxu0 %v2564
    %2611 = vmatprep.subr.bf16.mxu0 0
    %2612 = vmatpush1.bf16.msra.mxu0 %v2565
    %2613 = vmatprep.subr.bf16.mxu0 0
    %2614 = vmatpush1.bf16.msra.mxu0 %v2566
    %2615 = vmatprep.subr.bf16.mxu0 0
    %2616 = vmatpush1.bf16.msra.mxu0 %v2567
    %2617 = vmatprep.subr.bf16.mxu0 0
    %2618 = vmatpush1.bf16.msra.mxu0 0
    %2619 = vmatprep.subr.bf16.mxu0 0
    %2620 = vmatpush1.bf16.msra.mxu0 0
    %2621 = vmatprep.subr.bf16.mxu0 0
    %2622 = vmatpush1.bf16.msra.mxu0 0
    %2623 = vmatprep.subr.bf16.mxu0 0
    %2624 = vmatpush1.bf16.msra.mxu0 0
    %2625 = vmatprep.mubr.bf16.mxu0 %v2582
    %2626 = vmatmul.mubr.bf16.gmra.mrb[0].mxu0 %v2475
    %v2627 = vpop.f32.mrb[0].mxu0
    %v2628 = vadd.f32 0.0, %v2627
    %v2629 = vpop.f32.mrb[0].mxu0
    %v2630 = vpop.f32.mrb[0].mxu0
    %v2631 = vadd.f32 0.0, %v2630
    %v2632 = vpop.f32.mrb[0].mxu0
    %2633 = vmatprep.mubr.bf16.mxu0 %v2585
    %2634 = vmatmul.mubr.bf16.gmra.mrb[0].mxu0 %v2477
    %v2635 = vpop.f32.mrb[0].mxu0
    %v2636 = vadd.f32 0.0, %v2635
    %v2637 = vpop.f32.mrb[0].mxu0
    %v2638 = vpop.f32.mrb[0].mxu0
    %v2639 = vadd.f32 0.0, %v2638
    %v2640 = vpop.f32.mrb[0].mxu0
    %2641 = vmatprep.mubr.bf16.mxu0 %v2588
    %2642 = vmatmul.mubr.bf16.gmra.mrb[0].mxu0 %v2479
    %v2643 = vpop.f32.mrb[0].mxu0
    %v2644 = vadd.f32 0.0, %v2643
    %v2645 = vpop.f32.mrb[0].mxu0
    %v2646 = vpop.f32.mrb[0].mxu0
    %v2647 = vadd.f32 0.0, %v2646
    %v2648 = vpop.f32.mrb[0].mxu0
    %2649 = vmatprep.mubr.bf16.mxu0 %v2591
    %2650 = vmatmul.mubr.bf16.gmra.mrb[0].mxu0 %v2481
    %v2651 = vpop.f32.mrb[0].mxu0
    %v2652 = vadd.f32 0.0, %v2651
    %v2653 = vpop.f32.mrb[0].mxu0
    %v2654 = vpop.f32.mrb[0].mxu0
    %v2655 = vadd.f32 0.0, %v2654
    %v2656 = vpop.f32.mrb[0].mxu0
    %2657 = vdwg.mxu0
    %v2682 = vunpack.c.l.b16 %v2426
    %v2683 = vunpack.c.l.b16 %v2427
    %v2684 = vunpack.c.l.b16 %v2428
    %v2685 = vunpack.c.l.b16 %v2429
    %v2686 = vunpack.c.l.b16 %v2430
    %v2687 = vunpack.c.l.b16 %v2431
    %v2688 = vunpack.c.l.b16 %v2432
    %v2689 = vunpack.c.l.b16 %v2433
    %v2690 = vunpack.c.l.b16 %v2434
    %v2691 = vunpack.c.l.b16 %v2435
    %v2692 = vunpack.c.l.b16 %v2436
    %v2693 = vunpack.c.l.b16 %v2437
    %v2694 = vunpack.c.l.b16 %v2438
    %v2695 = vunpack.c.l.b16 %v2439
    %v2696 = vunpack.c.l.b16 %v2440
    %v2697 = vunpack.c.l.b16 %v2441
    %v2698 = vunpack.c.l.b16 %v2442
    %v2699 = vunpack.c.l.b16 %v2443
    %v2700 = vunpack.c.l.b16 %v2444
    %v2701 = vunpack.c.l.b16 %v2445
    %v2702 = vunpack.c.l.b16 %v2446
    %v2703 = vunpack.c.l.b16 %v2447
    %v2704 = vunpack.c.l.b16 %v2448
    %v2705 = vunpack.c.l.b16 %v2449
    %v2706 = vpack.c.b16 %v2683, %v2682
    %v2707 = vpack.c.b16 %v2685, %v2684
    %v2708 = vpack.c.b16 %v2687, %v2686
    %v2709 = vpack.c.b16 %v2689, %v2688
    %v2710 = vpack.c.b16 %v2691, %v2690
    %v2711 = vpack.c.b16 %v2693, %v2692
    %v2712 = vpack.c.b16 %v2695, %v2694
    %v2713 = vpack.c.b16 %v2697, %v2696
    %v2714 = vpack.c.b16 %v2699, %v2698
    %v2715 = vpack.c.b16 %v2701, %v2700
    %v2716 = vpack.c.b16 %v2703, %v2702
    %v2717 = vpack.c.b16 %v2705, %v2704
    %v2731 = vsel %vm2580, %v2419, 0
    %v2734 = vsel %vm2580, %v2421, 0
    %v2737 = vsel %vm2580, %v2423, 0
    %v2740 = vsel %vm2580, %v2425, 0
    %2742 = vmatprep.subr.bf16.mxu0 0
    %2743 = vmatpush1.bf16.msra.mxu0 %v2706
    %2744 = vmatprep.subr.bf16.mxu0 0
    %2745 = vmatpush1.bf16.msra.mxu0 %v2707
    %2746 = vmatprep.subr.bf16.mxu0 0
    %2747 = vmatpush1.bf16.msra.mxu0 %v2708
    %2748 = vmatprep.subr.bf16.mxu0 0
    %2749 = vmatpush1.bf16.msra.mxu0 %v2709
    %2750 = vmatprep.subr.bf16.mxu0 0
    %2751 = vmatpush1.bf16.msra.mxu0 %v2710
    %2752 = vmatprep.subr.bf16.mxu0 0
    %2753 = vmatpush1.bf16.msra.mxu0 %v2711
    %2754 = vmatprep.subr.bf16.mxu0 0
    %2755 = vmatpush1.bf16.msra.mxu0 %v2712
    %2756 = vmatprep.subr.bf16.mxu0 0
    %2757 = vmatpush1.bf16.msra.mxu0 %v2713
    %2758 = vmatprep.subr.bf16.mxu0 0
    %2759 = vmatpush1.bf16.msra.mxu0 %v2714
    %2760 = vmatprep.subr.bf16.mxu0 0
    %2761 = vmatpush1.bf16.msra.mxu0 %v2715
    %2762 = vmatprep.subr.bf16.mxu0 0
    %2763 = vmatpush1.bf16.msra.mxu0 %v2716
    %2764 = vmatprep.subr.bf16.mxu0 0
    %2765 = vmatpush1.bf16.msra.mxu0 %v2717
    %2766 = vmatprep.subr.bf16.mxu0 0
    %2767 = vmatpush1.bf16.msra.mxu0 0
    %2768 = vmatprep.subr.bf16.mxu0 0
    %2769 = vmatpush1.bf16.msra.mxu0 0
    %2770 = vmatprep.subr.bf16.mxu0 0
    %2771 = vmatpush1.bf16.msra.mxu0 0
    %2772 = vmatprep.subr.bf16.mxu0 0
    %2773 = vmatpush1.bf16.msra.mxu0 0
    %2774 = vmatprep.mubr.bf16.mxu0 %v2731
    %2775 = vmatmul.mubr.bf16.gmra.mrb[0].mxu0 %v2418
    %v2776 = vpop.f32.mrb[0].mxu0
    %v2777 = vadd.f32 %v2628, %v2776
    %v2778 = vpop.f32.mrb[0].mxu0
    %v2779 = vpop.f32.mrb[0].mxu0
    %v2780 = vadd.f32 %v2631, %v2779
    %v2781 = vpop.f32.mrb[0].mxu0
    %2782 = vmatprep.mubr.bf16.mxu0 %v2734
    %2783 = vmatmul.mubr.bf16.gmra.mrb[0].mxu0 %v2420
    %v2784 = vpop.f32.mrb[0].mxu0
    %v2785 = vadd.f32 %v2636, %v2784
    %v2786 = vpop.f32.mrb[0].mxu0
    %v2787 = vpop.f32.mrb[0].mxu0
    %v2788 = vadd.f32 %v2639, %v2787
    %v2789 = vpop.f32.mrb[0].mxu0
    %2790 = vmatprep.mubr.bf16.mxu0 %v2737
    %2791 = vmatmul.mubr.bf16.gmra.mrb[0].mxu0 %v2422
    %v2792 = vpop.f32.mrb[0].mxu0
    %v2793 = vadd.f32 %v2644, %v2792
    %v2794 = vpop.f32.mrb[0].mxu0
    %v2795 = vpop.f32.mrb[0].mxu0
    %v2796 = vadd.f32 %v2647, %v2795
    %v2797 = vpop.f32.mrb[0].mxu0
    %2798 = vmatprep.mubr.bf16.mxu0 %v2740
    %2799 = vmatmul.mubr.bf16.gmra.mrb[0].mxu0 %v2424
    %v2800 = vpop.f32.mrb[0].mxu0
    %v2801 = vadd.f32 %v2652, %v2800
    %v2802 = vpop.f32.mrb[0].mxu0
    %v2803 = vpop.f32.mrb[0].mxu0
    %v2804 = vadd.f32 %v2655, %v2803
    %v2805 = vpop.f32.mrb[0].mxu0
    %2806 = vdwg.mxu0
    %s2807 = scalar_lea.vmem %s3, 576
    %v2808 = vld [vmem:[%s2807] sm:$0xf]
    %v2809 = vld [vmem:[%s2807 + $0x4] sm:$0xf]
    %v2810 = vld [vmem:[%s2807 + $0x8] sm:$0xf]
    %v2811 = vld [vmem:[%s2807 + $0xc] sm:$0xf]
    %v2812 = vld [vmem:[%s2807 + $0x10] sm:$0xf]
    %v2813 = vld [vmem:[%s2807 + $0x14] sm:$0xf]
    %v2814 = vld [vmem:[%s2807 + $0x18] sm:$0xf]
    %v2815 = vld [vmem:[%s2807 + $0x1c] sm:$0xf]
    %v2816 = vld [vmem:[%s2807 + $0x20] sm:$0xf]
    %v2817 = vld [vmem:[%s2807 + $0x24] sm:$0xf]
    %v2818 = vld [vmem:[%s2807 + $0x28] sm:$0xf]
    %v2819 = vld [vmem:[%s2807 + $0x2c] sm:$0xf]
    %v2820 = vld [vmem:[%s2807 + $0x30] sm:$0xf]
    %v2821 = vld [vmem:[%s2807 + $0x34] sm:$0xf]
    %v2822 = vld [vmem:[%s2807 + $0x38] sm:$0xf]
    %v2823 = vld [vmem:[%s2807 + $0x3c] sm:$0xf]
    %v2824 = vld [vmem:[%s2807 + $0x40] sm:$0xf]
    %v2825 = vld [vmem:[%s2807 + $0x44] sm:$0xf]
    %v2826 = vld [vmem:[%s2807 + $0x48] sm:$0xf]
    %v2827 = vld [vmem:[%s2807 + $0x4c] sm:$0xf]
    %v2828 = vld [vmem:[%s2807 + $0x50] sm:$0xf]
    %v2829 = vld [vmem:[%s2807 + $0x54] sm:$0xf]
    %v2830 = vld [vmem:[%s2807 + $0x58] sm:$0xf]
    %v2831 = vld [vmem:[%s2807 + $0x5c] sm:$0xf]
    %v2856 = vunpack.c.l.b16 %v2808
    %v2857 = vunpack.c.l.b16 %v2809
    %v2858 = vunpack.c.l.b16 %v2810
    %v2859 = vunpack.c.l.b16 %v2811
    %v2860 = vunpack.c.l.b16 %v2812
    %v2861 = vunpack.c.l.b16 %v2813
    %v2862 = vunpack.c.l.b16 %v2814
    %v2863 = vunpack.c.l.b16 %v2815
    %v2864 = vunpack.c.l.b16 %v2816
    %v2865 = vunpack.c.l.b16 %v2817
    %v2866 = vunpack.c.l.b16 %v2818
    %v2867 = vunpack.c.l.b16 %v2819
    %v2868 = vunpack.c.l.b16 %v2820
    %v2869 = vunpack.c.l.b16 %v2821
    %v2870 = vunpack.c.l.b16 %v2822
    %v2871 = vunpack.c.l.b16 %v2823
    %v2872 = vunpack.c.l.b16 %v2824
    %v2873 = vunpack.c.l.b16 %v2825
    %v2874 = vunpack.c.l.b16 %v2826
    %v2875 = vunpack.c.l.b16 %v2827
    %v2876 = vunpack.c.l.b16 %v2828
    %v2877 = vunpack.c.l.b16 %v2829
    %v2878 = vunpack.c.l.b16 %v2830
    %v2879 = vunpack.c.l.b16 %v2831
    %v2880 = vpack.c.b16 %v2857, %v2856
    %v2881 = vpack.c.b16 %v2859, %v2858
    %v2882 = vpack.c.b16 %v2861, %v2860
    %v2883 = vpack.c.b16 %v2863, %v2862
    %v2884 = vpack.c.b16 %v2865, %v2864
    %v2885 = vpack.c.b16 %v2867, %v2866
    %v2886 = vpack.c.b16 %v2869, %v2868
    %v2887 = vpack.c.b16 %v2871, %v2870
    %v2888 = vpack.c.b16 %v2873, %v2872
    %v2889 = vpack.c.b16 %v2875, %v2874
    %v2890 = vpack.c.b16 %v2877, %v2876
    %v2891 = vpack.c.b16 %v2879, %v2878
    %2904 = vmatprep.subr.bf16.mxu0 0
    %2905 = vmatpush1.bf16.msra.mxu0 %v2880
    %2906 = vmatprep.subr.bf16.mxu0 0
    %2907 = vmatpush1.bf16.msra.mxu0 %v2881
    %2908 = vmatprep.subr.bf16.mxu0 0
    %2909 = vmatpush1.bf16.msra.mxu0 %v2882
    %2910 = vmatprep.subr.bf16.mxu0 0
    %2911 = vmatpush1.bf16.msra.mxu0 %v2883
    %2912 = vmatprep.subr.bf16.mxu0 0
    %2913 = vmatpush1.bf16.msra.mxu0 %v2884
    %2914 = vmatprep.subr.bf16.mxu0 0
    %2915 = vmatpush1.bf16.msra.mxu0 %v2885
    %2916 = vmatprep.subr.bf16.mxu0 0
    %2917 = vmatpush1.bf16.msra.mxu0 %v2886
    %2918 = vmatprep.subr.bf16.mxu0 0
    %2919 = vmatpush1.bf16.msra.mxu0 %v2887
    %2920 = vmatprep.subr.bf16.mxu0 0
    %2921 = vmatpush1.bf16.msra.mxu0 %v2888
    %2922 = vmatprep.subr.bf16.mxu0 0
    %2923 = vmatpush1.bf16.msra.mxu0 %v2889
    %2924 = vmatprep.subr.bf16.mxu0 0
    %2925 = vmatpush1.bf16.msra.mxu0 %v2890
    %2926 = vmatprep.subr.bf16.mxu0 0
    %2927 = vmatpush1.bf16.msra.mxu0 %v2891
    %2928 = vmatprep.subr.bf16.mxu0 0
    %2929 = vmatpush1.bf16.msra.mxu0 0
    %2930 = vmatprep.subr.bf16.mxu0 0
    %2931 = vmatpush1.bf16.msra.mxu0 0
    %2932 = vmatprep.subr.bf16.mxu0 0
    %2933 = vmatpush1.bf16.msra.mxu0 0
    %2934 = vmatprep.subr.bf16.mxu0 0
    %2935 = vmatpush1.bf16.msra.mxu0 0
    %2936 = vmatprep.mubr.bf16.mxu0 %v2582
    %2937 = vmatmul.mubr.bf16.gmra.mrb[0].mxu0 %v2475
    %v2938 = vpop.f32.mrb[0].mxu0
    %v2939 = vadd.f32 0.0, %v2938
    %v2940 = vpop.f32.mrb[0].mxu0
    %v2941 = vpop.f32.mrb[0].mxu0
    %v2942 = vadd.f32 0.0, %v2941
    %v2943 = vpop.f32.mrb[0].mxu0
    %2944 = vmatprep.mubr.bf16.mxu0 %v2585
    %2945 = vmatmul.mubr.bf16.gmra.mrb[0].mxu0 %v2477
    %v2946 = vpop.f32.mrb[0].mxu0
    %v2947 = vadd.f32 0.0, %v2946
    %v2948 = vpop.f32.mrb[0].mxu0
    %v2949 = vpop.f32.mrb[0].mxu0
    %v2950 = vadd.f32 0.0, %v2949
    %v2951 = vpop.f32.mrb[0].mxu0
    %2952 = vmatprep.mubr.bf16.mxu0 %v2588
    %2953 = vmatmul.mubr.bf16.gmra.mrb[0].mxu0 %v2479
    %v2954 = vpop.f32.mrb[0].mxu0
    %v2955 = vadd.f32 0.0, %v2954
    %v2956 = vpop.f32.mrb[0].mxu0
    %v2957 = vpop.f32.mrb[0].mxu0
    %v2958 = vadd.f32 0.0, %v2957
    %v2959 = vpop.f32.mrb[0].mxu0
    %2960 = vmatprep.mubr.bf16.mxu0 %v2591
    %2961 = vmatmul.mubr.bf16.gmra.mrb[0].mxu0 %v2481
    %v2962 = vpop.f32.mrb[0].mxu0
    %v2963 = vadd.f32 0.0, %v2962
    %v2964 = vpop.f32.mrb[0].mxu0
    %v2965 = vpop.f32.mrb[0].mxu0
    %v2966 = vadd.f32 0.0, %v2965
    %v2967 = vpop.f32.mrb[0].mxu0
    %2968 = vdwg.mxu0
    %v2993 = vunpack.c.l.b16 %v2451
    %v2994 = vunpack.c.l.b16 %v2452
    %v2995 = vunpack.c.l.b16 %v2453
    %v2996 = vunpack.c.l.b16 %v2454
    %v2997 = vunpack.c.l.b16 %v2455
    %v2998 = vunpack.c.l.b16 %v2456
    %v2999 = vunpack.c.l.b16 %v2457
    %v3000 = vunpack.c.l.b16 %v2458
    %v3001 = vunpack.c.l.b16 %v2459
    %v3002 = vunpack.c.l.b16 %v2460
    %v3003 = vunpack.c.l.b16 %v2461
    %v3004 = vunpack.c.l.b16 %v2462
    %v3005 = vunpack.c.l.b16 %v2463
    %v3006 = vunpack.c.l.b16 %v2464
    %v3007 = vunpack.c.l.b16 %v2465
    %v3008 = vunpack.c.l.b16 %v2466
    %v3009 = vunpack.c.l.b16 %v2467
    %v3010 = vunpack.c.l.b16 %v2468
    %v3011 = vunpack.c.l.b16 %v2469
    %v3012 = vunpack.c.l.b16 %v2470
    %v3013 = vunpack.c.l.b16 %v2471
    %v3014 = vunpack.c.l.b16 %v2472
    %v3015 = vunpack.c.l.b16 %v2473
    %v3016 = vunpack.c.l.b16 %v2474
    %v3017 = vpack.c.b16 %v2994, %v2993
    %v3018 = vpack.c.b16 %v2996, %v2995
    %v3019 = vpack.c.b16 %v2998, %v2997
    %v3020 = vpack.c.b16 %v3000, %v2999
    %v3021 = vpack.c.b16 %v3002, %v3001
    %v3022 = vpack.c.b16 %v3004, %v3003
    %v3023 = vpack.c.b16 %v3006, %v3005
    %v3024 = vpack.c.b16 %v3008, %v3007
    %v3025 = vpack.c.b16 %v3010, %v3009
    %v3026 = vpack.c.b16 %v3012, %v3011
    %v3027 = vpack.c.b16 %v3014, %v3013
    %v3028 = vpack.c.b16 %v3016, %v3015
    %3041 = vmatprep.subr.bf16.mxu0 0
    %3042 = vmatpush1.bf16.msra.mxu0 %v3017
    %3043 = vmatprep.subr.bf16.mxu0 0
    %3044 = vmatpush1.bf16.msra.mxu0 %v3018
    %3045 = vmatprep.subr.bf16.mxu0 0
    %3046 = vmatpush1.bf16.msra.mxu0 %v3019
    %3047 = vmatprep.subr.bf16.mxu0 0
    %3048 = vmatpush1.bf16.msra.mxu0 %v3020
    %3049 = vmatprep.subr.bf16.mxu0 0
    %3050 = vmatpush1.bf16.msra.mxu0 %v3021
    %3051 = vmatprep.subr.bf16.mxu0 0
    %3052 = vmatpush1.bf16.msra.mxu0 %v3022
    %3053 = vmatprep.subr.bf16.mxu0 0
    %3054 = vmatpush1.bf16.msra.mxu0 %v3023
    %3055 = vmatprep.subr.bf16.mxu0 0
    %3056 = vmatpush1.bf16.msra.mxu0 %v3024
    %3057 = vmatprep.subr.bf16.mxu0 0
    %3058 = vmatpush1.bf16.msra.mxu0 %v3025
    %3059 = vmatprep.subr.bf16.mxu0 0
    %3060 = vmatpush1.bf16.msra.mxu0 %v3026
    %3061 = vmatprep.subr.bf16.mxu0 0
    %3062 = vmatpush1.bf16.msra.mxu0 %v3027
    %3063 = vmatprep.subr.bf16.mxu0 0
    %3064 = vmatpush1.bf16.msra.mxu0 %v3028
    %3065 = vmatprep.subr.bf16.mxu0 0
    %3066 = vmatpush1.bf16.msra.mxu0 0
    %3067 = vmatprep.subr.bf16.mxu0 0
    %3068 = vmatpush1.bf16.msra.mxu0 0
    %3069 = vmatprep.subr.bf16.mxu0 0
    %3070 = vmatpush1.bf16.msra.mxu0 0
    %3071 = vmatprep.subr.bf16.mxu0 0
    %3072 = vmatpush1.bf16.msra.mxu0 0
    %3073 = vmatprep.mubr.bf16.mxu0 %v2731
    %3074 = vmatmul.mubr.bf16.gmra.mrb[0].mxu0 %v2418
    %v3075 = vpop.f32.mrb[0].mxu0
    %v3076 = vadd.f32 %v2939, %v3075
    %v3077 = vpop.f32.mrb[0].mxu0
    %v3078 = vpop.f32.mrb[0].mxu0
    %v3079 = vadd.f32 %v2942, %v3078
    %v3080 = vpop.f32.mrb[0].mxu0
    %3081 = vmatprep.mubr.bf16.mxu0 %v2734
    %3082 = vmatmul.mubr.bf16.gmra.mrb[0].mxu0 %v2420
    %v3083 = vpop.f32.mrb[0].mxu0
    %v3084 = vadd.f32 %v2947, %v3083
    %v3085 = vpop.f32.mrb[0].mxu0
    %v3086 = vpop.f32.mrb[0].mxu0
    %v3087 = vadd.f32 %v2950, %v3086
    %v3088 = vpop.f32.mrb[0].mxu0
    %3089 = vmatprep.mubr.bf16.mxu0 %v2737
    %3090 = vmatmul.mubr.bf16.gmra.mrb[0].mxu0 %v2422
    %v3091 = vpop.f32.mrb[0].mxu0
    %v3092 = vadd.f32 %v2955, %v3091
    %v3093 = vpop.f32.mrb[0].mxu0
    %v3094 = vpop.f32.mrb[0].mxu0
    %v3095 = vadd.f32 %v2958, %v3094
    %v3096 = vpop.f32.mrb[0].mxu0
    %3097 = vmatprep.mubr.bf16.mxu0 %v2740
    %3098 = vmatmul.mubr.bf16.gmra.mrb[0].mxu0 %v2424
    %v3099 = vpop.f32.mrb[0].mxu0
    %v3100 = vadd.f32 %v2963, %v3099
    %v3101 = vpop.f32.mrb[0].mxu0
    %v3102 = vpop.f32.mrb[0].mxu0
    %v3103 = vadd.f32 %v2966, %v3102
    %v3104 = vpop.f32.mrb[0].mxu0
    %3105 = vdwg.mxu0
    %v3106 = vpack.c.bf16 %v2412, %v2410
    %v3107 = vpack.c.bf16 %v2413, %v2411
    %s3108 = scalar_lea.vmem %s3, 192
    %v3109 = vld [vmem:[%s3108] sm:$0xf]
    %v3110 = vld [vmem:[%s3108 + $0x4] sm:$0xf]
    %v3111 = vld [vmem:[%s3108 + $0x8] sm:$0xf]
    %v3112 = vld [vmem:[%s3108 + $0xc] sm:$0xf]
    %v3113 = vld [vmem:[%s3108 + $0x10] sm:$0xf]
    %v3114 = vld [vmem:[%s3108 + $0x14] sm:$0xf]
    %v3115 = vld [vmem:[%s3108 + $0x18] sm:$0xf]
    %v3116 = vld [vmem:[%s3108 + $0x1c] sm:$0xf]
    %v3117 = vld [vmem:[%s3108 + $0x20] sm:$0xf]
    %v3118 = vld [vmem:[%s3108 + $0x24] sm:$0xf]
    %v3119 = vld [vmem:[%s3108 + $0x28] sm:$0xf]
    %v3120 = vld [vmem:[%s3108 + $0x2c] sm:$0xf]
    %v3121 = vld [vmem:[%s3108 + $0x30] sm:$0xf]
    %v3122 = vld [vmem:[%s3108 + $0x34] sm:$0xf]
    %v3123 = vld [vmem:[%s3108 + $0x38] sm:$0xf]
    %v3124 = vld [vmem:[%s3108 + $0x3c] sm:$0xf]
    %v3125 = vld [vmem:[%s3108 + $0x40] sm:$0xf]
    %v3126 = vld [vmem:[%s3108 + $0x44] sm:$0xf]
    %v3127 = vld [vmem:[%s3108 + $0x48] sm:$0xf]
    %v3128 = vld [vmem:[%s3108 + $0x4c] sm:$0xf]
    %v3129 = vld [vmem:[%s3108 + $0x50] sm:$0xf]
    %v3130 = vld [vmem:[%s3108 + $0x54] sm:$0xf]
    %v3131 = vld [vmem:[%s3108 + $0x58] sm:$0xf]
    %v3132 = vld [vmem:[%s3108 + $0x5c] sm:$0xf]
    %v3157 = vunpack.c.l.b16 %v3109
    %v3158 = vunpack.c.l.b16 %v3110
    %v3159 = vunpack.c.l.b16 %v3111
    %v3160 = vunpack.c.l.b16 %v3112
    %v3161 = vunpack.c.l.b16 %v3113
    %v3162 = vunpack.c.l.b16 %v3114
    %v3163 = vunpack.c.l.b16 %v3115
    %v3164 = vunpack.c.l.b16 %v3116
    %v3165 = vunpack.c.l.b16 %v3117
    %v3166 = vunpack.c.l.b16 %v3118
    %v3167 = vunpack.c.l.b16 %v3119
    %v3168 = vunpack.c.l.b16 %v3120
    %v3169 = vunpack.c.l.b16 %v3121
    %v3170 = vunpack.c.l.b16 %v3122
    %v3171 = vunpack.c.l.b16 %v3123
    %v3172 = vunpack.c.l.b16 %v3124
    %v3173 = vunpack.c.l.b16 %v3125
    %v3174 = vunpack.c.l.b16 %v3126
    %v3175 = vunpack.c.l.b16 %v3127
    %v3176 = vunpack.c.l.b16 %v3128
    %v3177 = vunpack.c.l.b16 %v3129
    %v3178 = vunpack.c.l.b16 %v3130
    %v3179 = vunpack.c.l.b16 %v3131
    %v3180 = vunpack.c.l.b16 %v3132
    %v3181 = vpack.c.b16 %v3158, %v3157
    %v3182 = vpack.c.b16 %v3160, %v3159
    %v3183 = vpack.c.b16 %v3162, %v3161
    %v3184 = vpack.c.b16 %v3164, %v3163
    %v3185 = vpack.c.b16 %v3166, %v3165
    %v3186 = vpack.c.b16 %v3168, %v3167
    %v3187 = vpack.c.b16 %v3170, %v3169
    %v3188 = vpack.c.b16 %v3172, %v3171
    %v3189 = vpack.c.b16 %v3174, %v3173
    %v3190 = vpack.c.b16 %v3176, %v3175
    %v3191 = vpack.c.b16 %v3178, %v3177
    %v3192 = vpack.c.b16 %v3180, %v3179
    %v3206 = vsel %vm2580, %v3107, 0
    %3208 = vmatprep.subr.bf16.mxu0 0
    %3209 = vmatpush1.bf16.msra.mxu0 %v3181
    %3210 = vmatprep.subr.bf16.mxu0 0
    %3211 = vmatpush1.bf16.msra.mxu0 %v3182
    %3212 = vmatprep.subr.bf16.mxu0 0
    %3213 = vmatpush1.bf16.msra.mxu0 %v3183
    %3214 = vmatprep.subr.bf16.mxu0 0
    %3215 = vmatpush1.bf16.msra.mxu0 %v3184
    %3216 = vmatprep.subr.bf16.mxu0 0
    %3217 = vmatpush1.bf16.msra.mxu0 %v3185
    %3218 = vmatprep.subr.bf16.mxu0 0
    %3219 = vmatpush1.bf16.msra.mxu0 %v3186
    %3220 = vmatprep.subr.bf16.mxu0 0
    %3221 = vmatpush1.bf16.msra.mxu0 %v3187
    %3222 = vmatprep.subr.bf16.mxu0 0
    %3223 = vmatpush1.bf16.msra.mxu0 %v3188
    %3224 = vmatprep.subr.bf16.mxu0 0
    %3225 = vmatpush1.bf16.msra.mxu0 %v3189
    %3226 = vmatprep.subr.bf16.mxu0 0
    %3227 = vmatpush1.bf16.msra.mxu0 %v3190
    %3228 = vmatprep.subr.bf16.mxu0 0
    %3229 = vmatpush1.bf16.msra.mxu0 %v3191
    %3230 = vmatprep.subr.bf16.mxu0 0
    %3231 = vmatpush1.bf16.msra.mxu0 %v3192
    %3232 = vmatprep.subr.bf16.mxu0 0
    %3233 = vmatpush1.bf16.msra.mxu0 0
    %3234 = vmatprep.subr.bf16.mxu0 0
    %3235 = vmatpush1.bf16.msra.mxu0 0
    %3236 = vmatprep.subr.bf16.mxu0 0
    %3237 = vmatpush1.bf16.msra.mxu0 0
    %3238 = vmatprep.subr.bf16.mxu0 0
    %3239 = vmatpush1.bf16.msra.mxu0 0
    %3240 = vmatprep.mubr.bf16.mxu0 %v2734
    %3241 = vmatmul.mubr.bf16.gmra.mrb[0].mxu0 %v2420
    %v3242 = vpop.f32.mrb[0].mxu0
    %v3243 = vadd.f32 0.0, %v3242
    %v3244 = vpop.f32.mrb[0].mxu0
    %v3245 = vpop.f32.mrb[0].mxu0
    %v3246 = vadd.f32 0.0, %v3245
    %v3247 = vpop.f32.mrb[0].mxu0
    %3248 = vmatprep.mubr.bf16.mxu0 %v2737
    %3249 = vmatmul.mubr.bf16.gmra.mrb[0].mxu0 %v2422
    %v3250 = vpop.f32.mrb[0].mxu0
    %v3251 = vadd.f32 0.0, %v3250
    %v3252 = vpop.f32.mrb[0].mxu0
    %v3253 = vpop.f32.mrb[0].mxu0
    %v3254 = vadd.f32 0.0, %v3253
    %v3255 = vpop.f32.mrb[0].mxu0
    %3256 = vmatprep.mubr.bf16.mxu0 %v2740
    %3257 = vmatmul.mubr.bf16.gmra.mrb[0].mxu0 %v2424
    %v3258 = vpop.f32.mrb[0].mxu0
    %v3259 = vadd.f32 0.0, %v3258
    %v3260 = vpop.f32.mrb[0].mxu0
    %v3261 = vpop.f32.mrb[0].mxu0
    %v3262 = vadd.f32 0.0, %v3261
    %v3263 = vpop.f32.mrb[0].mxu0
    %3264 = vmatprep.mubr.bf16.mxu0 %v3206
    %3265 = vmatmul.mubr.bf16.gmra.mrb[0].mxu0 %v3106
    %v3266 = vpop.f32.mrb[0].mxu0
    %v3267 = vadd.f32 0.0, %v3266
    %v3268 = vpop.f32.mrb[0].mxu0
    %v3269 = vpop.f32.mrb[0].mxu0
    %v3270 = vadd.f32 0.0, %v3269
    %v3271 = vpop.f32.mrb[0].mxu0
    %3272 = vdwg.mxu0
    %v3273 = vadd.f32 %v2777, %v3243
    %v3274 = vadd.f32 %v2780, %v3246
    %v3275 = vadd.f32 %v2785, %v3251
    %v3276 = vadd.f32 %v2788, %v3254
    %v3277 = vadd.f32 %v2793, %v3259
    %v3278 = vadd.f32 %v2796, %v3262
    %v3279 = vadd.f32 %v2801, %v3267
    %v3280 = vadd.f32 %v2804, %v3270
    %s3281 = scalar_lea.vmem %s3, 672
    %v3282 = vld [vmem:[%s3281] sm:$0xf]
    %v3283 = vld [vmem:[%s3281 + $0x4] sm:$0xf]
    %v3284 = vld [vmem:[%s3281 + $0x8] sm:$0xf]
    %v3285 = vld [vmem:[%s3281 + $0xc] sm:$0xf]
    %v3286 = vld [vmem:[%s3281 + $0x10] sm:$0xf]
    %v3287 = vld [vmem:[%s3281 + $0x14] sm:$0xf]
    %v3288 = vld [vmem:[%s3281 + $0x18] sm:$0xf]
    %v3289 = vld [vmem:[%s3281 + $0x1c] sm:$0xf]
    %v3290 = vld [vmem:[%s3281 + $0x20] sm:$0xf]
    %v3291 = vld [vmem:[%s3281 + $0x24] sm:$0xf]
    %v3292 = vld [vmem:[%s3281 + $0x28] sm:$0xf]
    %v3293 = vld [vmem:[%s3281 + $0x2c] sm:$0xf]
    %v3294 = vld [vmem:[%s3281 + $0x30] sm:$0xf]
    %v3295 = vld [vmem:[%s3281 + $0x34] sm:$0xf]
    %v3296 = vld [vmem:[%s3281 + $0x38] sm:$0xf]
    %v3297 = vld [vmem:[%s3281 + $0x3c] sm:$0xf]
    %v3298 = vld [vmem:[%s3281 + $0x40] sm:$0xf]
    %v3299 = vld [vmem:[%s3281 + $0x44] sm:$0xf]
    %v3300 = vld [vmem:[%s3281 + $0x48] sm:$0xf]
    %v3301 = vld [vmem:[%s3281 + $0x4c] sm:$0xf]
    %v3302 = vld [vmem:[%s3281 + $0x50] sm:$0xf]
    %v3303 = vld [vmem:[%s3281 + $0x54] sm:$0xf]
    %v3304 = vld [vmem:[%s3281 + $0x58] sm:$0xf]
    %v3305 = vld [vmem:[%s3281 + $0x5c] sm:$0xf]
    %v3330 = vunpack.c.l.b16 %v3282
    %v3331 = vunpack.c.l.b16 %v3283
    %v3332 = vunpack.c.l.b16 %v3284
    %v3333 = vunpack.c.l.b16 %v3285
    %v3334 = vunpack.c.l.b16 %v3286
    %v3335 = vunpack.c.l.b16 %v3287
    %v3336 = vunpack.c.l.b16 %v3288
    %v3337 = vunpack.c.l.b16 %v3289
    %v3338 = vunpack.c.l.b16 %v3290
    %v3339 = vunpack.c.l.b16 %v3291
    %v3340 = vunpack.c.l.b16 %v3292
    %v3341 = vunpack.c.l.b16 %v3293
    %v3342 = vunpack.c.l.b16 %v3294
    %v3343 = vunpack.c.l.b16 %v3295
    %v3344 = vunpack.c.l.b16 %v3296
    %v3345 = vunpack.c.l.b16 %v3297
    %v3346 = vunpack.c.l.b16 %v3298
    %v3347 = vunpack.c.l.b16 %v3299
    %v3348 = vunpack.c.l.b16 %v3300
    %v3349 = vunpack.c.l.b16 %v3301
    %v3350 = vunpack.c.l.b16 %v3302
    %v3351 = vunpack.c.l.b16 %v3303
    %v3352 = vunpack.c.l.b16 %v3304
    %v3353 = vunpack.c.l.b16 %v3305
    %v3354 = vpack.c.b16 %v3331, %v3330
    %v3355 = vpack.c.b16 %v3333, %v3332
    %v3356 = vpack.c.b16 %v3335, %v3334
    %v3357 = vpack.c.b16 %v3337, %v3336
    %v3358 = vpack.c.b16 %v3339, %v3338
    %v3359 = vpack.c.b16 %v3341, %v3340
    %v3360 = vpack.c.b16 %v3343, %v3342
    %v3361 = vpack.c.b16 %v3345, %v3344
    %v3362 = vpack.c.b16 %v3347, %v3346
    %v3363 = vpack.c.b16 %v3349, %v3348
    %v3364 = vpack.c.b16 %v3351, %v3350
    %v3365 = vpack.c.b16 %v3353, %v3352
    %3378 = vmatprep.subr.bf16.mxu0 0
    %3379 = vmatpush1.bf16.msra.mxu0 %v3354
    %3380 = vmatprep.subr.bf16.mxu0 0
    %3381 = vmatpush1.bf16.msra.mxu0 %v3355
    %3382 = vmatprep.subr.bf16.mxu0 0
    %3383 = vmatpush1.bf16.msra.mxu0 %v3356
    %3384 = vmatprep.subr.bf16.mxu0 0
    %3385 = vmatpush1.bf16.msra.mxu0 %v3357
    %3386 = vmatprep.subr.bf16.mxu0 0
    %3387 = vmatpush1.bf16.msra.mxu0 %v3358
    %3388 = vmatprep.subr.bf16.mxu0 0
    %3389 = vmatpush1.bf16.msra.mxu0 %v3359
    %3390 = vmatprep.subr.bf16.mxu0 0
    %3391 = vmatpush1.bf16.msra.mxu0 %v3360
    %3392 = vmatprep.subr.bf16.mxu0 0
    %3393 = vmatpush1.bf16.msra.mxu0 %v3361
    %3394 = vmatprep.subr.bf16.mxu0 0
    %3395 = vmatpush1.bf16.msra.mxu0 %v3362
    %3396 = vmatprep.subr.bf16.mxu0 0
    %3397 = vmatpush1.bf16.msra.mxu0 %v3363
    %3398 = vmatprep.subr.bf16.mxu0 0
    %3399 = vmatpush1.bf16.msra.mxu0 %v3364
    %3400 = vmatprep.subr.bf16.mxu0 0
    %3401 = vmatpush1.bf16.msra.mxu0 %v3365
    %3402 = vmatprep.subr.bf16.mxu0 0
    %3403 = vmatpush1.bf16.msra.mxu0 0
    %3404 = vmatprep.subr.bf16.mxu0 0
    %3405 = vmatpush1.bf16.msra.mxu0 0
    %3406 = vmatprep.subr.bf16.mxu0 0
    %3407 = vmatpush1.bf16.msra.mxu0 0
    %3408 = vmatprep.subr.bf16.mxu0 0
    %3409 = vmatpush1.bf16.msra.mxu0 0
    %3410 = vmatprep.mubr.bf16.mxu0 %v2734
    %3411 = vmatmul.mubr.bf16.gmra.mrb[0].mxu0 %v2420
    %v3412 = vpop.f32.mrb[0].mxu0
    %v3413 = vadd.f32 0.0, %v3412
    %v3414 = vpop.f32.mrb[0].mxu0
    %v3415 = vpop.f32.mrb[0].mxu0
    %v3416 = vadd.f32 0.0, %v3415
    %v3417 = vpop.f32.mrb[0].mxu0
    %3418 = vmatprep.mubr.bf16.mxu0 %v2737
    %3419 = vmatmul.mubr.bf16.gmra.mrb[0].mxu0 %v2422
    %v3420 = vpop.f32.mrb[0].mxu0
    %v3421 = vadd.f32 0.0, %v3420
    %v3422 = vpop.f32.mrb[0].mxu0
    %v3423 = vpop.f32.mrb[0].mxu0
    %v3424 = vadd.f32 0.0, %v3423
    %v3425 = vpop.f32.mrb[0].mxu0
    %3426 = vmatprep.mubr.bf16.mxu0 %v2740
    %3427 = vmatmul.mubr.bf16.gmra.mrb[0].mxu0 %v2424
    %v3428 = vpop.f32.mrb[0].mxu0
    %v3429 = vadd.f32 0.0, %v3428
    %v3430 = vpop.f32.mrb[0].mxu0
    %v3431 = vpop.f32.mrb[0].mxu0
    %v3432 = vadd.f32 0.0, %v3431
    %v3433 = vpop.f32.mrb[0].mxu0
    %3434 = vmatprep.mubr.bf16.mxu0 %v3206
    %3435 = vmatmul.mubr.bf16.gmra.mrb[0].mxu0 %v3106
    %v3436 = vpop.f32.mrb[0].mxu0
    %v3437 = vadd.f32 0.0, %v3436
    %v3438 = vpop.f32.mrb[0].mxu0
    %v3439 = vpop.f32.mrb[0].mxu0
    %v3440 = vadd.f32 0.0, %v3439
    %v3441 = vpop.f32.mrb[0].mxu0
    %3442 = vdwg.mxu0
    %v3443 = vadd.f32 %v3076, %v3413
    %v3444 = vadd.f32 %v3079, %v3416
    %v3445 = vadd.f32 %v3084, %v3421
    %v3446 = vadd.f32 %v3087, %v3424
    %v3447 = vadd.f32 %v3092, %v3429
    %v3448 = vadd.f32 %v3095, %v3432
    %v3449 = vadd.f32 %v3100, %v3437
    %v3450 = vadd.f32 %v3103, %v3440
    %v3451 = vpack.c.bf16 %v2414, %v2412
    %v3452 = vpack.c.bf16 %v2415, %v2413
    %s3453 = scalar_lea.vmem %s3, 288
    %v3454 = vld [vmem:[%s3453] sm:$0xf]
    %v3455 = vld [vmem:[%s3453 + $0x4] sm:$0xf]
    %v3456 = vld [vmem:[%s3453 + $0x8] sm:$0xf]
    %v3457 = vld [vmem:[%s3453 + $0xc] sm:$0xf]
    %v3458 = vld [vmem:[%s3453 + $0x10] sm:$0xf]
    %v3459 = vld [vmem:[%s3453 + $0x14] sm:$0xf]
    %v3460 = vld [vmem:[%s3453 + $0x18] sm:$0xf]
    %v3461 = vld [vmem:[%s3453 + $0x1c] sm:$0xf]
    %v3462 = vld [vmem:[%s3453 + $0x20] sm:$0xf]
    %v3463 = vld [vmem:[%s3453 + $0x24] sm:$0xf]
    %v3464 = vld [vmem:[%s3453 + $0x28] sm:$0xf]
    %v3465 = vld [vmem:[%s3453 + $0x2c] sm:$0xf]
    %v3466 = vld [vmem:[%s3453 + $0x30] sm:$0xf]
    %v3467 = vld [vmem:[%s3453 + $0x34] sm:$0xf]
    %v3468 = vld [vmem:[%s3453 + $0x38] sm:$0xf]
    %v3469 = vld [vmem:[%s3453 + $0x3c] sm:$0xf]
    %v3470 = vld [vmem:[%s3453 + $0x40] sm:$0xf]
    %v3471 = vld [vmem:[%s3453 + $0x44] sm:$0xf]
    %v3472 = vld [vmem:[%s3453 + $0x48] sm:$0xf]
    %v3473 = vld [vmem:[%s3453 + $0x4c] sm:$0xf]
    %v3474 = vld [vmem:[%s3453 + $0x50] sm:$0xf]
    %v3475 = vld [vmem:[%s3453 + $0x54] sm:$0xf]
    %v3476 = vld [vmem:[%s3453 + $0x58] sm:$0xf]
    %v3477 = vld [vmem:[%s3453 + $0x5c] sm:$0xf]
    %v3502 = vunpack.c.l.b16 %v3454
    %v3503 = vunpack.c.l.b16 %v3455
    %v3504 = vunpack.c.l.b16 %v3456
    %v3505 = vunpack.c.l.b16 %v3457
    %v3506 = vunpack.c.l.b16 %v3458
    %v3507 = vunpack.c.l.b16 %v3459
    %v3508 = vunpack.c.l.b16 %v3460
    %v3509 = vunpack.c.l.b16 %v3461
    %v3510 = vunpack.c.l.b16 %v3462
    %v3511 = vunpack.c.l.b16 %v3463
    %v3512 = vunpack.c.l.b16 %v3464
    %v3513 = vunpack.c.l.b16 %v3465
    %v3514 = vunpack.c.l.b16 %v3466
    %v3515 = vunpack.c.l.b16 %v3467
    %v3516 = vunpack.c.l.b16 %v3468
    %v3517 = vunpack.c.l.b16 %v3469
    %v3518 = vunpack.c.l.b16 %v3470
    %v3519 = vunpack.c.l.b16 %v3471
    %v3520 = vunpack.c.l.b16 %v3472
    %v3521 = vunpack.c.l.b16 %v3473
    %v3522 = vunpack.c.l.b16 %v3474
    %v3523 = vunpack.c.l.b16 %v3475
    %v3524 = vunpack.c.l.b16 %v3476
    %v3525 = vunpack.c.l.b16 %v3477
    %v3526 = vpack.c.b16 %v3503, %v3502
    %v3527 = vpack.c.b16 %v3505, %v3504
    %v3528 = vpack.c.b16 %v3507, %v3506
    %v3529 = vpack.c.b16 %v3509, %v3508
    %v3530 = vpack.c.b16 %v3511, %v3510
    %v3531 = vpack.c.b16 %v3513, %v3512
    %v3532 = vpack.c.b16 %v3515, %v3514
    %v3533 = vpack.c.b16 %v3517, %v3516
    %v3534 = vpack.c.b16 %v3519, %v3518
    %v3535 = vpack.c.b16 %v3521, %v3520
    %v3536 = vpack.c.b16 %v3523, %v3522
    %v3537 = vpack.c.b16 %v3525, %v3524
    %v3551 = vsel %vm2580, %v3452, 0
    %3553 = vmatprep.subr.bf16.mxu0 0
    %3554 = vmatpush1.bf16.msra.mxu0 %v3526
    %3555 = vmatprep.subr.bf16.mxu0 0
    %3556 = vmatpush1.bf16.msra.mxu0 %v3527
    %3557 = vmatprep.subr.bf16.mxu0 0
    %3558 = vmatpush1.bf16.msra.mxu0 %v3528
    %3559 = vmatprep.subr.bf16.mxu0 0
    %3560 = vmatpush1.bf16.msra.mxu0 %v3529
    %3561 = vmatprep.subr.bf16.mxu0 0
    %3562 = vmatpush1.bf16.msra.mxu0 %v3530
    %3563 = vmatprep.subr.bf16.mxu0 0
    %3564 = vmatpush1.bf16.msra.mxu0 %v3531
    %3565 = vmatprep.subr.bf16.mxu0 0
    %3566 = vmatpush1.bf16.msra.mxu0 %v3532
    %3567 = vmatprep.subr.bf16.mxu0 0
    %3568 = vmatpush1.bf16.msra.mxu0 %v3533
    %3569 = vmatprep.subr.bf16.mxu0 0
    %3570 = vmatpush1.bf16.msra.mxu0 %v3534
    %3571 = vmatprep.subr.bf16.mxu0 0
    %3572 = vmatpush1.bf16.msra.mxu0 %v3535
    %3573 = vmatprep.subr.bf16.mxu0 0
    %3574 = vmatpush1.bf16.msra.mxu0 %v3536
    %3575 = vmatprep.subr.bf16.mxu0 0
    %3576 = vmatpush1.bf16.msra.mxu0 %v3537
    %3577 = vmatprep.subr.bf16.mxu0 0
    %3578 = vmatpush1.bf16.msra.mxu0 0
    %3579 = vmatprep.subr.bf16.mxu0 0
    %3580 = vmatpush1.bf16.msra.mxu0 0
    %3581 = vmatprep.subr.bf16.mxu0 0
    %3582 = vmatpush1.bf16.msra.mxu0 0
    %3583 = vmatprep.subr.bf16.mxu0 0
    %3584 = vmatpush1.bf16.msra.mxu0 0
    %3585 = vmatprep.mubr.bf16.mxu0 %v2585
    %3586 = vmatmul.mubr.bf16.gmra.mrb[0].mxu0 %v2477
    %v3587 = vpop.f32.mrb[0].mxu0
    %v3588 = vadd.f32 0.0, %v3587
    %v3589 = vpop.f32.mrb[0].mxu0
    %v3590 = vpop.f32.mrb[0].mxu0
    %v3591 = vadd.f32 0.0, %v3590
    %v3592 = vpop.f32.mrb[0].mxu0
    %3593 = vmatprep.mubr.bf16.mxu0 %v2588
    %3594 = vmatmul.mubr.bf16.gmra.mrb[0].mxu0 %v2479
    %v3595 = vpop.f32.mrb[0].mxu0
    %v3596 = vadd.f32 0.0, %v3595
    %v3597 = vpop.f32.mrb[0].mxu0
    %v3598 = vpop.f32.mrb[0].mxu0
    %v3599 = vadd.f32 0.0, %v3598
    %v3600 = vpop.f32.mrb[0].mxu0
    %3601 = vmatprep.mubr.bf16.mxu0 %v2591
    %3602 = vmatmul.mubr.bf16.gmra.mrb[0].mxu0 %v2481
    %v3603 = vpop.f32.mrb[0].mxu0
    %v3604 = vadd.f32 0.0, %v3603
    %v3605 = vpop.f32.mrb[0].mxu0
    %v3606 = vpop.f32.mrb[0].mxu0
    %v3607 = vadd.f32 0.0, %v3606
    %v3608 = vpop.f32.mrb[0].mxu0
    %3609 = vmatprep.mubr.bf16.mxu0 %v3551
    %3610 = vmatmul.mubr.bf16.gmra.mrb[0].mxu0 %v3451
    %v3611 = vpop.f32.mrb[0].mxu0
    %v3612 = vadd.f32 0.0, %v3611
    %v3613 = vpop.f32.mrb[0].mxu0
    %v3614 = vpop.f32.mrb[0].mxu0
    %v3615 = vadd.f32 0.0, %v3614
    %v3616 = vpop.f32.mrb[0].mxu0
    %3617 = vdwg.mxu0
    %v3618 = vadd.f32 %v3273, %v3588
    %v3619 = vadd.f32 %v3274, %v3591
    %v3620 = vadd.f32 %v3275, %v3596
    %v3621 = vadd.f32 %v3276, %v3599
    %v3622 = vadd.f32 %v3277, %v3604
    %v3623 = vadd.f32 %v3278, %v3607
    %v3624 = vadd.f32 %v3279, %v3612
    %v3625 = vadd.f32 %v3280, %v3615
    %s3626 = scalar_lea.vmem %s3, 768
    %v3627 = vld [vmem:[%s3626] sm:$0xf]
    %v3628 = vld [vmem:[%s3626 + $0x4] sm:$0xf]
    %v3629 = vld [vmem:[%s3626 + $0x8] sm:$0xf]
    %v3630 = vld [vmem:[%s3626 + $0xc] sm:$0xf]
    %v3631 = vld [vmem:[%s3626 + $0x10] sm:$0xf]
    %v3632 = vld [vmem:[%s3626 + $0x14] sm:$0xf]
    %v3633 = vld [vmem:[%s3626 + $0x18] sm:$0xf]
    %v3634 = vld [vmem:[%s3626 + $0x1c] sm:$0xf]
    %v3635 = vld [vmem:[%s3626 + $0x20] sm:$0xf]
    %v3636 = vld [vmem:[%s3626 + $0x24] sm:$0xf]
    %v3637 = vld [vmem:[%s3626 + $0x28] sm:$0xf]
    %v3638 = vld [vmem:[%s3626 + $0x2c] sm:$0xf]
    %v3639 = vld [vmem:[%s3626 + $0x30] sm:$0xf]
    %v3640 = vld [vmem:[%s3626 + $0x34] sm:$0xf]
    %v3641 = vld [vmem:[%s3626 + $0x38] sm:$0xf]
    %v3642 = vld [vmem:[%s3626 + $0x3c] sm:$0xf]
    %v3643 = vld [vmem:[%s3626 + $0x40] sm:$0xf]
    %v3644 = vld [vmem:[%s3626 + $0x44] sm:$0xf]
    %v3645 = vld [vmem:[%s3626 + $0x48] sm:$0xf]
    %v3646 = vld [vmem:[%s3626 + $0x4c] sm:$0xf]
    %v3647 = vld [vmem:[%s3626 + $0x50] sm:$0xf]
    %v3648 = vld [vmem:[%s3626 + $0x54] sm:$0xf]
    %v3649 = vld [vmem:[%s3626 + $0x58] sm:$0xf]
    %v3650 = vld [vmem:[%s3626 + $0x5c] sm:$0xf]
    %v3675 = vunpack.c.l.b16 %v3627
    %v3676 = vunpack.c.l.b16 %v3628
    %v3677 = vunpack.c.l.b16 %v3629
    %v3678 = vunpack.c.l.b16 %v3630
    %v3679 = vunpack.c.l.b16 %v3631
    %v3680 = vunpack.c.l.b16 %v3632
    %v3681 = vunpack.c.l.b16 %v3633
    %v3682 = vunpack.c.l.b16 %v3634
    %v3683 = vunpack.c.l.b16 %v3635
    %v3684 = vunpack.c.l.b16 %v3636
    %v3685 = vunpack.c.l.b16 %v3637
    %v3686 = vunpack.c.l.b16 %v3638
    %v3687 = vunpack.c.l.b16 %v3639
    %v3688 = vunpack.c.l.b16 %v3640
    %v3689 = vunpack.c.l.b16 %v3641
    %v3690 = vunpack.c.l.b16 %v3642
    %v3691 = vunpack.c.l.b16 %v3643
    %v3692 = vunpack.c.l.b16 %v3644
    %v3693 = vunpack.c.l.b16 %v3645
    %v3694 = vunpack.c.l.b16 %v3646
    %v3695 = vunpack.c.l.b16 %v3647
    %v3696 = vunpack.c.l.b16 %v3648
    %v3697 = vunpack.c.l.b16 %v3649
    %v3698 = vunpack.c.l.b16 %v3650
    %v3699 = vpack.c.b16 %v3676, %v3675
    %v3700 = vpack.c.b16 %v3678, %v3677
    %v3701 = vpack.c.b16 %v3680, %v3679
    %v3702 = vpack.c.b16 %v3682, %v3681
    %v3703 = vpack.c.b16 %v3684, %v3683
    %v3704 = vpack.c.b16 %v3686, %v3685
    %v3705 = vpack.c.b16 %v3688, %v3687
    %v3706 = vpack.c.b16 %v3690, %v3689
    %v3707 = vpack.c.b16 %v3692, %v3691
    %v3708 = vpack.c.b16 %v3694, %v3693
    %v3709 = vpack.c.b16 %v3696, %v3695
    %v3710 = vpack.c.b16 %v3698, %v3697
    %3723 = vmatprep.subr.bf16.mxu0 0
    %3724 = vmatpush1.bf16.msra.mxu0 %v3699
    %3725 = vmatprep.subr.bf16.mxu0 0
    %3726 = vmatpush1.bf16.msra.mxu0 %v3700
    %3727 = vmatprep.subr.bf16.mxu0 0
    %3728 = vmatpush1.bf16.msra.mxu0 %v3701
    %3729 = vmatprep.subr.bf16.mxu0 0
    %3730 = vmatpush1.bf16.msra.mxu0 %v3702
    %3731 = vmatprep.subr.bf16.mxu0 0
    %3732 = vmatpush1.bf16.msra.mxu0 %v3703
    %3733 = vmatprep.subr.bf16.mxu0 0
    %3734 = vmatpush1.bf16.msra.mxu0 %v3704
    %3735 = vmatprep.subr.bf16.mxu0 0
    %3736 = vmatpush1.bf16.msra.mxu0 %v3705
    %3737 = vmatprep.subr.bf16.mxu0 0
    %3738 = vmatpush1.bf16.msra.mxu0 %v3706
    %3739 = vmatprep.subr.bf16.mxu0 0
    %3740 = vmatpush1.bf16.msra.mxu0 %v3707
    %3741 = vmatprep.subr.bf16.mxu0 0
    %3742 = vmatpush1.bf16.msra.mxu0 %v3708
    %3743 = vmatprep.subr.bf16.mxu0 0
    %3744 = vmatpush1.bf16.msra.mxu0 %v3709
    %3745 = vmatprep.subr.bf16.mxu0 0
    %3746 = vmatpush1.bf16.msra.mxu0 %v3710
    %3747 = vmatprep.subr.bf16.mxu0 0
    %3748 = vmatpush1.bf16.msra.mxu0 0
    %3749 = vmatprep.subr.bf16.mxu0 0
    %3750 = vmatpush1.bf16.msra.mxu0 0
    %3751 = vmatprep.subr.bf16.mxu0 0
    %3752 = vmatpush1.bf16.msra.mxu0 0
    %3753 = vmatprep.subr.bf16.mxu0 0
    %3754 = vmatpush1.bf16.msra.mxu0 0
    %3755 = vmatprep.mubr.bf16.mxu0 %v2585
    %3756 = vmatmul.mubr.bf16.gmra.mrb[0].mxu0 %v2477
    %v3757 = vpop.f32.mrb[0].mxu0
    %v3758 = vadd.f32 0.0, %v3757
    %v3759 = vpop.f32.mrb[0].mxu0
    %v3760 = vpop.f32.mrb[0].mxu0
    %v3761 = vadd.f32 0.0, %v3760
    %v3762 = vpop.f32.mrb[0].mxu0
    %3763 = vmatprep.mubr.bf16.mxu0 %v2588
    %3764 = vmatmul.mubr.bf16.gmra.mrb[0].mxu0 %v2479
    %v3765 = vpop.f32.mrb[0].mxu0
    %v3766 = vadd.f32 0.0, %v3765
    %v3767 = vpop.f32.mrb[0].mxu0
    %v3768 = vpop.f32.mrb[0].mxu0
    %v3769 = vadd.f32 0.0, %v3768
    %v3770 = vpop.f32.mrb[0].mxu0
    %3771 = vmatprep.mubr.bf16.mxu0 %v2591
    %3772 = vmatmul.mubr.bf16.gmra.mrb[0].mxu0 %v2481
    %v3773 = vpop.f32.mrb[0].mxu0
    %v3774 = vadd.f32 0.0, %v3773
    %v3775 = vpop.f32.mrb[0].mxu0
    %v3776 = vpop.f32.mrb[0].mxu0
    %v3777 = vadd.f32 0.0, %v3776
    %v3778 = vpop.f32.mrb[0].mxu0
    %3779 = vmatprep.mubr.bf16.mxu0 %v3551
    %3780 = vmatmul.mubr.bf16.gmra.mrb[0].mxu0 %v3451
    %v3781 = vpop.f32.mrb[0].mxu0
    %v3782 = vadd.f32 0.0, %v3781
    %v3783 = vpop.f32.mrb[0].mxu0
    %v3784 = vpop.f32.mrb[0].mxu0
    %v3785 = vadd.f32 0.0, %v3784
    %v3786 = vpop.f32.mrb[0].mxu0
    %3787 = vdwg.mxu0
    %v3788 = vadd.f32 %v3443, %v3758
    %v3789 = vadd.f32 %v3444, %v3761
    %v3790 = vadd.f32 %v3445, %v3766
    %v3791 = vadd.f32 %v3446, %v3769
    %v3792 = vadd.f32 %v3447, %v3774
    %v3793 = vadd.f32 %v3448, %v3777
    %v3794 = vadd.f32 %v3449, %v3782
    %v3795 = vadd.f32 %v3450, %v3785
    %v3796 = vpack.c.bf16 %v2416, %v2414
    %v3797 = vpack.c.bf16 %v2417, %v2415
    %s3798 = scalar_lea.vmem %s3, 384
    %v3799 = vld [vmem:[%s3798] sm:$0xf]
    %v3800 = vld [vmem:[%s3798 + $0x4] sm:$0xf]
    %v3801 = vld [vmem:[%s3798 + $0x8] sm:$0xf]
    %v3802 = vld [vmem:[%s3798 + $0xc] sm:$0xf]
    %v3803 = vld [vmem:[%s3798 + $0x10] sm:$0xf]
    %v3804 = vld [vmem:[%s3798 + $0x14] sm:$0xf]
    %v3805 = vld [vmem:[%s3798 + $0x18] sm:$0xf]
    %v3806 = vld [vmem:[%s3798 + $0x1c] sm:$0xf]
    %v3807 = vld [vmem:[%s3798 + $0x20] sm:$0xf]
    %v3808 = vld [vmem:[%s3798 + $0x24] sm:$0xf]
    %v3809 = vld [vmem:[%s3798 + $0x28] sm:$0xf]
    %v3810 = vld [vmem:[%s3798 + $0x2c] sm:$0xf]
    %v3811 = vld [vmem:[%s3798 + $0x30] sm:$0xf]
    %v3812 = vld [vmem:[%s3798 + $0x34] sm:$0xf]
    %v3813 = vld [vmem:[%s3798 + $0x38] sm:$0xf]
    %v3814 = vld [vmem:[%s3798 + $0x3c] sm:$0xf]
    %v3815 = vld [vmem:[%s3798 + $0x40] sm:$0xf]
    %v3816 = vld [vmem:[%s3798 + $0x44] sm:$0xf]
    %v3817 = vld [vmem:[%s3798 + $0x48] sm:$0xf]
    %v3818 = vld [vmem:[%s3798 + $0x4c] sm:$0xf]
    %v3819 = vld [vmem:[%s3798 + $0x50] sm:$0xf]
    %v3820 = vld [vmem:[%s3798 + $0x54] sm:$0xf]
    %v3821 = vld [vmem:[%s3798 + $0x58] sm:$0xf]
    %v3822 = vld [vmem:[%s3798 + $0x5c] sm:$0xf]
    %v3847 = vunpack.c.l.b16 %v3799
    %v3848 = vunpack.c.l.b16 %v3800
    %v3849 = vunpack.c.l.b16 %v3801
    %v3850 = vunpack.c.l.b16 %v3802
    %v3851 = vunpack.c.l.b16 %v3803
    %v3852 = vunpack.c.l.b16 %v3804
    %v3853 = vunpack.c.l.b16 %v3805
    %v3854 = vunpack.c.l.b16 %v3806
    %v3855 = vunpack.c.l.b16 %v3807
    %v3856 = vunpack.c.l.b16 %v3808
    %v3857 = vunpack.c.l.b16 %v3809
    %v3858 = vunpack.c.l.b16 %v3810
    %v3859 = vunpack.c.l.b16 %v3811
    %v3860 = vunpack.c.l.b16 %v3812
    %v3861 = vunpack.c.l.b16 %v3813
    %v3862 = vunpack.c.l.b16 %v3814
    %v3863 = vunpack.c.l.b16 %v3815
    %v3864 = vunpack.c.l.b16 %v3816
    %v3865 = vunpack.c.l.b16 %v3817
    %v3866 = vunpack.c.l.b16 %v3818
    %v3867 = vunpack.c.l.b16 %v3819
    %v3868 = vunpack.c.l.b16 %v3820
    %v3869 = vunpack.c.l.b16 %v3821
    %v3870 = vunpack.c.l.b16 %v3822
    %v3871 = vpack.c.b16 %v3848, %v3847
    %v3872 = vpack.c.b16 %v3850, %v3849
    %v3873 = vpack.c.b16 %v3852, %v3851
    %v3874 = vpack.c.b16 %v3854, %v3853
    %v3875 = vpack.c.b16 %v3856, %v3855
    %v3876 = vpack.c.b16 %v3858, %v3857
    %v3877 = vpack.c.b16 %v3860, %v3859
    %v3878 = vpack.c.b16 %v3862, %v3861
    %v3879 = vpack.c.b16 %v3864, %v3863
    %v3880 = vpack.c.b16 %v3866, %v3865
    %v3881 = vpack.c.b16 %v3868, %v3867
    %v3882 = vpack.c.b16 %v3870, %v3869
    %v3896 = vsel %vm2580, %v3797, 0
    %3898 = vmatprep.subr.bf16.mxu0 0
    %3899 = vmatpush1.bf16.msra.mxu0 %v3871
    %3900 = vmatprep.subr.bf16.mxu0 0
    %3901 = vmatpush1.bf16.msra.mxu0 %v3872
    %3902 = vmatprep.subr.bf16.mxu0 0
    %3903 = vmatpush1.bf16.msra.mxu0 %v3873
    %3904 = vmatprep.subr.bf16.mxu0 0
    %3905 = vmatpush1.bf16.msra.mxu0 %v3874
    %3906 = vmatprep.subr.bf16.mxu0 0
    %3907 = vmatpush1.bf16.msra.mxu0 %v3875
    %3908 = vmatprep.subr.bf16.mxu0 0
    %3909 = vmatpush1.bf16.msra.mxu0 %v3876
    %3910 = vmatprep.subr.bf16.mxu0 0
    %3911 = vmatpush1.bf16.msra.mxu0 %v3877
    %3912 = vmatprep.subr.bf16.mxu0 0
    %3913 = vmatpush1.bf16.msra.mxu0 %v3878
    %3914 = vmatprep.subr.bf16.mxu0 0
    %3915 = vmatpush1.bf16.msra.mxu0 %v3879
    %3916 = vmatprep.subr.bf16.mxu0 0
    %3917 = vmatpush1.bf16.msra.mxu0 %v3880
    %3918 = vmatprep.subr.bf16.mxu0 0
    %3919 = vmatpush1.bf16.msra.mxu0 %v3881
    %3920 = vmatprep.subr.bf16.mxu0 0
    %3921 = vmatpush1.bf16.msra.mxu0 %v3882
    %3922 = vmatprep.subr.bf16.mxu0 0
    %3923 = vmatpush1.bf16.msra.mxu0 0
    %3924 = vmatprep.subr.bf16.mxu0 0
    %3925 = vmatpush1.bf16.msra.mxu0 0
    %3926 = vmatprep.subr.bf16.mxu0 0
    %3927 = vmatpush1.bf16.msra.mxu0 0
    %3928 = vmatprep.subr.bf16.mxu0 0
    %3929 = vmatpush1.bf16.msra.mxu0 0
    %3930 = vmatprep.mubr.bf16.mxu0 %v2737
    %3931 = vmatmul.mubr.bf16.gmra.mrb[0].mxu0 %v2422
    %v3932 = vpop.f32.mrb[0].mxu0
    %v3933 = vadd.f32 0.0, %v3932
    %v3934 = vpop.f32.mrb[0].mxu0
    %v3935 = vpop.f32.mrb[0].mxu0
    %v3936 = vadd.f32 0.0, %v3935
    %v3937 = vpop.f32.mrb[0].mxu0
    %3938 = vmatprep.mubr.bf16.mxu0 %v2740
    %3939 = vmatmul.mubr.bf16.gmra.mrb[0].mxu0 %v2424
    %v3940 = vpop.f32.mrb[0].mxu0
    %v3941 = vadd.f32 0.0, %v3940
    %v3942 = vpop.f32.mrb[0].mxu0
    %v3943 = vpop.f32.mrb[0].mxu0
    %v3944 = vadd.f32 0.0, %v3943
    %v3945 = vpop.f32.mrb[0].mxu0
    %3946 = vmatprep.mubr.bf16.mxu0 %v3206
    %3947 = vmatmul.mubr.bf16.gmra.mrb[0].mxu0 %v3106
    %v3948 = vpop.f32.mrb[0].mxu0
    %v3949 = vadd.f32 0.0, %v3948
    %v3950 = vpop.f32.mrb[0].mxu0
    %v3951 = vpop.f32.mrb[0].mxu0
    %v3952 = vadd.f32 0.0, %v3951
    %v3953 = vpop.f32.mrb[0].mxu0
    %3954 = vmatprep.mubr.bf16.mxu0 %v3896
    %3955 = vmatmul.mubr.bf16.gmra.mrb[0].mxu0 %v3796
    %v3956 = vpop.f32.mrb[0].mxu0
    %v3957 = vadd.f32 0.0, %v3956
    %v3958 = vpop.f32.mrb[0].mxu0
    %v3959 = vpop.f32.mrb[0].mxu0
    %v3960 = vadd.f32 0.0, %v3959
    %v3961 = vpop.f32.mrb[0].mxu0
    %3962 = vdwg.mxu0
    %v3963 = vadd.f32 %v3618, %v3933
    %v3964 = vadd.f32 %v3619, %v3936
    %v3965 = vadd.f32 %v3620, %v3941
    %v3966 = vadd.f32 %v3621, %v3944
    %v3967 = vadd.f32 %v3622, %v3949
    %v3968 = vadd.f32 %v3623, %v3952
    %v3969 = vadd.f32 %v3624, %v3957
    %v3970 = vadd.f32 %v3625, %v3960
    %s3971 = scalar_lea.vmem %s3, 864
    %v3972 = vld [vmem:[%s3971] sm:$0xf]
    %v3973 = vld [vmem:[%s3971 + $0x4] sm:$0xf]
    %v3974 = vld [vmem:[%s3971 + $0x8] sm:$0xf]
    %v3975 = vld [vmem:[%s3971 + $0xc] sm:$0xf]
    %v3976 = vld [vmem:[%s3971 + $0x10] sm:$0xf]
    %v3977 = vld [vmem:[%s3971 + $0x14] sm:$0xf]
    %v3978 = vld [vmem:[%s3971 + $0x18] sm:$0xf]
    %v3979 = vld [vmem:[%s3971 + $0x1c] sm:$0xf]
    %v3980 = vld [vmem:[%s3971 + $0x20] sm:$0xf]
    %v3981 = vld [vmem:[%s3971 + $0x24] sm:$0xf]
    %v3982 = vld [vmem:[%s3971 + $0x28] sm:$0xf]
    %v3983 = vld [vmem:[%s3971 + $0x2c] sm:$0xf]
    %v3984 = vld [vmem:[%s3971 + $0x30] sm:$0xf]
    %v3985 = vld [vmem:[%s3971 + $0x34] sm:$0xf]
    %v3986 = vld [vmem:[%s3971 + $0x38] sm:$0xf]
    %v3987 = vld [vmem:[%s3971 + $0x3c] sm:$0xf]
    %v3988 = vld [vmem:[%s3971 + $0x40] sm:$0xf]
    %v3989 = vld [vmem:[%s3971 + $0x44] sm:$0xf]
    %v3990 = vld [vmem:[%s3971 + $0x48] sm:$0xf]
    %v3991 = vld [vmem:[%s3971 + $0x4c] sm:$0xf]
    %v3992 = vld [vmem:[%s3971 + $0x50] sm:$0xf]
    %v3993 = vld [vmem:[%s3971 + $0x54] sm:$0xf]
    %v3994 = vld [vmem:[%s3971 + $0x58] sm:$0xf]
    %v3995 = vld [vmem:[%s3971 + $0x5c] sm:$0xf]
    %v4020 = vunpack.c.l.b16 %v3972
    %v4021 = vunpack.c.l.b16 %v3973
    %v4022 = vunpack.c.l.b16 %v3974
    %v4023 = vunpack.c.l.b16 %v3975
    %v4024 = vunpack.c.l.b16 %v3976
    %v4025 = vunpack.c.l.b16 %v3977
    %v4026 = vunpack.c.l.b16 %v3978
    %v4027 = vunpack.c.l.b16 %v3979
    %v4028 = vunpack.c.l.b16 %v3980
    %v4029 = vunpack.c.l.b16 %v3981
    %v4030 = vunpack.c.l.b16 %v3982
    %v4031 = vunpack.c.l.b16 %v3983
    %v4032 = vunpack.c.l.b16 %v3984
    %v4033 = vunpack.c.l.b16 %v3985
    %v4034 = vunpack.c.l.b16 %v3986
    %v4035 = vunpack.c.l.b16 %v3987
    %v4036 = vunpack.c.l.b16 %v3988
    %v4037 = vunpack.c.l.b16 %v3989
    %v4038 = vunpack.c.l.b16 %v3990
    %v4039 = vunpack.c.l.b16 %v3991
    %v4040 = vunpack.c.l.b16 %v3992
    %v4041 = vunpack.c.l.b16 %v3993
    %v4042 = vunpack.c.l.b16 %v3994
    %v4043 = vunpack.c.l.b16 %v3995
    %v4044 = vpack.c.b16 %v4021, %v4020
    %v4045 = vpack.c.b16 %v4023, %v4022
    %v4046 = vpack.c.b16 %v4025, %v4024
    %v4047 = vpack.c.b16 %v4027, %v4026
    %v4048 = vpack.c.b16 %v4029, %v4028
    %v4049 = vpack.c.b16 %v4031, %v4030
    %v4050 = vpack.c.b16 %v4033, %v4032
    %v4051 = vpack.c.b16 %v4035, %v4034
    %v4052 = vpack.c.b16 %v4037, %v4036
    %v4053 = vpack.c.b16 %v4039, %v4038
    %v4054 = vpack.c.b16 %v4041, %v4040
    %v4055 = vpack.c.b16 %v4043, %v4042
    %4068 = vmatprep.subr.bf16.mxu0 0
    %4069 = vmatpush1.bf16.msra.mxu0 %v4044
    %4070 = vmatprep.subr.bf16.mxu0 0
    %4071 = vmatpush1.bf16.msra.mxu0 %v4045
    %4072 = vmatprep.subr.bf16.mxu0 0
    %4073 = vmatpush1.bf16.msra.mxu0 %v4046
    %4074 = vmatprep.subr.bf16.mxu0 0
    %4075 = vmatpush1.bf16.msra.mxu0 %v4047
    %4076 = vmatprep.subr.bf16.mxu0 0
    %4077 = vmatpush1.bf16.msra.mxu0 %v4048
    %4078 = vmatprep.subr.bf16.mxu0 0
    %4079 = vmatpush1.bf16.msra.mxu0 %v4049
    %4080 = vmatprep.subr.bf16.mxu0 0
    %4081 = vmatpush1.bf16.msra.mxu0 %v4050
    %4082 = vmatprep.subr.bf16.mxu0 0
    %4083 = vmatpush1.bf16.msra.mxu0 %v4051
    %4084 = vmatprep.subr.bf16.mxu0 0
    %4085 = vmatpush1.bf16.msra.mxu0 %v4052
    %4086 = vmatprep.subr.bf16.mxu0 0
    %4087 = vmatpush1.bf16.msra.mxu0 %v4053
    %4088 = vmatprep.subr.bf16.mxu0 0
    %4089 = vmatpush1.bf16.msra.mxu0 %v4054
    %4090 = vmatprep.subr.bf16.mxu0 0
    %4091 = vmatpush1.bf16.msra.mxu0 %v4055
    %4092 = vmatprep.subr.bf16.mxu0 0
    %4093 = vmatpush1.bf16.msra.mxu0 0
    %4094 = vmatprep.subr.bf16.mxu0 0
    %4095 = vmatpush1.bf16.msra.mxu0 0
    %4096 = vmatprep.subr.bf16.mxu0 0
    %4097 = vmatpush1.bf16.msra.mxu0 0
    %4098 = vmatprep.subr.bf16.mxu0 0
    %4099 = vmatpush1.bf16.msra.mxu0 0
    %4100 = vmatprep.mubr.bf16.mxu0 %v2737
    %4101 = vmatmul.mubr.bf16.gmra.mrb[0].mxu0 %v2422
    %v4102 = vpop.f32.mrb[0].mxu0
    %v4103 = vadd.f32 0.0, %v4102
    %v4104 = vpop.f32.mrb[0].mxu0
    %v4105 = vpop.f32.mrb[0].mxu0
    %v4106 = vadd.f32 0.0, %v4105
    %v4107 = vpop.f32.mrb[0].mxu0
    %4108 = vmatprep.mubr.bf16.mxu0 %v2740
    %4109 = vmatmul.mubr.bf16.gmra.mrb[0].mxu0 %v2424
    %v4110 = vpop.f32.mrb[0].mxu0
    %v4111 = vadd.f32 0.0, %v4110
    %v4112 = vpop.f32.mrb[0].mxu0
    %v4113 = vpop.f32.mrb[0].mxu0
    %v4114 = vadd.f32 0.0, %v4113
    %v4115 = vpop.f32.mrb[0].mxu0
    %4116 = vmatprep.mubr.bf16.mxu0 %v3206
    %4117 = vmatmul.mubr.bf16.gmra.mrb[0].mxu0 %v3106
    %v4118 = vpop.f32.mrb[0].mxu0
    %v4119 = vadd.f32 0.0, %v4118
    %v4120 = vpop.f32.mrb[0].mxu0
    %v4121 = vpop.f32.mrb[0].mxu0
    %v4122 = vadd.f32 0.0, %v4121
    %v4123 = vpop.f32.mrb[0].mxu0
    %4124 = vmatprep.mubr.bf16.mxu0 %v3896
    %4125 = vmatmul.mubr.bf16.gmra.mrb[0].mxu0 %v3796
    %v4126 = vpop.f32.mrb[0].mxu0
    %v4127 = vadd.f32 0.0, %v4126
    %v4128 = vpop.f32.mrb[0].mxu0
    %v4129 = vpop.f32.mrb[0].mxu0
    %v4130 = vadd.f32 0.0, %v4129
    %v4131 = vpop.f32.mrb[0].mxu0
    %4132 = vdwg.mxu0
    %v4133 = vadd.f32 %v3788, %v4103
    %v4134 = vadd.f32 %v3789, %v4106
    %v4135 = vadd.f32 %v3790, %v4111
    %v4136 = vadd.f32 %v3791, %v4114
    %v4137 = vadd.f32 %v3792, %v4119
    %v4138 = vadd.f32 %v3793, %v4122
    %v4139 = vadd.f32 %v3794, %v4127
    %v4140 = vadd.f32 %v3795, %v4130
    %v4141 = vmax.f32 %v3963, %v4133
    %v4142 = vmax.f32 %v3964, %v4134
    %v4143 = vmax.f32 %v3965, %v4135
    %v4144 = vmax.f32 %v3966, %v4136
    %v4145 = vmax.f32 %v3967, %v4137
    %v4146 = vmax.f32 %v3968, %v4138
    %v4147 = vmax.f32 %v3969, %v4139
    %v4148 = vmax.f32 %v3970, %v4140
    %v4149 = vmax.f32 %v4141, %v4142
    %v4150 = vmax.f32 %v4143, %v4144
    %v4151 = vmax.f32 %v4145, %v4146
    %v4152 = vmax.f32 %v4147, %v4148
    %v4153 = vld [vmem:[%s4] sm:$0x1]
    %v4155 = vlaneseq
    %v4156 = vshrl.u32 %v4155, 7
    %v4157 = vsub.s32 0, %v4156
    %v4158 = vrot.slane %v4153, %v4157
    %v4160 = vadd.f32 %v4149, %v4158
    %v4161 = vadd.f32 %v4150, %v4158
    %v4162 = vadd.f32 %v4151, %v4158
    %v4163 = vadd.f32 %v4152, %v4158
    %v4164 = vmax.f32 %v4160, 0.0
    %v4165 = vmax.f32 %v4161, 0.0
    %v4166 = vmax.f32 %v4162, 0.0
    %v4167 = vmax.f32 %v4163, 0.0
    %v4168 = vpack.c.bf16 %v4164, %v4164
    %v4169 = vld [vmem:[#allocation2] sm:$0xf]
    %v4170 = vld [vmem:[#allocation2 + $0x4] sm:$0xf]
    %v4171 = vld [vmem:[#allocation2 + $0x8] sm:$0xf]
    %v4172 = vld [vmem:[#allocation2 + $0xc] sm:$0xf]
    %v4173 = vld [vmem:[#allocation2 + $0x10] sm:$0xf]
    %v4174 = vld [vmem:[#allocation2 + $0x14] sm:$0xf]
    %v4175 = vld [vmem:[#allocation2 + $0x18] sm:$0xf]
    %v4176 = vld [vmem:[#allocation2 + $0x1c] sm:$0xf]
    %v4177 = vld [vmem:[#allocation2 + $0x20] sm:$0xf]
    %v4178 = vld [vmem:[#allocation2 + $0x24] sm:$0xf]
    %v4179 = vld [vmem:[#allocation2 + $0x28] sm:$0xf]
    %v4180 = vld [vmem:[#allocation2 + $0x2c] sm:$0xf]
    %v4181 = vld [vmem:[#allocation2 + $0x30] sm:$0xf]
    %v4182 = vld [vmem:[#allocation2 + $0x34] sm:$0xf]
    %v4183 = vld [vmem:[#allocation2 + $0x38] sm:$0xf]
    %v4184 = vld [vmem:[#allocation2 + $0x3c] sm:$0xf]
    %v4185 = vpack.c.bf16 %v4165, %v4165
    %s4186 = scalar_lea.vmem [#allocation2], 64
    %v4187 = vld [vmem:[%s4186] sm:$0xf]
    %v4188 = vld [vmem:[%s4186 + $0x4] sm:$0xf]
    %v4189 = vld [vmem:[%s4186 + $0x8] sm:$0xf]
    %v4190 = vld [vmem:[%s4186 + $0xc] sm:$0xf]
    %v4191 = vld [vmem:[%s4186 + $0x10] sm:$0xf]
    %v4192 = vld [vmem:[%s4186 + $0x14] sm:$0xf]
    %v4193 = vld [vmem:[%s4186 + $0x18] sm:$0xf]
    %v4194 = vld [vmem:[%s4186 + $0x1c] sm:$0xf]
    %v4195 = vld [vmem:[%s4186 + $0x20] sm:$0xf]
    %v4196 = vld [vmem:[%s4186 + $0x24] sm:$0xf]
    %v4197 = vld [vmem:[%s4186 + $0x28] sm:$0xf]
    %v4198 = vld [vmem:[%s4186 + $0x2c] sm:$0xf]
    %v4199 = vld [vmem:[%s4186 + $0x30] sm:$0xf]
    %v4200 = vld [vmem:[%s4186 + $0x34] sm:$0xf]
    %v4201 = vld [vmem:[%s4186 + $0x38] sm:$0xf]
    %v4202 = vld [vmem:[%s4186 + $0x3c] sm:$0xf]
    %v4219 = vunpack.c.l.b16 %v4187
    %v4220 = vunpack.c.l.b16 %v4188
    %v4221 = vunpack.c.l.b16 %v4189
    %v4222 = vunpack.c.l.b16 %v4190
    %v4223 = vunpack.c.l.b16 %v4191
    %v4224 = vunpack.c.l.b16 %v4192
    %v4225 = vunpack.c.l.b16 %v4193
    %v4226 = vunpack.c.l.b16 %v4194
    %v4227 = vunpack.c.l.b16 %v4195
    %v4228 = vunpack.c.l.b16 %v4196
    %v4229 = vunpack.c.l.b16 %v4197
    %v4230 = vunpack.c.l.b16 %v4198
    %v4231 = vunpack.c.l.b16 %v4199
    %v4232 = vunpack.c.l.b16 %v4200
    %v4233 = vunpack.c.l.b16 %v4201
    %v4234 = vunpack.c.l.b16 %v4202
    %v4235 = vpack.c.b16 %v4220, %v4219
    %v4236 = vpack.c.b16 %v4222, %v4221
    %v4237 = vpack.c.b16 %v4224, %v4223
    %v4238 = vpack.c.b16 %v4226, %v4225
    %v4239 = vpack.c.b16 %v4228, %v4227
    %v4240 = vpack.c.b16 %v4230, %v4229
    %v4241 = vpack.c.b16 %v4232, %v4231
    %v4242 = vpack.c.b16 %v4234, %v4233
    %4251 = vmatprep.subr.bf16.mxu0 0
    %4252 = vmatpush1.bf16.msra.mxu0 %v4235
    %4253 = vmatprep.subr.bf16.mxu0 0
    %4254 = vmatpush1.bf16.msra.mxu0 %v4236
    %4255 = vmatprep.subr.bf16.mxu0 0
    %4256 = vmatpush1.bf16.msra.mxu0 %v4237
    %4257 = vmatprep.subr.bf16.mxu0 0
    %4258 = vmatpush1.bf16.msra.mxu0 %v4238
    %4259 = vmatprep.subr.bf16.mxu0 0
    %4260 = vmatpush1.bf16.msra.mxu0 %v4239
    %4261 = vmatprep.subr.bf16.mxu0 0
    %4262 = vmatpush1.bf16.msra.mxu0 %v4240
    %4263 = vmatprep.subr.bf16.mxu0 0
    %4264 = vmatpush1.bf16.msra.mxu0 %v4241
    %4265 = vmatprep.subr.bf16.mxu0 0
    %4266 = vmatpush1.bf16.msra.mxu0 %v4242
    %4267 = vmatprep.subr.bf16.mxu0 0
    %4268 = vmatpush1.bf16.msra.mxu0 0
    %4269 = vmatprep.subr.bf16.mxu0 0
    %4270 = vmatpush1.bf16.msra.mxu0 0
    %4271 = vmatprep.subr.bf16.mxu0 0
    %4272 = vmatpush1.bf16.msra.mxu0 0
    %4273 = vmatprep.subr.bf16.mxu0 0
    %4274 = vmatpush1.bf16.msra.mxu0 0
    %4275 = vmatprep.subr.bf16.mxu0 0
    %4276 = vmatpush1.bf16.msra.mxu0 0
    %4277 = vmatprep.subr.bf16.mxu0 0
    %4278 = vmatpush1.bf16.msra.mxu0 0
    %4279 = vmatprep.subr.bf16.mxu0 0
    %4280 = vmatpush1.bf16.msra.mxu0 0
    %4281 = vmatprep.subr.bf16.mxu0 0
    %4282 = vmatpush1.bf16.msra.mxu0 0
    %4283 = vmatprep.mubr.bf16.mxu0 0
    %4284 = vmatmul.mubr.bf16.gmra.mrb[0].mxu0 %v4185
    %v4285 = vpop.f32.mrb[0].mxu0
    %v4286 = vadd.f32 0.0, %v4285
    %v4287 = vpop.f32.mrb[0].mxu0
    %v4288 = vpop.f32.mrb[0].mxu0
    %v4289 = vpop.f32.mrb[0].mxu0
    %4290 = vdwg.mxu0
    %v4307 = vunpack.c.l.b16 %v4169
    %v4308 = vunpack.c.l.b16 %v4170
    %v4309 = vunpack.c.l.b16 %v4171
    %v4310 = vunpack.c.l.b16 %v4172
    %v4311 = vunpack.c.l.b16 %v4173
    %v4312 = vunpack.c.l.b16 %v4174
    %v4313 = vunpack.c.l.b16 %v4175
    %v4314 = vunpack.c.l.b16 %v4176
    %v4315 = vunpack.c.l.b16 %v4177
    %v4316 = vunpack.c.l.b16 %v4178
    %v4317 = vunpack.c.l.b16 %v4179
    %v4318 = vunpack.c.l.b16 %v4180
    %v4319 = vunpack.c.l.b16 %v4181
    %v4320 = vunpack.c.l.b16 %v4182
    %v4321 = vunpack.c.l.b16 %v4183
    %v4322 = vunpack.c.l.b16 %v4184
    %v4323 = vpack.c.b16 %v4308, %v4307
    %v4324 = vpack.c.b16 %v4310, %v4309
    %v4325 = vpack.c.b16 %v4312, %v4311
    %v4326 = vpack.c.b16 %v4314, %v4313
    %v4327 = vpack.c.b16 %v4316, %v4315
    %v4328 = vpack.c.b16 %v4318, %v4317
    %v4329 = vpack.c.b16 %v4320, %v4319
    %v4330 = vpack.c.b16 %v4322, %v4321
    %4339 = vmatprep.subr.bf16.mxu0 0
    %4340 = vmatpush1.bf16.msra.mxu0 %v4323
    %4341 = vmatprep.subr.bf16.mxu0 0
    %4342 = vmatpush1.bf16.msra.mxu0 %v4324
    %4343 = vmatprep.subr.bf16.mxu0 0
    %4344 = vmatpush1.bf16.msra.mxu0 %v4325
    %4345 = vmatprep.subr.bf16.mxu0 0
    %4346 = vmatpush1.bf16.msra.mxu0 %v4326
    %4347 = vmatprep.subr.bf16.mxu0 0
    %4348 = vmatpush1.bf16.msra.mxu0 %v4327
    %4349 = vmatprep.subr.bf16.mxu0 0
    %4350 = vmatpush1.bf16.msra.mxu0 %v4328
    %4351 = vmatprep.subr.bf16.mxu0 0
    %4352 = vmatpush1.bf16.msra.mxu0 %v4329
    %4353 = vmatprep.subr.bf16.mxu0 0
    %4354 = vmatpush1.bf16.msra.mxu0 %v4330
    %4355 = vmatprep.subr.bf16.mxu0 0
    %4356 = vmatpush1.bf16.msra.mxu0 0
    %4357 = vmatprep.subr.bf16.mxu0 0
    %4358 = vmatpush1.bf16.msra.mxu0 0
    %4359 = vmatprep.subr.bf16.mxu0 0
    %4360 = vmatpush1.bf16.msra.mxu0 0
    %4361 = vmatprep.subr.bf16.mxu0 0
    %4362 = vmatpush1.bf16.msra.mxu0 0
    %4363 = vmatprep.subr.bf16.mxu0 0
    %4364 = vmatpush1.bf16.msra.mxu0 0
    %4365 = vmatprep.subr.bf16.mxu0 0
    %4366 = vmatpush1.bf16.msra.mxu0 0
    %4367 = vmatprep.subr.bf16.mxu0 0
    %4368 = vmatpush1.bf16.msra.mxu0 0
    %4369 = vmatprep.subr.bf16.mxu0 0
    %4370 = vmatpush1.bf16.msra.mxu0 0
    %4371 = vmatprep.mubr.bf16.mxu0 0
    %4372 = vmatmul.mubr.bf16.gmra.mrb[0].mxu0 %v4168
    %v4373 = vpop.f32.mrb[0].mxu0
    %v4374 = vadd.f32 %v4286, %v4373
    %v4375 = vpop.f32.mrb[0].mxu0
    %v4376 = vpop.f32.mrb[0].mxu0
    %v4377 = vpop.f32.mrb[0].mxu0
    %4378 = vdwg.mxu0
    %v4379 = vpack.c.bf16 %v4166, %v4166
    %s4380 = scalar_lea.vmem [#allocation2], 128
    %v4381 = vld [vmem:[%s4380] sm:$0xf]
    %v4382 = vld [vmem:[%s4380 + $0x4] sm:$0xf]
    %v4383 = vld [vmem:[%s4380 + $0x8] sm:$0xf]
    %v4384 = vld [vmem:[%s4380 + $0xc] sm:$0xf]
    %v4385 = vld [vmem:[%s4380 + $0x10] sm:$0xf]
    %v4386 = vld [vmem:[%s4380 + $0x14] sm:$0xf]
    %v4387 = vld [vmem:[%s4380 + $0x18] sm:$0xf]
    %v4388 = vld [vmem:[%s4380 + $0x1c] sm:$0xf]
    %v4389 = vld [vmem:[%s4380 + $0x20] sm:$0xf]
    %v4390 = vld [vmem:[%s4380 + $0x24] sm:$0xf]
    %v4391 = vld [vmem:[%s4380 + $0x28] sm:$0xf]
    %v4392 = vld [vmem:[%s4380 + $0x2c] sm:$0xf]
    %v4393 = vld [vmem:[%s4380 + $0x30] sm:$0xf]
    %v4394 = vld [vmem:[%s4380 + $0x34] sm:$0xf]
    %v4395 = vld [vmem:[%s4380 + $0x38] sm:$0xf]
    %v4396 = vld [vmem:[%s4380 + $0x3c] sm:$0xf]
    %v4413 = vunpack.c.l.b16 %v4381
    %v4414 = vunpack.c.l.b16 %v4382
    %v4415 = vunpack.c.l.b16 %v4383
    %v4416 = vunpack.c.l.b16 %v4384
    %v4417 = vunpack.c.l.b16 %v4385
    %v4418 = vunpack.c.l.b16 %v4386
    %v4419 = vunpack.c.l.b16 %v4387
    %v4420 = vunpack.c.l.b16 %v4388
    %v4421 = vunpack.c.l.b16 %v4389
    %v4422 = vunpack.c.l.b16 %v4390
    %v4423 = vunpack.c.l.b16 %v4391
    %v4424 = vunpack.c.l.b16 %v4392
    %v4425 = vunpack.c.l.b16 %v4393
    %v4426 = vunpack.c.l.b16 %v4394
    %v4427 = vunpack.c.l.b16 %v4395
    %v4428 = vunpack.c.l.b16 %v4396
    %v4429 = vpack.c.b16 %v4414, %v4413
    %v4430 = vpack.c.b16 %v4416, %v4415
    %v4431 = vpack.c.b16 %v4418, %v4417
    %v4432 = vpack.c.b16 %v4420, %v4419
    %v4433 = vpack.c.b16 %v4422, %v4421
    %v4434 = vpack.c.b16 %v4424, %v4423
    %v4435 = vpack.c.b16 %v4426, %v4425
    %v4436 = vpack.c.b16 %v4428, %v4427
    %4445 = vmatprep.subr.bf16.mxu0 0
    %4446 = vmatpush1.bf16.msra.mxu0 %v4429
    %4447 = vmatprep.subr.bf16.mxu0 0
    %4448 = vmatpush1.bf16.msra.mxu0 %v4430
    %4449 = vmatprep.subr.bf16.mxu0 0
    %4450 = vmatpush1.bf16.msra.mxu0 %v4431
    %4451 = vmatprep.subr.bf16.mxu0 0
    %4452 = vmatpush1.bf16.msra.mxu0 %v4432
    %4453 = vmatprep.subr.bf16.mxu0 0
    %4454 = vmatpush1.bf16.msra.mxu0 %v4433
    %4455 = vmatprep.subr.bf16.mxu0 0
    %4456 = vmatpush1.bf16.msra.mxu0 %v4434
    %4457 = vmatprep.subr.bf16.mxu0 0
    %4458 = vmatpush1.bf16.msra.mxu0 %v4435
    %4459 = vmatprep.subr.bf16.mxu0 0
    %4460 = vmatpush1.bf16.msra.mxu0 %v4436
    %4461 = vmatprep.subr.bf16.mxu0 0
    %4462 = vmatpush1.bf16.msra.mxu0 0
    %4463 = vmatprep.subr.bf16.mxu0 0
    %4464 = vmatpush1.bf16.msra.mxu0 0
    %4465 = vmatprep.subr.bf16.mxu0 0
    %4466 = vmatpush1.bf16.msra.mxu0 0
    %4467 = vmatprep.subr.bf16.mxu0 0
    %4468 = vmatpush1.bf16.msra.mxu0 0
    %4469 = vmatprep.subr.bf16.mxu0 0
    %4470 = vmatpush1.bf16.msra.mxu0 0
    %4471 = vmatprep.subr.bf16.mxu0 0
    %4472 = vmatpush1.bf16.msra.mxu0 0
    %4473 = vmatprep.subr.bf16.mxu0 0
    %4474 = vmatpush1.bf16.msra.mxu0 0
    %4475 = vmatprep.subr.bf16.mxu0 0
    %4476 = vmatpush1.bf16.msra.mxu0 0
    %4477 = vmatprep.mubr.bf16.mxu0 0
    %4478 = vmatmul.mubr.bf16.gmra.mrb[0].mxu0 %v4379
    %v4479 = vpop.f32.mrb[0].mxu0
    %v4480 = vadd.f32 0.0, %v4479
    %v4481 = vpop.f32.mrb[0].mxu0
    %v4482 = vpop.f32.mrb[0].mxu0
    %v4483 = vpop.f32.mrb[0].mxu0
    %4484 = vdwg.mxu0
    %v4485 = vadd.f32 %v4374, %v4480
    %v4486 = vpack.c.bf16 %v4167, %v4167
    %s4487 = scalar_lea.vmem [#allocation2], 192
    %v4488 = vld [vmem:[%s4487] sm:$0xf]
    %v4489 = vld [vmem:[%s4487 + $0x4] sm:$0xf]
    %v4490 = vld [vmem:[%s4487 + $0x8] sm:$0xf]
    %v4491 = vld [vmem:[%s4487 + $0xc] sm:$0xf]
    %v4492 = vld [vmem:[%s4487 + $0x10] sm:$0xf]
    %v4493 = vld [vmem:[%s4487 + $0x14] sm:$0xf]
    %v4494 = vld [vmem:[%s4487 + $0x18] sm:$0xf]
    %v4495 = vld [vmem:[%s4487 + $0x1c] sm:$0xf]
    %v4496 = vld [vmem:[%s4487 + $0x20] sm:$0xf]
    %v4497 = vld [vmem:[%s4487 + $0x24] sm:$0xf]
    %v4498 = vld [vmem:[%s4487 + $0x28] sm:$0xf]
    %v4499 = vld [vmem:[%s4487 + $0x2c] sm:$0xf]
    %v4500 = vld [vmem:[%s4487 + $0x30] sm:$0xf]
    %v4501 = vld [vmem:[%s4487 + $0x34] sm:$0xf]
    %v4502 = vld [vmem:[%s4487 + $0x38] sm:$0xf]
    %v4503 = vld [vmem:[%s4487 + $0x3c] sm:$0xf]
    %v4520 = vunpack.c.l.b16 %v4488
    %v4521 = vunpack.c.l.b16 %v4489
    %v4522 = vunpack.c.l.b16 %v4490
    %v4523 = vunpack.c.l.b16 %v4491
    %v4524 = vunpack.c.l.b16 %v4492
    %v4525 = vunpack.c.l.b16 %v4493
    %v4526 = vunpack.c.l.b16 %v4494
    %v4527 = vunpack.c.l.b16 %v4495
    %v4528 = vunpack.c.l.b16 %v4496
    %v4529 = vunpack.c.l.b16 %v4497
    %v4530 = vunpack.c.l.b16 %v4498
    %v4531 = vunpack.c.l.b16 %v4499
    %v4532 = vunpack.c.l.b16 %v4500
    %v4533 = vunpack.c.l.b16 %v4501
    %v4534 = vunpack.c.l.b16 %v4502
    %v4535 = vunpack.c.l.b16 %v4503
    %v4536 = vpack.c.b16 %v4521, %v4520
    %v4537 = vpack.c.b16 %v4523, %v4522
    %v4538 = vpack.c.b16 %v4525, %v4524
    %v4539 = vpack.c.b16 %v4527, %v4526
    %v4540 = vpack.c.b16 %v4529, %v4528
    %v4541 = vpack.c.b16 %v4531, %v4530
    %v4542 = vpack.c.b16 %v4533, %v4532
    %v4543 = vpack.c.b16 %v4535, %v4534
    %4552 = vmatprep.subr.bf16.mxu0 0
    %4553 = vmatpush1.bf16.msra.mxu0 %v4536
    %4554 = vmatprep.subr.bf16.mxu0 0
    %4555 = vmatpush1.bf16.msra.mxu0 %v4537
    %4556 = vmatprep.subr.bf16.mxu0 0
    %4557 = vmatpush1.bf16.msra.mxu0 %v4538
    %4558 = vmatprep.subr.bf16.mxu0 0
    %4559 = vmatpush1.bf16.msra.mxu0 %v4539
    %4560 = vmatprep.subr.bf16.mxu0 0
    %4561 = vmatpush1.bf16.msra.mxu0 %v4540
    %4562 = vmatprep.subr.bf16.mxu0 0
    %4563 = vmatpush1.bf16.msra.mxu0 %v4541
    %4564 = vmatprep.subr.bf16.mxu0 0
    %4565 = vmatpush1.bf16.msra.mxu0 %v4542
    %4566 = vmatprep.subr.bf16.mxu0 0
    %4567 = vmatpush1.bf16.msra.mxu0 %v4543
    %4568 = vmatprep.subr.bf16.mxu0 0
    %4569 = vmatpush1.bf16.msra.mxu0 0
    %4570 = vmatprep.subr.bf16.mxu0 0
    %4571 = vmatpush1.bf16.msra.mxu0 0
    %4572 = vmatprep.subr.bf16.mxu0 0
    %4573 = vmatpush1.bf16.msra.mxu0 0
    %4574 = vmatprep.subr.bf16.mxu0 0
    %4575 = vmatpush1.bf16.msra.mxu0 0
    %4576 = vmatprep.subr.bf16.mxu0 0
    %4577 = vmatpush1.bf16.msra.mxu0 0
    %4578 = vmatprep.subr.bf16.mxu0 0
    %4579 = vmatpush1.bf16.msra.mxu0 0
    %4580 = vmatprep.subr.bf16.mxu0 0
    %4581 = vmatpush1.bf16.msra.mxu0 0
    %4582 = vmatprep.subr.bf16.mxu0 0
    %4583 = vmatpush1.bf16.msra.mxu0 0
    %4584 = vmatprep.mubr.bf16.mxu0 0
    %4585 = vmatmul.mubr.bf16.gmra.mrb[0].mxu0 %v4486
    %v4586 = vpop.f32.mrb[0].mxu0
    %v4587 = vadd.f32 0.0, %v4586
    %v4588 = vpop.f32.mrb[0].mxu0
    %v4589 = vpop.f32.mrb[0].mxu0
    %v4590 = vpop.f32.mrb[0].mxu0
    %4591 = vdwg.mxu0
    %v4592 = vadd.f32 %v4485, %v4587
    %v4593 = vld [vmem:[%s6] sm:$0x1]
    %v4595 = vlaneseq
    %v4596 = vshrl.u32 %v4595, 7
    %v4597 = vsub.s32 0, %v4596
    %v4598 = vrot.slane %v4593, %v4597
    %v4600 = vadd.f32 %v4592, %v4598
    %4601 = vst [vmem:[%s7] sm:$0xff] %v4600
    // Predicated region
    $region34: #{simple_cnn_forward.1} parent=1 // pred_check
      _
    $region35: #{simple_cnn_forward.1} parent=1 // pred_check_branch
      %4603 = sbr.rel (0) target = $region37
    $region36: #{simple_cnn_forward.1} parent=1 // pred_region
      _
    $region37: #{simple_cnn_forward.1} parent=1 // pred_fallthru
      _
    // Predicated region
    $region38: #{simple_cnn_forward.1} parent=1 // pred_check
      _
    $region39: #{simple_cnn_forward.1} parent=1 // pred_check_branch
      %4605 = sbr.rel (0) target = $region41
    $region40: #{simple_cnn_forward.1} parent=1 // pred_region
      _
    $region41: #{simple_cnn_forward.1} parent=1 // pred_fallthru
      _
    %4606 = vsyncpa [#allocation3], 1

</llo_original>
